<compile_context>
chip_gen: v6e
topology: v6e:2x2x1
jax: 0.10.0
libtpu: 0.0.40
codegen_flags: <defaults>
</compile_context>

<pallas_src>
import functools

import jax
import jax.numpy as jnp
from jax.experimental import pallas as pl
from jax.experimental.pallas import tpu as pltpu


def _fused_lstm_head_kernel(num_layers, seq_len, batch, hidden, *refs):
    """All LSTM layers + Linear head in one grid-less kernel invocation.

    `batch` is the sublane-padded batch (multiple of 8).

    refs layout:
      inputs : x2d (T*B, Fp) bf16,
               [wih_t (Fin_l, 4H) bf16, whh_t (H, 4H) bf16, b (1, 4H) f32] * L,
               lin_w_t (H, O) bf16, lin_b (1, O) f32
      outputs: out (B, O) f32
      scratch: gates (T*B, 4H) f32, hseq (T*B, H) f32   (VMEM)
    """
    n_in = 1 + 3 * num_layers + 2
    x_ref = refs[0]
    layer_refs = [tuple(refs[1 + 3 * l: 4 + 3 * l]) for l in range(num_layers)]
    wlin_ref = refs[1 + 3 * num_layers]
    blin_ref = refs[2 + 3 * num_layers]
    out_ref = refs[n_in]
    gates_sc, hseq_sc = refs[n_in + 1:]

    unroll = min(seq_len, 8)

    def run_layer(layer_idx):
        wih_ref, whh_ref, b_ref = layer_refs[layer_idx]
        # Layer input: raw x (bf16) or previous layer's hidden sequence
        # (f32 scratch, cast once per layer for the MXU feed).
        if layer_idx == 0:
            layer_in = x_ref[...]
        else:
            layer_in = hseq_sc[...].astype(jnp.bfloat16)

        # Hoisted input projection: ONE big MXU matmul over ALL timesteps,
        # combined bias (b_ih + b_hh) folded in, outside the recurrence.
        gates_sc[...] = (
            jnp.dot(layer_in, wih_ref[...], preferred_element_type=jnp.float32)
            + b_ref[...]
        )

        write_seq = layer_idx + 1 < num_layers   # last layer: skip hseq stores

        def step(t, carry):
            h, c = carry                                       # f32, in vregs
            row = pl.multiple_of(t * batch, batch)             # 8-row aligned
            # Only the recurrent matmul remains on the serial critical path.
            g = gates_sc[pl.ds(row, batch), :] + jnp.dot(
                h.astype(jnp.bfloat16), whh_ref[...],
                preferred_element_type=jnp.float32)
            # PyTorch gate order: i, f, g, o. hidden is a multiple of 128 so
            # each gate slice is a lane-aligned vreg column.
            i_g = jax.nn.sigmoid(g[:, 0 * hidden:1 * hidden])
            f_g = jax.nn.sigmoid(g[:, 1 * hidden:2 * hidden])
            g_g = jnp.tanh(g[:, 2 * hidden:3 * hidden])
            o_g = jax.nn.sigmoid(g[:, 3 * hidden:4 * hidden])
            c_new = f_g * c + i_g * g_g
            h_new = o_g * jnp.tanh(c_new)
            if write_seq:
                hseq_sc[pl.ds(row, batch), :] = h_new
            return (h_new, c_new)

        h0 = jnp.zeros((batch, hidden), jnp.float32)
        c0 = jnp.zeros((batch, hidden), jnp.float32)
        h_last, _ = jax.lax.fori_loop(0, seq_len, step, (h0, c0), unroll=unroll)
        return h_last

    h_final = None
    for layer_idx in range(num_layers):
        h_final = run_layer(layer_idx)

    # Linear head fused on the final hidden state only (== lstm_out[:, -1, :]).
    out_ref[...] = (
        jnp.dot(h_final.astype(jnp.bfloat16), wlin_ref[...],
                preferred_element_type=jnp.float32)
        + blin_ref[...]
    )


def _round_up(v, m):
    return -(-v // m) * m


def _padded_vmem_bytes(shape, dtype):
    """Upper-bound VMEM footprint of one buffer after (sublane, 128) tiling."""
    itemsize = jnp.dtype(dtype).itemsize
    shape = (1,) * max(0, 2 - len(shape)) + tuple(shape)
    sublane = 8 * max(1, 4 // itemsize)            # f32: 8 rows, bf16: 16 rows
    rows = _round_up(shape[-2], sublane)
    lanes = _round_up(shape[-1], 128)
    lead = 1
    for d in shape[:-2]:
        lead *= d
    return lead * rows * lanes * itemsize


def lstm_forward(x_btf, params):
    """x_btf: (B, T, F) batch_first, like the PyTorch module. Returns (B, O)."""
    B, T, Fin = x_btf.shape
    layers = params["lstm_layers"]
    num_layers = len(layers)
    H = layers[0][1].shape[0]        # whh_t is (H, 4H)
    O = params["lin_w_t"].shape[1]

    Bp = _round_up(B, 8)             # sublane-aligned batch
    Fp = _round_up(Fin, 8)           # sublane-aligned feature dim

    # Zero-pad batch & features; padded rows are row-independent through every
    # matmul/elementwise op, so slicing [:B] at the end is exact.
    x_pad = jnp.zeros((Bp, T, Fp), jnp.float32).at[:B, :, :Fin].set(x_btf)
    # Time-major, rows ordered (t, b): the per-layer input projection becomes a
    # single (T*Bp, Fp) x (Fp, 4H) matmul, and each timestep is an aligned
    # 8-row slab.
    x_tb = jnp.transpose(x_pad, (1, 0, 2)).reshape(T * Bp, Fp).astype(jnp.bfloat16)

    flat_in = [x_tb]
    in_specs = [pl.BlockSpec((T * Bp, Fp), lambda: (0, 0))]
    for li, (wih_t, whh_t, b) in enumerate(layers):
        fin = wih_t.shape[0]
        if li == 0 and fin != Fp:    # pad layer-0 K dim to match padded x
            wih_t = jnp.zeros((Fp, 4 * H), wih_t.dtype).at[:fin].set(wih_t)
        wih_bf = wih_t.astype(jnp.bfloat16)
        whh_bf = whh_t.astype(jnp.bfloat16)
        flat_in += [wih_bf, whh_bf, b]
        in_specs += [
            pl.BlockSpec(wih_bf.shape, lambda: (0, 0)),
            pl.BlockSpec(whh_bf.shape, lambda: (0, 0)),
            pl.BlockSpec(b.shape, lambda: (0, 0)),
        ]
    lin_w_bf = params["lin_w_t"].astype(jnp.bfloat16)
    flat_in += [lin_w_bf, params["lin_b"]]
    in_specs += [
        pl.BlockSpec(lin_w_bf.shape, lambda: (0, 0)),
        pl.BlockSpec(params["lin_b"].shape, lambda: (0, 0)),
    ]

    scratch_defs = [
        ((T * Bp, 4 * H), jnp.float32),   # hoisted gate pre-activations
        ((T * Bp, H), jnp.float32),       # inter-layer hidden sequence
    ]

    # Derive the scoped-VMEM request from the actual footprint (2x headroom),
    # clamped to the smallest physical budget across generations (v7x 64 MiB).
    total = sum(_padded_vmem_bytes(a.shape, a.dtype) for a in flat_in)
    total += _padded_vmem_bytes((Bp, O), jnp.float32)
    total += sum(_padded_vmem_bytes(s, d) for s, d in scratch_defs)
    vmem_limit = int(min(64 * 1024 * 1024, max(4 * 1024 * 1024, 2 * total)))

    kernel = functools.partial(_fused_lstm_head_kernel, num_layers, T, Bp, H)
    out_p = pl.pallas_call(
        kernel,
        out_shape=jax.ShapeDtypeStruct((Bp, O), jnp.float32),
        in_specs=in_specs,
        out_specs=pl.BlockSpec((Bp, O), lambda: (0, 0)),
        scratch_shapes=[pltpu.VMEM(s, d) for s, d in scratch_defs],
        compiler_params=pltpu.CompilerParams(vmem_limit_bytes=vmem_limit),
    )(*flat_in)
    return out_p[:B]


# ----------------------------------------------------------------------------
# Deterministic parameter init (PyTorch LSTM-style uniform(-1/sqrt(H), 1/sqrt(H)))
# ----------------------------------------------------------------------------
def init_params(key, input_size, hidden_size, num_layers, output_size):
    bound = 1.0 / jnp.sqrt(jnp.float32(hidden_size))
    layers = []
    for layer in range(num_layers):
        fin = input_size if layer == 0 else hidden_size
        key, k1, k2, k3, k4 = jax.random.split(key, 5)
        w_ih = jax.random.uniform(k1, (4 * hidden_size, fin), jnp.float32, -bound, bound)
        w_hh = jax.random.uniform(k2, (4 * hidden_size, hidden_size), jnp.float32, -bound, bound)
        b_ih = jax.random.uniform(k3, (4 * hidden_size,), jnp.float32, -bound, bound)
        b_hh = jax.random.uniform(k4, (4 * hidden_size,), jnp.float32, -bound, bound)
        layers.append((w_ih.T, w_hh.T, (b_ih + b_hh).reshape(1, -1)))
    key, k5, k6 = jax.random.split(key, 3)
    lin_w = jax.random.uniform(k5, (output_size, hidden_size), jnp.float32, -bound, bound)
    lin_b = jax.random.uniform(k6, (output_size,), jnp.float32, -bound, bound)
    return {
        "lstm_layers": layers,
        "lin_w_t": lin_w.T,
        "lin_b": lin_b.reshape(1, -1),
    }


# Pure-JAX f32 reference (same math) for a correctness cross-check.
def lstm_forward_ref(x_btf, params):
    x_tbf = jnp.transpose(x_btf, (1, 0, 2))
    h_seq = x_tbf
    for (wih_t, whh_t, b) in params["lstm_layers"]:
        H = whh_t.shape[0]
        B = h_seq.shape[1]

        def step(carry, x_t):
            h, c = carry
            gates = x_t @ wih_t + h @ whh_t + b
            i = jax.nn.sigmoid(gates[:, 0 * H:1 * H])
            f = jax.nn.sigmoid(gates[:, 1 * H:2 * H])
            g = jnp.tanh(gates[:, 2 * H:3 * H])
            o = jax.nn.sigmoid(gates[:, 3 * H:4 * H])
            c = f * c + i * g
            h = o * jnp.tanh(c)
            return (h, c), h

        init = (jnp.zeros((B, H), jnp.float32), jnp.zeros((B, H), jnp.float32))
        _, h_seq = jax.lax.scan(step, init, h_seq)
    return h_seq[-1] @ params["lin_w_t"] + params["lin_b"]


if __name__ == "__main__":
    # Small shapes consistent with the module: 7 input features (close, volume,
    # pct, ma5, ma10, upper, lower), horizon=3 outputs, 2 LSTM layers.
    # hidden_size=128 keeps each gate slice lane-aligned (multiple of 128).
    batch, seq, input_size = 2, 8, 7
    hidden_size, num_layers, output_size = 128, 2, 3

    key = jax.random.PRNGKey(0)
    k_x, k_p = jax.random.split(key)
    x = jax.random.normal(k_x, (batch, seq, input_size), jnp.float32)
    params = init_params(k_p, input_size, hidden_size, num_layers, output_size)

    out = jax.block_until_ready(lstm_forward(x, params))
    ref = jax.block_until_ready(lstm_forward_ref(x, params))

    assert out.shape == (batch, output_size), out.shape
    # Tolerance loosened vs. the f32 reference because the MXU is fed bf16
    # (accumulation and all elementwise recurrence math stay f32).
    assert jnp.allclose(out, ref, atol=3e-2, rtol=3e-2), (out, ref)
    print("KERNEL_OK")
</pallas_src>

<mosaic_0001>
module attributes {stable_mosaic.version = 11 : i64} {
  func.func @_fused_lstm_head_kernel(%arg0: memref<64x8xbf16, #tpu.memory_space<vmem>>, %arg1: memref<8x512xbf16, #tpu.memory_space<vmem>>, %arg2: memref<128x512xbf16, #tpu.memory_space<vmem>>, %arg3: memref<1x512xf32, #tpu.memory_space<vmem>>, %arg4: memref<128x512xbf16, #tpu.memory_space<vmem>>, %arg5: memref<128x512xbf16, #tpu.memory_space<vmem>>, %arg6: memref<1x512xf32, #tpu.memory_space<vmem>>, %arg7: memref<128x3xbf16, #tpu.memory_space<vmem>>, %arg8: memref<1x3xf32, #tpu.memory_space<vmem>>, %arg9: memref<8x3xf32, #tpu.memory_space<vmem>>, %arg10: memref<64x512xf32, #tpu.memory_space<vmem>>, %arg11: memref<64x128xf32, #tpu.memory_space<vmem>>) attributes {dimension_semantics = [], scalar_prefetch = 0 : i64, scratch_operands = 2 : i64, tpu.core_type = #tpu.core_type<tc>} {
    %c0 = arith.constant 0 : index
    %c0_0 = arith.constant 0 : index
    %0 = vector.load %arg0[%c0, %c0_0] : memref<64x8xbf16, #tpu.memory_space<vmem>>, vector<64x8xbf16>
    %c0_1 = arith.constant 0 : index
    %c0_2 = arith.constant 0 : index
    %1 = vector.load %arg1[%c0_1, %c0_2] : memref<8x512xbf16, #tpu.memory_space<vmem>>, vector<8x512xbf16>
    %cst = arith.constant dense<0.000000e+00> : vector<64x512xf32>
    %2 = tpu.matmul %0, %1, %cst {dimension_numbers = #tpu.dot_dimension_numbers<[1], [0], [0], [1], [0, 0, 1, 1], [], []>} : vector<64x8xbf16>, vector<8x512xbf16>, vector<64x512xf32> -> vector<64x512xf32>
    %c0_3 = arith.constant 0 : index
    %c0_4 = arith.constant 0 : index
    %3 = vector.load %arg3[%c0_3, %c0_4] : memref<1x512xf32, #tpu.memory_space<vmem>>, vector<1x512xf32>
    %4 = vector.broadcast %3 : vector<1x512xf32> to vector<64x512xf32>
    %5 = arith.addf %2, %4 : vector<64x512xf32>
    %c0_5 = arith.constant 0 : index
    %c0_6 = arith.constant 0 : index
    %6 = vector.load %arg10[%c0_5, %c0_6] : memref<64x512xf32, #tpu.memory_space<vmem>>, vector<64x512xf32>
    tpu.vector_store %arg10[%c0_5, %c0_6], %5 {strides = array<i32>} : memref<64x512xf32, #tpu.memory_space<vmem>>, vector<64x512xf32>,
    %cst_7 = arith.constant 0.000000e+00 : f32
    %7 = vector.broadcast %cst_7 : f32 to vector<8x128xf32>
    %cst_8 = arith.constant 0.000000e+00 : f32
    %8 = vector.broadcast %cst_8 : f32 to vector<8x128xf32>
    %c0_i32 = arith.constant 0 : i32
    %c8_i32 = arith.constant 8 : i32
    %9 = arith.muli %c0_i32, %c8_i32 : i32
    %10 = tpu.assume_multiple %9, 8 : i32
    %11 = arith.index_cast %10 : i32 to index
    %c0_9 = arith.constant 0 : index
    %12 = vector.load %arg10[%11, %c0_9] : memref<64x512xf32, #tpu.memory_space<vmem>>, vector<8x512xf32>
    %13 = arith.truncf %7 : vector<8x128xf32> to vector<8x128xbf16>
    %c0_10 = arith.constant 0 : index
    %c0_11 = arith.constant 0 : index
    %14 = vector.load %arg2[%c0_10, %c0_11] : memref<128x512xbf16, #tpu.memory_space<vmem>>, vector<128x512xbf16>
    %cst_12 = arith.constant dense<0.000000e+00> : vector<8x512xf32>
    %15 = tpu.matmul %13, %14, %cst_12 {dimension_numbers = #tpu.dot_dimension_numbers<[1], [0], [0], [1], [0, 0, 1, 1], [], []>} : vector<8x128xbf16>, vector<128x512xbf16>, vector<8x512xf32> -> vector<8x512xf32>
    %16 = arith.addf %12, %15 : vector<8x512xf32>
    %17 = vector.extract_strided_slice %16 {offsets = [0, 0], sizes = [8, 128], strides = [1, 1]} : vector<8x512xf32> to vector<8x128xf32>
    %18 = arith.negf %17 : vector<8x128xf32>
    %19 = math.exp %18 : vector<8x128xf32>
    %cst_13 = arith.constant 1.000000e+00 : f32
    %20 = vector.broadcast %cst_13 : f32 to vector<8x128xf32>
    %21 = arith.addf %20, %19 : vector<8x128xf32>
    %22 = arith.divf %20, %21 : vector<8x128xf32>
    %23 = vector.extract_strided_slice %16 {offsets = [0, 128], sizes = [8, 128], strides = [1, 1]} : vector<8x512xf32> to vector<8x128xf32>
    %24 = arith.negf %23 : vector<8x128xf32>
    %25 = math.exp %24 : vector<8x128xf32>
    %cst_14 = arith.constant 1.000000e+00 : f32
    %26 = vector.broadcast %cst_14 : f32 to vector<8x128xf32>
    %27 = arith.addf %26, %25 : vector<8x128xf32>
    %28 = arith.divf %26, %27 : vector<8x128xf32>
    %29 = vector.extract_strided_slice %16 {offsets = [0, 256], sizes = [8, 128], strides = [1, 1]} : vector<8x512xf32> to vector<8x128xf32>
    %30 = math.tanh %29 : vector<8x128xf32>
    %31 = vector.extract_strided_slice %16 {offsets = [0, 384], sizes = [8, 128], strides = [1, 1]} : vector<8x512xf32> to vector<8x128xf32>
    %32 = arith.negf %31 : vector<8x128xf32>
    %33 = math.exp %32 : vector<8x128xf32>
    %cst_15 = arith.constant 1.000000e+00 : f32
    %34 = vector.broadcast %cst_15 : f32 to vector<8x128xf32>
    %35 = arith.addf %34, %33 : vector<8x128xf32>
    %36 = arith.divf %34, %35 : vector<8x128xf32>
    %37 = arith.mulf %28, %8 : vector<8x128xf32>
    %38 = arith.mulf %22, %30 : vector<8x128xf32>
    %39 = arith.addf %37, %38 : vector<8x128xf32>
    %40 = math.tanh %39 : vector<8x128xf32>
    %41 = arith.mulf %36, %40 : vector<8x128xf32>
    %42 = arith.index_cast %10 : i32 to index
    %c0_16 = arith.constant 0 : index
    %43 = vector.load %arg11[%42, %c0_16] : memref<64x128xf32, #tpu.memory_space<vmem>>, vector<8x128xf32>
    tpu.vector_store %arg11[%42, %c0_16], %41 {strides = array<i32>} : memref<64x128xf32, #tpu.memory_space<vmem>>, vector<8x128xf32>,
    %c1_i32 = arith.constant 1 : i32
    %c8_i32_17 = arith.constant 8 : i32
    %44 = arith.muli %c1_i32, %c8_i32_17 : i32
    %45 = tpu.assume_multiple %44, 8 : i32
    %46 = arith.index_cast %45 : i32 to index
    %c0_18 = arith.constant 0 : index
    %47 = vector.load %arg10[%46, %c0_18] : memref<64x512xf32, #tpu.memory_space<vmem>>, vector<8x512xf32>
    %48 = arith.truncf %41 : vector<8x128xf32> to vector<8x128xbf16>
    %c0_19 = arith.constant 0 : index
    %c0_20 = arith.constant 0 : index
    %49 = vector.load %arg2[%c0_19, %c0_20] : memref<128x512xbf16, #tpu.memory_space<vmem>>, vector<128x512xbf16>
    %cst_21 = arith.constant dense<0.000000e+00> : vector<8x512xf32>
    %50 = tpu.matmul %48, %49, %cst_21 {dimension_numbers = #tpu.dot_dimension_numbers<[1], [0], [0], [1], [0, 0, 1, 1], [], []>} : vector<8x128xbf16>, vector<128x512xbf16>, vector<8x512xf32> -> vector<8x512xf32>
    %51 = arith.addf %47, %50 : vector<8x512xf32>
    %52 = vector.extract_strided_slice %51 {offsets = [0, 0], sizes = [8, 128], strides = [1, 1]} : vector<8x512xf32> to vector<8x128xf32>
    %53 = arith.negf %52 : vector<8x128xf32>
    %54 = math.exp %53 : vector<8x128xf32>
    %cst_22 = arith.constant 1.000000e+00 : f32
    %55 = vector.broadcast %cst_22 : f32 to vector<8x128xf32>
    %56 = arith.addf %55, %54 : vector<8x128xf32>
    %57 = arith.divf %55, %56 : vector<8x128xf32>
    %58 = vector.extract_strided_slice %51 {offsets = [0, 128], sizes = [8, 128], strides = [1, 1]} : vector<8x512xf32> to vector<8x128xf32>
    %59 = arith.negf %58 : vector<8x128xf32>
    %60 = math.exp %59 : vector<8x128xf32>
    %cst_23 = arith.constant 1.000000e+00 : f32
    %61 = vector.broadcast %cst_23 : f32 to vector<8x128xf32>
    %62 = arith.addf %61, %60 : vector<8x128xf32>
    %63 = arith.divf %61, %62 : vector<8x128xf32>
    %64 = vector.extract_strided_slice %51 {offsets = [0, 256], sizes = [8, 128], strides = [1, 1]} : vector<8x512xf32> to vector<8x128xf32>
    %65 = math.tanh %64 : vector<8x128xf32>
    %66 = vector.extract_strided_slice %51 {offsets = [0, 384], sizes = [8, 128], strides = [1, 1]} : vector<8x512xf32> to vector<8x128xf32>
    %67 = arith.negf %66 : vector<8x128xf32>
    %68 = math.exp %67 : vector<8x128xf32>
    %cst_24 = arith.constant 1.000000e+00 : f32
    %69 = vector.broadcast %cst_24 : f32 to vector<8x128xf32>
    %70 = arith.addf %69, %68 : vector<8x128xf32>
    %71 = arith.divf %69, %70 : vector<8x128xf32>
    %72 = arith.mulf %63, %39 : vector<8x128xf32>
    %73 = arith.mulf %57, %65 : vector<8x128xf32>
    %74 = arith.addf %72, %73 : vector<8x128xf32>
    %75 = math.tanh %74 : vector<8x128xf32>
    %76 = arith.mulf %71, %75 : vector<8x128xf32>
    %77 = arith.index_cast %45 : i32 to index
    %c0_25 = arith.constant 0 : index
    %78 = vector.load %arg11[%77, %c0_25] : memref<64x128xf32, #tpu.memory_space<vmem>>, vector<8x128xf32>
    tpu.vector_store %arg11[%77, %c0_25], %76 {strides = array<i32>} : memref<64x128xf32, #tpu.memory_space<vmem>>, vector<8x128xf32>,
    %c2_i32 = arith.constant 2 : i32
    %c8_i32_26 = arith.constant 8 : i32
    %79 = arith.muli %c2_i32, %c8_i32_26 : i32
    %80 = tpu.assume_multiple %79, 8 : i32
    %81 = arith.index_cast %80 : i32 to index
    %c0_27 = arith.constant 0 : index
    %82 = vector.load %arg10[%81, %c0_27] : memref<64x512xf32, #tpu.memory_space<vmem>>, vector<8x512xf32>
    %83 = arith.truncf %76 : vector<8x128xf32> to vector<8x128xbf16>
    %c0_28 = arith.constant 0 : index
    %c0_29 = arith.constant 0 : index
    %84 = vector.load %arg2[%c0_28, %c0_29] : memref<128x512xbf16, #tpu.memory_space<vmem>>, vector<128x512xbf16>
    %cst_30 = arith.constant dense<0.000000e+00> : vector<8x512xf32>
    %85 = tpu.matmul %83, %84, %cst_30 {dimension_numbers = #tpu.dot_dimension_numbers<[1], [0], [0], [1], [0, 0, 1, 1], [], []>} : vector<8x128xbf16>, vector<128x512xbf16>, vector<8x512xf32> -> vector<8x512xf32>
    %86 = arith.addf %82, %85 : vector<8x512xf32>
    %87 = vector.extract_strided_slice %86 {offsets = [0, 0], sizes = [8, 128], strides = [1, 1]} : vector<8x512xf32> to vector<8x128xf32>
    %88 = arith.negf %87 : vector<8x128xf32>
    %89 = math.exp %88 : vector<8x128xf32>
    %cst_31 = arith.constant 1.000000e+00 : f32
    %90 = vector.broadcast %cst_31 : f32 to vector<8x128xf32>
    %91 = arith.addf %90, %89 : vector<8x128xf32>
    %92 = arith.divf %90, %91 : vector<8x128xf32>
    %93 = vector.extract_strided_slice %86 {offsets = [0, 128], sizes = [8, 128], strides = [1, 1]} : vector<8x512xf32> to vector<8x128xf32>
    %94 = arith.negf %93 : vector<8x128xf32>
    %95 = math.exp %94 : vector<8x128xf32>
    %cst_32 = arith.constant 1.000000e+00 : f32
    %96 = vector.broadcast %cst_32 : f32 to vector<8x128xf32>
    %97 = arith.addf %96, %95 : vector<8x128xf32>
    %98 = arith.divf %96, %97 : vector<8x128xf32>
    %99 = vector.extract_strided_slice %86 {offsets = [0, 256], sizes = [8, 128], strides = [1, 1]} : vector<8x512xf32> to vector<8x128xf32>
    %100 = math.tanh %99 : vector<8x128xf32>
    %101 = vector.extract_strided_slice %86 {offsets = [0, 384], sizes = [8, 128], strides = [1, 1]} : vector<8x512xf32> to vector<8x128xf32>
    %102 = arith.negf %101 : vector<8x128xf32>
    %103 = math.exp %102 : vector<8x128xf32>
    %cst_33 = arith.constant 1.000000e+00 : f32
    %104 = vector.broadcast %cst_33 : f32 to vector<8x128xf32>
    %105 = arith.addf %104, %103 : vector<8x128xf32>
    %106 = arith.divf %104, %105 : vector<8x128xf32>
    %107 = arith.mulf %98, %74 : vector<8x128xf32>
    %108 = arith.mulf %92, %100 : vector<8x128xf32>
    %109 = arith.addf %107, %108 : vector<8x128xf32>
    %110 = math.tanh %109 : vector<8x128xf32>
    %111 = arith.mulf %106, %110 : vector<8x128xf32>
    %112 = arith.index_cast %80 : i32 to index
    %c0_34 = arith.constant 0 : index
    %113 = vector.load %arg11[%112, %c0_34] : memref<64x128xf32, #tpu.memory_space<vmem>>, vector<8x128xf32>
    tpu.vector_store %arg11[%112, %c0_34], %111 {strides = array<i32>} : memref<64x128xf32, #tpu.memory_space<vmem>>, vector<8x128xf32>,
    %c3_i32 = arith.constant 3 : i32
    %c8_i32_35 = arith.constant 8 : i32
    %114 = arith.muli %c3_i32, %c8_i32_35 : i32
    %115 = tpu.assume_multiple %114, 8 : i32
    %116 = arith.index_cast %115 : i32 to index
    %c0_36 = arith.constant 0 : index
    %117 = vector.load %arg10[%116, %c0_36] : memref<64x512xf32, #tpu.memory_space<vmem>>, vector<8x512xf32>
    %118 = arith.truncf %111 : vector<8x128xf32> to vector<8x128xbf16>
    %c0_37 = arith.constant 0 : index
    %c0_38 = arith.constant 0 : index
    %119 = vector.load %arg2[%c0_37, %c0_38] : memref<128x512xbf16, #tpu.memory_space<vmem>>, vector<128x512xbf16>
    %cst_39 = arith.constant dense<0.000000e+00> : vector<8x512xf32>
    %120 = tpu.matmul %118, %119, %cst_39 {dimension_numbers = #tpu.dot_dimension_numbers<[1], [0], [0], [1], [0, 0, 1, 1], [], []>} : vector<8x128xbf16>, vector<128x512xbf16>, vector<8x512xf32> -> vector<8x512xf32>
    %121 = arith.addf %117, %120 : vector<8x512xf32>
    %122 = vector.extract_strided_slice %121 {offsets = [0, 0], sizes = [8, 128], strides = [1, 1]} : vector<8x512xf32> to vector<8x128xf32>
    %123 = arith.negf %122 : vector<8x128xf32>
    %124 = math.exp %123 : vector<8x128xf32>
    %cst_40 = arith.constant 1.000000e+00 : f32
    %125 = vector.broadcast %cst_40 : f32 to vector<8x128xf32>
    %126 = arith.addf %125, %124 : vector<8x128xf32>
    %127 = arith.divf %125, %126 : vector<8x128xf32>
    %128 = vector.extract_strided_slice %121 {offsets = [0, 128], sizes = [8, 128], strides = [1, 1]} : vector<8x512xf32> to vector<8x128xf32>
    %129 = arith.negf %128 : vector<8x128xf32>
    %130 = math.exp %129 : vector<8x128xf32>
    %cst_41 = arith.constant 1.000000e+00 : f32
    %131 = vector.broadcast %cst_41 : f32 to vector<8x128xf32>
    %132 = arith.addf %131, %130 : vector<8x128xf32>
    %133 = arith.divf %131, %132 : vector<8x128xf32>
    %134 = vector.extract_strided_slice %121 {offsets = [0, 256], sizes = [8, 128], strides = [1, 1]} : vector<8x512xf32> to vector<8x128xf32>
    %135 = math.tanh %134 : vector<8x128xf32>
    %136 = vector.extract_strided_slice %121 {offsets = [0, 384], sizes = [8, 128], strides = [1, 1]} : vector<8x512xf32> to vector<8x128xf32>
    %137 = arith.negf %136 : vector<8x128xf32>
    %138 = math.exp %137 : vector<8x128xf32>
    %cst_42 = arith.constant 1.000000e+00 : f32
    %139 = vector.broadcast %cst_42 : f32 to vector<8x128xf32>
    %140 = arith.addf %139, %138 : vector<8x128xf32>
    %141 = arith.divf %139, %140 : vector<8x128xf32>
    %142 = arith.mulf %133, %109 : vector<8x128xf32>
    %143 = arith.mulf %127, %135 : vector<8x128xf32>
    %144 = arith.addf %142, %143 : vector<8x128xf32>
    %145 = math.tanh %144 : vector<8x128xf32>
    %146 = arith.mulf %141, %145 : vector<8x128xf32>
    %147 = arith.index_cast %115 : i32 to index
    %c0_43 = arith.constant 0 : index
    %148 = vector.load %arg11[%147, %c0_43] : memref<64x128xf32, #tpu.memory_space<vmem>>, vector<8x128xf32>
    tpu.vector_store %arg11[%147, %c0_43], %146 {strides = array<i32>} : memref<64x128xf32, #tpu.memory_space<vmem>>, vector<8x128xf32>,
    %c4_i32 = arith.constant 4 : i32
    %c8_i32_44 = arith.constant 8 : i32
    %149 = arith.muli %c4_i32, %c8_i32_44 : i32
    %150 = tpu.assume_multiple %149, 8 : i32
    %151 = arith.index_cast %150 : i32 to index
    %c0_45 = arith.constant 0 : index
    %152 = vector.load %arg10[%151, %c0_45] : memref<64x512xf32, #tpu.memory_space<vmem>>, vector<8x512xf32>
    %153 = arith.truncf %146 : vector<8x128xf32> to vector<8x128xbf16>
    %c0_46 = arith.constant 0 : index
    %c0_47 = arith.constant 0 : index
    %154 = vector.load %arg2[%c0_46, %c0_47] : memref<128x512xbf16, #tpu.memory_space<vmem>>, vector<128x512xbf16>
    %cst_48 = arith.constant dense<0.000000e+00> : vector<8x512xf32>
    %155 = tpu.matmul %153, %154, %cst_48 {dimension_numbers = #tpu.dot_dimension_numbers<[1], [0], [0], [1], [0, 0, 1, 1], [], []>} : vector<8x128xbf16>, vector<128x512xbf16>, vector<8x512xf32> -> vector<8x512xf32>
    %156 = arith.addf %152, %155 : vector<8x512xf32>
    %157 = vector.extract_strided_slice %156 {offsets = [0, 0], sizes = [8, 128], strides = [1, 1]} : vector<8x512xf32> to vector<8x128xf32>
    %158 = arith.negf %157 : vector<8x128xf32>
    %159 = math.exp %158 : vector<8x128xf32>
    %cst_49 = arith.constant 1.000000e+00 : f32
    %160 = vector.broadcast %cst_49 : f32 to vector<8x128xf32>
    %161 = arith.addf %160, %159 : vector<8x128xf32>
    %162 = arith.divf %160, %161 : vector<8x128xf32>
    %163 = vector.extract_strided_slice %156 {offsets = [0, 128], sizes = [8, 128], strides = [1, 1]} : vector<8x512xf32> to vector<8x128xf32>
    %164 = arith.negf %163 : vector<8x128xf32>
    %165 = math.exp %164 : vector<8x128xf32>
    %cst_50 = arith.constant 1.000000e+00 : f32
    %166 = vector.broadcast %cst_50 : f32 to vector<8x128xf32>
    %167 = arith.addf %166, %165 : vector<8x128xf32>
    %168 = arith.divf %166, %167 : vector<8x128xf32>
    %169 = vector.extract_strided_slice %156 {offsets = [0, 256], sizes = [8, 128], strides = [1, 1]} : vector<8x512xf32> to vector<8x128xf32>
    %170 = math.tanh %169 : vector<8x128xf32>
    %171 = vector.extract_strided_slice %156 {offsets = [0, 384], sizes = [8, 128], strides = [1, 1]} : vector<8x512xf32> to vector<8x128xf32>
    %172 = arith.negf %171 : vector<8x128xf32>
    %173 = math.exp %172 : vector<8x128xf32>
    %cst_51 = arith.constant 1.000000e+00 : f32
    %174 = vector.broadcast %cst_51 : f32 to vector<8x128xf32>
    %175 = arith.addf %174, %173 : vector<8x128xf32>
    %176 = arith.divf %174, %175 : vector<8x128xf32>
    %177 = arith.mulf %168, %144 : vector<8x128xf32>
    %178 = arith.mulf %162, %170 : vector<8x128xf32>
    %179 = arith.addf %177, %178 : vector<8x128xf32>
    %180 = math.tanh %179 : vector<8x128xf32>
    %181 = arith.mulf %176, %180 : vector<8x128xf32>
    %182 = arith.index_cast %150 : i32 to index
    %c0_52 = arith.constant 0 : index
    %183 = vector.load %arg11[%182, %c0_52] : memref<64x128xf32, #tpu.memory_space<vmem>>, vector<8x128xf32>
    tpu.vector_store %arg11[%182, %c0_52], %181 {strides = array<i32>} : memref<64x128xf32, #tpu.memory_space<vmem>>, vector<8x128xf32>,
    %c5_i32 = arith.constant 5 : i32
    %c8_i32_53 = arith.constant 8 : i32
    %184 = arith.muli %c5_i32, %c8_i32_53 : i32
    %185 = tpu.assume_multiple %184, 8 : i32
    %186 = arith.index_cast %185 : i32 to index
    %c0_54 = arith.constant 0 : index
    %187 = vector.load %arg10[%186, %c0_54] : memref<64x512xf32, #tpu.memory_space<vmem>>, vector<8x512xf32>
    %188 = arith.truncf %181 : vector<8x128xf32> to vector<8x128xbf16>
    %c0_55 = arith.constant 0 : index
    %c0_56 = arith.constant 0 : index
    %189 = vector.load %arg2[%c0_55, %c0_56] : memref<128x512xbf16, #tpu.memory_space<vmem>>, vector<128x512xbf16>
    %cst_57 = arith.constant dense<0.000000e+00> : vector<8x512xf32>
    %190 = tpu.matmul %188, %189, %cst_57 {dimension_numbers = #tpu.dot_dimension_numbers<[1], [0], [0], [1], [0, 0, 1, 1], [], []>} : vector<8x128xbf16>, vector<128x512xbf16>, vector<8x512xf32> -> vector<8x512xf32>
    %191 = arith.addf %187, %190 : vector<8x512xf32>
    %192 = vector.extract_strided_slice %191 {offsets = [0, 0], sizes = [8, 128], strides = [1, 1]} : vector<8x512xf32> to vector<8x128xf32>
    %193 = arith.negf %192 : vector<8x128xf32>
    %194 = math.exp %193 : vector<8x128xf32>
    %cst_58 = arith.constant 1.000000e+00 : f32
    %195 = vector.broadcast %cst_58 : f32 to vector<8x128xf32>
    %196 = arith.addf %195, %194 : vector<8x128xf32>
    %197 = arith.divf %195, %196 : vector<8x128xf32>
    %198 = vector.extract_strided_slice %191 {offsets = [0, 128], sizes = [8, 128], strides = [1, 1]} : vector<8x512xf32> to vector<8x128xf32>
    %199 = arith.negf %198 : vector<8x128xf32>
    %200 = math.exp %199 : vector<8x128xf32>
    %cst_59 = arith.constant 1.000000e+00 : f32
    %201 = vector.broadcast %cst_59 : f32 to vector<8x128xf32>
    %202 = arith.addf %201, %200 : vector<8x128xf32>
    %203 = arith.divf %201, %202 : vector<8x128xf32>
    %204 = vector.extract_strided_slice %191 {offsets = [0, 256], sizes = [8, 128], strides = [1, 1]} : vector<8x512xf32> to vector<8x128xf32>
    %205 = math.tanh %204 : vector<8x128xf32>
    %206 = vector.extract_strided_slice %191 {offsets = [0, 384], sizes = [8, 128], strides = [1, 1]} : vector<8x512xf32> to vector<8x128xf32>
    %207 = arith.negf %206 : vector<8x128xf32>
    %208 = math.exp %207 : vector<8x128xf32>
    %cst_60 = arith.constant 1.000000e+00 : f32
    %209 = vector.broadcast %cst_60 : f32 to vector<8x128xf32>
    %210 = arith.addf %209, %208 : vector<8x128xf32>
    %211 = arith.divf %209, %210 : vector<8x128xf32>
    %212 = arith.mulf %203, %179 : vector<8x128xf32>
    %213 = arith.mulf %197, %205 : vector<8x128xf32>
    %214 = arith.addf %212, %213 : vector<8x128xf32>
    %215 = math.tanh %214 : vector<8x128xf32>
    %216 = arith.mulf %211, %215 : vector<8x128xf32>
    %217 = arith.index_cast %185 : i32 to index
    %c0_61 = arith.constant 0 : index
    %218 = vector.load %arg11[%217, %c0_61] : memref<64x128xf32, #tpu.memory_space<vmem>>, vector<8x128xf32>
    tpu.vector_store %arg11[%217, %c0_61], %216 {strides = array<i32>} : memref<64x128xf32, #tpu.memory_space<vmem>>, vector<8x128xf32>,
    %c6_i32 = arith.constant 6 : i32
    %c8_i32_62 = arith.constant 8 : i32
    %219 = arith.muli %c6_i32, %c8_i32_62 : i32
    %220 = tpu.assume_multiple %219, 8 : i32
    %221 = arith.index_cast %220 : i32 to index
    %c0_63 = arith.constant 0 : index
    %222 = vector.load %arg10[%221, %c0_63] : memref<64x512xf32, #tpu.memory_space<vmem>>, vector<8x512xf32>
    %223 = arith.truncf %216 : vector<8x128xf32> to vector<8x128xbf16>
    %c0_64 = arith.constant 0 : index
    %c0_65 = arith.constant 0 : index
    %224 = vector.load %arg2[%c0_64, %c0_65] : memref<128x512xbf16, #tpu.memory_space<vmem>>, vector<128x512xbf16>
    %cst_66 = arith.constant dense<0.000000e+00> : vector<8x512xf32>
    %225 = tpu.matmul %223, %224, %cst_66 {dimension_numbers = #tpu.dot_dimension_numbers<[1], [0], [0], [1], [0, 0, 1, 1], [], []>} : vector<8x128xbf16>, vector<128x512xbf16>, vector<8x512xf32> -> vector<8x512xf32>
    %226 = arith.addf %222, %225 : vector<8x512xf32>
    %227 = vector.extract_strided_slice %226 {offsets = [0, 0], sizes = [8, 128], strides = [1, 1]} : vector<8x512xf32> to vector<8x128xf32>
    %228 = arith.negf %227 : vector<8x128xf32>
    %229 = math.exp %228 : vector<8x128xf32>
    %cst_67 = arith.constant 1.000000e+00 : f32
    %230 = vector.broadcast %cst_67 : f32 to vector<8x128xf32>
    %231 = arith.addf %230, %229 : vector<8x128xf32>
    %232 = arith.divf %230, %231 : vector<8x128xf32>
    %233 = vector.extract_strided_slice %226 {offsets = [0, 128], sizes = [8, 128], strides = [1, 1]} : vector<8x512xf32> to vector<8x128xf32>
    %234 = arith.negf %233 : vector<8x128xf32>
    %235 = math.exp %234 : vector<8x128xf32>
    %cst_68 = arith.constant 1.000000e+00 : f32
    %236 = vector.broadcast %cst_68 : f32 to vector<8x128xf32>
    %237 = arith.addf %236, %235 : vector<8x128xf32>
    %238 = arith.divf %236, %237 : vector<8x128xf32>
    %239 = vector.extract_strided_slice %226 {offsets = [0, 256], sizes = [8, 128], strides = [1, 1]} : vector<8x512xf32> to vector<8x128xf32>
    %240 = math.tanh %239 : vector<8x128xf32>
    %241 = vector.extract_strided_slice %226 {offsets = [0, 384], sizes = [8, 128], strides = [1, 1]} : vector<8x512xf32> to vector<8x128xf32>
    %242 = arith.negf %241 : vector<8x128xf32>
    %243 = math.exp %242 : vector<8x128xf32>
    %cst_69 = arith.constant 1.000000e+00 : f32
    %244 = vector.broadcast %cst_69 : f32 to vector<8x128xf32>
    %245 = arith.addf %244, %243 : vector<8x128xf32>
    %246 = arith.divf %244, %245 : vector<8x128xf32>
    %247 = arith.mulf %238, %214 : vector<8x128xf32>
    %248 = arith.mulf %232, %240 : vector<8x128xf32>
    %249 = arith.addf %247, %248 : vector<8x128xf32>
    %250 = math.tanh %249 : vector<8x128xf32>
    %251 = arith.mulf %246, %250 : vector<8x128xf32>
    %252 = arith.index_cast %220 : i32 to index
    %c0_70 = arith.constant 0 : index
    %253 = vector.load %arg11[%252, %c0_70] : memref<64x128xf32, #tpu.memory_space<vmem>>, vector<8x128xf32>
    tpu.vector_store %arg11[%252, %c0_70], %251 {strides = array<i32>} : memref<64x128xf32, #tpu.memory_space<vmem>>, vector<8x128xf32>,
    %c7_i32 = arith.constant 7 : i32
    %c8_i32_71 = arith.constant 8 : i32
    %254 = arith.muli %c7_i32, %c8_i32_71 : i32
    %255 = tpu.assume_multiple %254, 8 : i32
    %256 = arith.index_cast %255 : i32 to index
    %c0_72 = arith.constant 0 : index
    %257 = vector.load %arg10[%256, %c0_72] : memref<64x512xf32, #tpu.memory_space<vmem>>, vector<8x512xf32>
    %258 = arith.truncf %251 : vector<8x128xf32> to vector<8x128xbf16>
    %c0_73 = arith.constant 0 : index
    %c0_74 = arith.constant 0 : index
    %259 = vector.load %arg2[%c0_73, %c0_74] : memref<128x512xbf16, #tpu.memory_space<vmem>>, vector<128x512xbf16>
    %cst_75 = arith.constant dense<0.000000e+00> : vector<8x512xf32>
    %260 = tpu.matmul %258, %259, %cst_75 {dimension_numbers = #tpu.dot_dimension_numbers<[1], [0], [0], [1], [0, 0, 1, 1], [], []>} : vector<8x128xbf16>, vector<128x512xbf16>, vector<8x512xf32> -> vector<8x512xf32>
    %261 = arith.addf %257, %260 : vector<8x512xf32>
    %262 = vector.extract_strided_slice %261 {offsets = [0, 0], sizes = [8, 128], strides = [1, 1]} : vector<8x512xf32> to vector<8x128xf32>
    %263 = arith.negf %262 : vector<8x128xf32>
    %264 = math.exp %263 : vector<8x128xf32>
    %cst_76 = arith.constant 1.000000e+00 : f32
    %265 = vector.broadcast %cst_76 : f32 to vector<8x128xf32>
    %266 = arith.addf %265, %264 : vector<8x128xf32>
    %267 = arith.divf %265, %266 : vector<8x128xf32>
    %268 = vector.extract_strided_slice %261 {offsets = [0, 128], sizes = [8, 128], strides = [1, 1]} : vector<8x512xf32> to vector<8x128xf32>
    %269 = arith.negf %268 : vector<8x128xf32>
    %270 = math.exp %269 : vector<8x128xf32>
    %cst_77 = arith.constant 1.000000e+00 : f32
    %271 = vector.broadcast %cst_77 : f32 to vector<8x128xf32>
    %272 = arith.addf %271, %270 : vector<8x128xf32>
    %273 = arith.divf %271, %272 : vector<8x128xf32>
    %274 = vector.extract_strided_slice %261 {offsets = [0, 256], sizes = [8, 128], strides = [1, 1]} : vector<8x512xf32> to vector<8x128xf32>
    %275 = math.tanh %274 : vector<8x128xf32>
    %276 = vector.extract_strided_slice %261 {offsets = [0, 384], sizes = [8, 128], strides = [1, 1]} : vector<8x512xf32> to vector<8x128xf32>
    %277 = arith.negf %276 : vector<8x128xf32>
    %278 = math.exp %277 : vector<8x128xf32>
    %cst_78 = arith.constant 1.000000e+00 : f32
    %279 = vector.broadcast %cst_78 : f32 to vector<8x128xf32>
    %280 = arith.addf %279, %278 : vector<8x128xf32>
    %281 = arith.divf %279, %280 : vector<8x128xf32>
    %282 = arith.mulf %273, %249 : vector<8x128xf32>
    %283 = arith.mulf %267, %275 : vector<8x128xf32>
    %284 = arith.addf %282, %283 : vector<8x128xf32>
    %285 = math.tanh %284 : vector<8x128xf32>
    %286 = arith.mulf %281, %285 : vector<8x128xf32>
    %287 = arith.index_cast %255 : i32 to index
    %c0_79 = arith.constant 0 : index
    %288 = vector.load %arg11[%287, %c0_79] : memref<64x128xf32, #tpu.memory_space<vmem>>, vector<8x128xf32>
    tpu.vector_store %arg11[%287, %c0_79], %286 {strides = array<i32>} : memref<64x128xf32, #tpu.memory_space<vmem>>, vector<8x128xf32>,
    %c8_i32_80 = arith.constant 8 : i32
    %c0_81 = arith.constant 0 : index
    %c0_82 = arith.constant 0 : index
    %289 = vector.load %arg11[%c0_81, %c0_82] : memref<64x128xf32, #tpu.memory_space<vmem>>, vector<64x128xf32>
    %290 = arith.truncf %289 : vector<64x128xf32> to vector<64x128xbf16>
    %c0_83 = arith.constant 0 : index
    %c0_84 = arith.constant 0 : index
    %291 = vector.load %arg4[%c0_83, %c0_84] : memref<128x512xbf16, #tpu.memory_space<vmem>>, vector<128x512xbf16>
    %cst_85 = arith.constant dense<0.000000e+00> : vector<64x512xf32>
    %292 = tpu.matmul %290, %291, %cst_85 {dimension_numbers = #tpu.dot_dimension_numbers<[1], [0], [0], [1], [0, 0, 1, 1], [], []>} : vector<64x128xbf16>, vector<128x512xbf16>, vector<64x512xf32> -> vector<64x512xf32>
    %c0_86 = arith.constant 0 : index
    %c0_87 = arith.constant 0 : index
    %293 = vector.load %arg6[%c0_86, %c0_87] : memref<1x512xf32, #tpu.memory_space<vmem>>, vector<1x512xf32>
    %294 = vector.broadcast %293 : vector<1x512xf32> to vector<64x512xf32>
    %295 = arith.addf %292, %294 : vector<64x512xf32>
    %c0_88 = arith.constant 0 : index
    %c0_89 = arith.constant 0 : index
    %296 = vector.load %arg10[%c0_88, %c0_89] : memref<64x512xf32, #tpu.memory_space<vmem>>, vector<64x512xf32>
    tpu.vector_store %arg10[%c0_88, %c0_89], %295 {strides = array<i32>} : memref<64x512xf32, #tpu.memory_space<vmem>>, vector<64x512xf32>,
    %cst_90 = arith.constant 0.000000e+00 : f32
    %297 = vector.broadcast %cst_90 : f32 to vector<8x128xf32>
    %cst_91 = arith.constant 0.000000e+00 : f32
    %298 = vector.broadcast %cst_91 : f32 to vector<8x128xf32>
    %c0_i32_92 = arith.constant 0 : i32
    %c8_i32_93 = arith.constant 8 : i32
    %299 = arith.muli %c0_i32_92, %c8_i32_93 : i32
    %300 = tpu.assume_multiple %299, 8 : i32
    %301 = arith.index_cast %300 : i32 to index
    %c0_94 = arith.constant 0 : index
    %302 = vector.load %arg10[%301, %c0_94] : memref<64x512xf32, #tpu.memory_space<vmem>>, vector<8x512xf32>
    %303 = arith.truncf %297 : vector<8x128xf32> to vector<8x128xbf16>
    %c0_95 = arith.constant 0 : index
    %c0_96 = arith.constant 0 : index
    %304 = vector.load %arg5[%c0_95, %c0_96] : memref<128x512xbf16, #tpu.memory_space<vmem>>, vector<128x512xbf16>
    %cst_97 = arith.constant dense<0.000000e+00> : vector<8x512xf32>
    %305 = tpu.matmul %303, %304, %cst_97 {dimension_numbers = #tpu.dot_dimension_numbers<[1], [0], [0], [1], [0, 0, 1, 1], [], []>} : vector<8x128xbf16>, vector<128x512xbf16>, vector<8x512xf32> -> vector<8x512xf32>
    %306 = arith.addf %302, %305 : vector<8x512xf32>
    %307 = vector.extract_strided_slice %306 {offsets = [0, 0], sizes = [8, 128], strides = [1, 1]} : vector<8x512xf32> to vector<8x128xf32>
    %308 = arith.negf %307 : vector<8x128xf32>
    %309 = math.exp %308 : vector<8x128xf32>
    %cst_98 = arith.constant 1.000000e+00 : f32
    %310 = vector.broadcast %cst_98 : f32 to vector<8x128xf32>
    %311 = arith.addf %310, %309 : vector<8x128xf32>
    %312 = arith.divf %310, %311 : vector<8x128xf32>
    %313 = vector.extract_strided_slice %306 {offsets = [0, 128], sizes = [8, 128], strides = [1, 1]} : vector<8x512xf32> to vector<8x128xf32>
    %314 = arith.negf %313 : vector<8x128xf32>
    %315 = math.exp %314 : vector<8x128xf32>
    %cst_99 = arith.constant 1.000000e+00 : f32
    %316 = vector.broadcast %cst_99 : f32 to vector<8x128xf32>
    %317 = arith.addf %316, %315 : vector<8x128xf32>
    %318 = arith.divf %316, %317 : vector<8x128xf32>
    %319 = vector.extract_strided_slice %306 {offsets = [0, 256], sizes = [8, 128], strides = [1, 1]} : vector<8x512xf32> to vector<8x128xf32>
    %320 = math.tanh %319 : vector<8x128xf32>
    %321 = vector.extract_strided_slice %306 {offsets = [0, 384], sizes = [8, 128], strides = [1, 1]} : vector<8x512xf32> to vector<8x128xf32>
    %322 = arith.negf %321 : vector<8x128xf32>
    %323 = math.exp %322 : vector<8x128xf32>
    %cst_100 = arith.constant 1.000000e+00 : f32
    %324 = vector.broadcast %cst_100 : f32 to vector<8x128xf32>
    %325 = arith.addf %324, %323 : vector<8x128xf32>
    %326 = arith.divf %324, %325 : vector<8x128xf32>
    %327 = arith.mulf %318, %298 : vector<8x128xf32>
    %328 = arith.mulf %312, %320 : vector<8x128xf32>
    %329 = arith.addf %327, %328 : vector<8x128xf32>
    %330 = math.tanh %329 : vector<8x128xf32>
    %331 = arith.mulf %326, %330 : vector<8x128xf32>
    %c1_i32_101 = arith.constant 1 : i32
    %c8_i32_102 = arith.constant 8 : i32
    %332 = arith.muli %c1_i32_101, %c8_i32_102 : i32
    %333 = tpu.assume_multiple %332, 8 : i32
    %334 = arith.index_cast %333 : i32 to index
    %c0_103 = arith.constant 0 : index
    %335 = vector.load %arg10[%334, %c0_103] : memref<64x512xf32, #tpu.memory_space<vmem>>, vector<8x512xf32>
    %336 = arith.truncf %331 : vector<8x128xf32> to vector<8x128xbf16>
    %c0_104 = arith.constant 0 : index
    %c0_105 = arith.constant 0 : index
    %337 = vector.load %arg5[%c0_104, %c0_105] : memref<128x512xbf16, #tpu.memory_space<vmem>>, vector<128x512xbf16>
    %cst_106 = arith.constant dense<0.000000e+00> : vector<8x512xf32>
    %338 = tpu.matmul %336, %337, %cst_106 {dimension_numbers = #tpu.dot_dimension_numbers<[1], [0], [0], [1], [0, 0, 1, 1], [], []>} : vector<8x128xbf16>, vector<128x512xbf16>, vector<8x512xf32> -> vector<8x512xf32>
    %339 = arith.addf %335, %338 : vector<8x512xf32>
    %340 = vector.extract_strided_slice %339 {offsets = [0, 0], sizes = [8, 128], strides = [1, 1]} : vector<8x512xf32> to vector<8x128xf32>
    %341 = arith.negf %340 : vector<8x128xf32>
    %342 = math.exp %341 : vector<8x128xf32>
    %cst_107 = arith.constant 1.000000e+00 : f32
    %343 = vector.broadcast %cst_107 : f32 to vector<8x128xf32>
    %344 = arith.addf %343, %342 : vector<8x128xf32>
    %345 = arith.divf %343, %344 : vector<8x128xf32>
    %346 = vector.extract_strided_slice %339 {offsets = [0, 128], sizes = [8, 128], strides = [1, 1]} : vector<8x512xf32> to vector<8x128xf32>
    %347 = arith.negf %346 : vector<8x128xf32>
    %348 = math.exp %347 : vector<8x128xf32>
    %cst_108 = arith.constant 1.000000e+00 : f32
    %349 = vector.broadcast %cst_108 : f32 to vector<8x128xf32>
    %350 = arith.addf %349, %348 : vector<8x128xf32>
    %351 = arith.divf %349, %350 : vector<8x128xf32>
    %352 = vector.extract_strided_slice %339 {offsets = [0, 256], sizes = [8, 128], strides = [1, 1]} : vector<8x512xf32> to vector<8x128xf32>
    %353 = math.tanh %352 : vector<8x128xf32>
    %354 = vector.extract_strided_slice %339 {offsets = [0, 384], sizes = [8, 128], strides = [1, 1]} : vector<8x512xf32> to vector<8x128xf32>
    %355 = arith.negf %354 : vector<8x128xf32>
    %356 = math.exp %355 : vector<8x128xf32>
    %cst_109 = arith.constant 1.000000e+00 : f32
    %357 = vector.broadcast %cst_109 : f32 to vector<8x128xf32>
    %358 = arith.addf %357, %356 : vector<8x128xf32>
    %359 = arith.divf %357, %358 : vector<8x128xf32>
    %360 = arith.mulf %351, %329 : vector<8x128xf32>
    %361 = arith.mulf %345, %353 : vector<8x128xf32>
    %362 = arith.addf %360, %361 : vector<8x128xf32>
    %363 = math.tanh %362 : vector<8x128xf32>
    %364 = arith.mulf %359, %363 : vector<8x128xf32>
    %c2_i32_110 = arith.constant 2 : i32
    %c8_i32_111 = arith.constant 8 : i32
    %365 = arith.muli %c2_i32_110, %c8_i32_111 : i32
    %366 = tpu.assume_multiple %365, 8 : i32
    %367 = arith.index_cast %366 : i32 to index
    %c0_112 = arith.constant 0 : index
    %368 = vector.load %arg10[%367, %c0_112] : memref<64x512xf32, #tpu.memory_space<vmem>>, vector<8x512xf32>
    %369 = arith.truncf %364 : vector<8x128xf32> to vector<8x128xbf16>
    %c0_113 = arith.constant 0 : index
    %c0_114 = arith.constant 0 : index
    %370 = vector.load %arg5[%c0_113, %c0_114] : memref<128x512xbf16, #tpu.memory_space<vmem>>, vector<128x512xbf16>
    %cst_115 = arith.constant dense<0.000000e+00> : vector<8x512xf32>
    %371 = tpu.matmul %369, %370, %cst_115 {dimension_numbers = #tpu.dot_dimension_numbers<[1], [0], [0], [1], [0, 0, 1, 1], [], []>} : vector<8x128xbf16>, vector<128x512xbf16>, vector<8x512xf32> -> vector<8x512xf32>
    %372 = arith.addf %368, %371 : vector<8x512xf32>
    %373 = vector.extract_strided_slice %372 {offsets = [0, 0], sizes = [8, 128], strides = [1, 1]} : vector<8x512xf32> to vector<8x128xf32>
    %374 = arith.negf %373 : vector<8x128xf32>
    %375 = math.exp %374 : vector<8x128xf32>
    %cst_116 = arith.constant 1.000000e+00 : f32
    %376 = vector.broadcast %cst_116 : f32 to vector<8x128xf32>
    %377 = arith.addf %376, %375 : vector<8x128xf32>
    %378 = arith.divf %376, %377 : vector<8x128xf32>
    %379 = vector.extract_strided_slice %372 {offsets = [0, 128], sizes = [8, 128], strides = [1, 1]} : vector<8x512xf32> to vector<8x128xf32>
    %380 = arith.negf %379 : vector<8x128xf32>
    %381 = math.exp %380 : vector<8x128xf32>
    %cst_117 = arith.constant 1.000000e+00 : f32
    %382 = vector.broadcast %cst_117 : f32 to vector<8x128xf32>
    %383 = arith.addf %382, %381 : vector<8x128xf32>
    %384 = arith.divf %382, %383 : vector<8x128xf32>
    %385 = vector.extract_strided_slice %372 {offsets = [0, 256], sizes = [8, 128], strides = [1, 1]} : vector<8x512xf32> to vector<8x128xf32>
    %386 = math.tanh %385 : vector<8x128xf32>
    %387 = vector.extract_strided_slice %372 {offsets = [0, 384], sizes = [8, 128], strides = [1, 1]} : vector<8x512xf32> to vector<8x128xf32>
    %388 = arith.negf %387 : vector<8x128xf32>
    %389 = math.exp %388 : vector<8x128xf32>
    %cst_118 = arith.constant 1.000000e+00 : f32
    %390 = vector.broadcast %cst_118 : f32 to vector<8x128xf32>
    %391 = arith.addf %390, %389 : vector<8x128xf32>
    %392 = arith.divf %390, %391 : vector<8x128xf32>
    %393 = arith.mulf %384, %362 : vector<8x128xf32>
    %394 = arith.mulf %378, %386 : vector<8x128xf32>
    %395 = arith.addf %393, %394 : vector<8x128xf32>
    %396 = math.tanh %395 : vector<8x128xf32>
    %397 = arith.mulf %392, %396 : vector<8x128xf32>
    %c3_i32_119 = arith.constant 3 : i32
    %c8_i32_120 = arith.constant 8 : i32
    %398 = arith.muli %c3_i32_119, %c8_i32_120 : i32
    %399 = tpu.assume_multiple %398, 8 : i32
    %400 = arith.index_cast %399 : i32 to index
    %c0_121 = arith.constant 0 : index
    %401 = vector.load %arg10[%400, %c0_121] : memref<64x512xf32, #tpu.memory_space<vmem>>, vector<8x512xf32>
    %402 = arith.truncf %397 : vector<8x128xf32> to vector<8x128xbf16>
    %c0_122 = arith.constant 0 : index
    %c0_123 = arith.constant 0 : index
    %403 = vector.load %arg5[%c0_122, %c0_123] : memref<128x512xbf16, #tpu.memory_space<vmem>>, vector<128x512xbf16>
    %cst_124 = arith.constant dense<0.000000e+00> : vector<8x512xf32>
    %404 = tpu.matmul %402, %403, %cst_124 {dimension_numbers = #tpu.dot_dimension_numbers<[1], [0], [0], [1], [0, 0, 1, 1], [], []>} : vector<8x128xbf16>, vector<128x512xbf16>, vector<8x512xf32> -> vector<8x512xf32>
    %405 = arith.addf %401, %404 : vector<8x512xf32>
    %406 = vector.extract_strided_slice %405 {offsets = [0, 0], sizes = [8, 128], strides = [1, 1]} : vector<8x512xf32> to vector<8x128xf32>
    %407 = arith.negf %406 : vector<8x128xf32>
    %408 = math.exp %407 : vector<8x128xf32>
    %cst_125 = arith.constant 1.000000e+00 : f32
    %409 = vector.broadcast %cst_125 : f32 to vector<8x128xf32>
    %410 = arith.addf %409, %408 : vector<8x128xf32>
    %411 = arith.divf %409, %410 : vector<8x128xf32>
    %412 = vector.extract_strided_slice %405 {offsets = [0, 128], sizes = [8, 128], strides = [1, 1]} : vector<8x512xf32> to vector<8x128xf32>
    %413 = arith.negf %412 : vector<8x128xf32>
    %414 = math.exp %413 : vector<8x128xf32>
    %cst_126 = arith.constant 1.000000e+00 : f32
    %415 = vector.broadcast %cst_126 : f32 to vector<8x128xf32>
    %416 = arith.addf %415, %414 : vector<8x128xf32>
    %417 = arith.divf %415, %416 : vector<8x128xf32>
    %418 = vector.extract_strided_slice %405 {offsets = [0, 256], sizes = [8, 128], strides = [1, 1]} : vector<8x512xf32> to vector<8x128xf32>
    %419 = math.tanh %418 : vector<8x128xf32>
    %420 = vector.extract_strided_slice %405 {offsets = [0, 384], sizes = [8, 128], strides = [1, 1]} : vector<8x512xf32> to vector<8x128xf32>
    %421 = arith.negf %420 : vector<8x128xf32>
    %422 = math.exp %421 : vector<8x128xf32>
    %cst_127 = arith.constant 1.000000e+00 : f32
    %423 = vector.broadcast %cst_127 : f32 to vector<8x128xf32>
    %424 = arith.addf %423, %422 : vector<8x128xf32>
    %425 = arith.divf %423, %424 : vector<8x128xf32>
    %426 = arith.mulf %417, %395 : vector<8x128xf32>
    %427 = arith.mulf %411, %419 : vector<8x128xf32>
    %428 = arith.addf %426, %427 : vector<8x128xf32>
    %429 = math.tanh %428 : vector<8x128xf32>
    %430 = arith.mulf %425, %429 : vector<8x128xf32>
    %c4_i32_128 = arith.constant 4 : i32
    %c8_i32_129 = arith.constant 8 : i32
    %431 = arith.muli %c4_i32_128, %c8_i32_129 : i32
    %432 = tpu.assume_multiple %431, 8 : i32
    %433 = arith.index_cast %432 : i32 to index
    %c0_130 = arith.constant 0 : index
    %434 = vector.load %arg10[%433, %c0_130] : memref<64x512xf32, #tpu.memory_space<vmem>>, vector<8x512xf32>
    %435 = arith.truncf %430 : vector<8x128xf32> to vector<8x128xbf16>
    %c0_131 = arith.constant 0 : index
    %c0_132 = arith.constant 0 : index
    %436 = vector.load %arg5[%c0_131, %c0_132] : memref<128x512xbf16, #tpu.memory_space<vmem>>, vector<128x512xbf16>
    %cst_133 = arith.constant dense<0.000000e+00> : vector<8x512xf32>
    %437 = tpu.matmul %435, %436, %cst_133 {dimension_numbers = #tpu.dot_dimension_numbers<[1], [0], [0], [1], [0, 0, 1, 1], [], []>} : vector<8x128xbf16>, vector<128x512xbf16>, vector<8x512xf32> -> vector<8x512xf32>
    %438 = arith.addf %434, %437 : vector<8x512xf32>
    %439 = vector.extract_strided_slice %438 {offsets = [0, 0], sizes = [8, 128], strides = [1, 1]} : vector<8x512xf32> to vector<8x128xf32>
    %440 = arith.negf %439 : vector<8x128xf32>
    %441 = math.exp %440 : vector<8x128xf32>
    %cst_134 = arith.constant 1.000000e+00 : f32
    %442 = vector.broadcast %cst_134 : f32 to vector<8x128xf32>
    %443 = arith.addf %442, %441 : vector<8x128xf32>
    %444 = arith.divf %442, %443 : vector<8x128xf32>
    %445 = vector.extract_strided_slice %438 {offsets = [0, 128], sizes = [8, 128], strides = [1, 1]} : vector<8x512xf32> to vector<8x128xf32>
    %446 = arith.negf %445 : vector<8x128xf32>
    %447 = math.exp %446 : vector<8x128xf32>
    %cst_135 = arith.constant 1.000000e+00 : f32
    %448 = vector.broadcast %cst_135 : f32 to vector<8x128xf32>
    %449 = arith.addf %448, %447 : vector<8x128xf32>
    %450 = arith.divf %448, %449 : vector<8x128xf32>
    %451 = vector.extract_strided_slice %438 {offsets = [0, 256], sizes = [8, 128], strides = [1, 1]} : vector<8x512xf32> to vector<8x128xf32>
    %452 = math.tanh %451 : vector<8x128xf32>
    %453 = vector.extract_strided_slice %438 {offsets = [0, 384], sizes = [8, 128], strides = [1, 1]} : vector<8x512xf32> to vector<8x128xf32>
    %454 = arith.negf %453 : vector<8x128xf32>
    %455 = math.exp %454 : vector<8x128xf32>
    %cst_136 = arith.constant 1.000000e+00 : f32
    %456 = vector.broadcast %cst_136 : f32 to vector<8x128xf32>
    %457 = arith.addf %456, %455 : vector<8x128xf32>
    %458 = arith.divf %456, %457 : vector<8x128xf32>
    %459 = arith.mulf %450, %428 : vector<8x128xf32>
    %460 = arith.mulf %444, %452 : vector<8x128xf32>
    %461 = arith.addf %459, %460 : vector<8x128xf32>
    %462 = math.tanh %461 : vector<8x128xf32>
    %463 = arith.mulf %458, %462 : vector<8x128xf32>
    %c5_i32_137 = arith.constant 5 : i32
    %c8_i32_138 = arith.constant 8 : i32
    %464 = arith.muli %c5_i32_137, %c8_i32_138 : i32
    %465 = tpu.assume_multiple %464, 8 : i32
    %466 = arith.index_cast %465 : i32 to index
    %c0_139 = arith.constant 0 : index
    %467 = vector.load %arg10[%466, %c0_139] : memref<64x512xf32, #tpu.memory_space<vmem>>, vector<8x512xf32>
    %468 = arith.truncf %463 : vector<8x128xf32> to vector<8x128xbf16>
    %c0_140 = arith.constant 0 : index
    %c0_141 = arith.constant 0 : index
    %469 = vector.load %arg5[%c0_140, %c0_141] : memref<128x512xbf16, #tpu.memory_space<vmem>>, vector<128x512xbf16>
    %cst_142 = arith.constant dense<0.000000e+00> : vector<8x512xf32>
    %470 = tpu.matmul %468, %469, %cst_142 {dimension_numbers = #tpu.dot_dimension_numbers<[1], [0], [0], [1], [0, 0, 1, 1], [], []>} : vector<8x128xbf16>, vector<128x512xbf16>, vector<8x512xf32> -> vector<8x512xf32>
    %471 = arith.addf %467, %470 : vector<8x512xf32>
    %472 = vector.extract_strided_slice %471 {offsets = [0, 0], sizes = [8, 128], strides = [1, 1]} : vector<8x512xf32> to vector<8x128xf32>
    %473 = arith.negf %472 : vector<8x128xf32>
    %474 = math.exp %473 : vector<8x128xf32>
    %cst_143 = arith.constant 1.000000e+00 : f32
    %475 = vector.broadcast %cst_143 : f32 to vector<8x128xf32>
    %476 = arith.addf %475, %474 : vector<8x128xf32>
    %477 = arith.divf %475, %476 : vector<8x128xf32>
    %478 = vector.extract_strided_slice %471 {offsets = [0, 128], sizes = [8, 128], strides = [1, 1]} : vector<8x512xf32> to vector<8x128xf32>
    %479 = arith.negf %478 : vector<8x128xf32>
    %480 = math.exp %479 : vector<8x128xf32>
    %cst_144 = arith.constant 1.000000e+00 : f32
    %481 = vector.broadcast %cst_144 : f32 to vector<8x128xf32>
    %482 = arith.addf %481, %480 : vector<8x128xf32>
    %483 = arith.divf %481, %482 : vector<8x128xf32>
    %484 = vector.extract_strided_slice %471 {offsets = [0, 256], sizes = [8, 128], strides = [1, 1]} : vector<8x512xf32> to vector<8x128xf32>
    %485 = math.tanh %484 : vector<8x128xf32>
    %486 = vector.extract_strided_slice %471 {offsets = [0, 384], sizes = [8, 128], strides = [1, 1]} : vector<8x512xf32> to vector<8x128xf32>
    %487 = arith.negf %486 : vector<8x128xf32>
    %488 = math.exp %487 : vector<8x128xf32>
    %cst_145 = arith.constant 1.000000e+00 : f32
    %489 = vector.broadcast %cst_145 : f32 to vector<8x128xf32>
    %490 = arith.addf %489, %488 : vector<8x128xf32>
    %491 = arith.divf %489, %490 : vector<8x128xf32>
    %492 = arith.mulf %483, %461 : vector<8x128xf32>
    %493 = arith.mulf %477, %485 : vector<8x128xf32>
    %494 = arith.addf %492, %493 : vector<8x128xf32>
    %495 = math.tanh %494 : vector<8x128xf32>
    %496 = arith.mulf %491, %495 : vector<8x128xf32>
    %c6_i32_146 = arith.constant 6 : i32
    %c8_i32_147 = arith.constant 8 : i32
    %497 = arith.muli %c6_i32_146, %c8_i32_147 : i32
    %498 = tpu.assume_multiple %497, 8 : i32
    %499 = arith.index_cast %498 : i32 to index
    %c0_148 = arith.constant 0 : index
    %500 = vector.load %arg10[%499, %c0_148] : memref<64x512xf32, #tpu.memory_space<vmem>>, vector<8x512xf32>
    %501 = arith.truncf %496 : vector<8x128xf32> to vector<8x128xbf16>
    %c0_149 = arith.constant 0 : index
    %c0_150 = arith.constant 0 : index
    %502 = vector.load %arg5[%c0_149, %c0_150] : memref<128x512xbf16, #tpu.memory_space<vmem>>, vector<128x512xbf16>
    %cst_151 = arith.constant dense<0.000000e+00> : vector<8x512xf32>
    %503 = tpu.matmul %501, %502, %cst_151 {dimension_numbers = #tpu.dot_dimension_numbers<[1], [0], [0], [1], [0, 0, 1, 1], [], []>} : vector<8x128xbf16>, vector<128x512xbf16>, vector<8x512xf32> -> vector<8x512xf32>
    %504 = arith.addf %500, %503 : vector<8x512xf32>
    %505 = vector.extract_strided_slice %504 {offsets = [0, 0], sizes = [8, 128], strides = [1, 1]} : vector<8x512xf32> to vector<8x128xf32>
    %506 = arith.negf %505 : vector<8x128xf32>
    %507 = math.exp %506 : vector<8x128xf32>
    %cst_152 = arith.constant 1.000000e+00 : f32
    %508 = vector.broadcast %cst_152 : f32 to vector<8x128xf32>
    %509 = arith.addf %508, %507 : vector<8x128xf32>
    %510 = arith.divf %508, %509 : vector<8x128xf32>
    %511 = vector.extract_strided_slice %504 {offsets = [0, 128], sizes = [8, 128], strides = [1, 1]} : vector<8x512xf32> to vector<8x128xf32>
    %512 = arith.negf %511 : vector<8x128xf32>
    %513 = math.exp %512 : vector<8x128xf32>
    %cst_153 = arith.constant 1.000000e+00 : f32
    %514 = vector.broadcast %cst_153 : f32 to vector<8x128xf32>
    %515 = arith.addf %514, %513 : vector<8x128xf32>
    %516 = arith.divf %514, %515 : vector<8x128xf32>
    %517 = vector.extract_strided_slice %504 {offsets = [0, 256], sizes = [8, 128], strides = [1, 1]} : vector<8x512xf32> to vector<8x128xf32>
    %518 = math.tanh %517 : vector<8x128xf32>
    %519 = vector.extract_strided_slice %504 {offsets = [0, 384], sizes = [8, 128], strides = [1, 1]} : vector<8x512xf32> to vector<8x128xf32>
    %520 = arith.negf %519 : vector<8x128xf32>
    %521 = math.exp %520 : vector<8x128xf32>
    %cst_154 = arith.constant 1.000000e+00 : f32
    %522 = vector.broadcast %cst_154 : f32 to vector<8x128xf32>
    %523 = arith.addf %522, %521 : vector<8x128xf32>
    %524 = arith.divf %522, %523 : vector<8x128xf32>
    %525 = arith.mulf %516, %494 : vector<8x128xf32>
    %526 = arith.mulf %510, %518 : vector<8x128xf32>
    %527 = arith.addf %525, %526 : vector<8x128xf32>
    %528 = math.tanh %527 : vector<8x128xf32>
    %529 = arith.mulf %524, %528 : vector<8x128xf32>
    %c7_i32_155 = arith.constant 7 : i32
    %c8_i32_156 = arith.constant 8 : i32
    %530 = arith.muli %c7_i32_155, %c8_i32_156 : i32
    %531 = tpu.assume_multiple %530, 8 : i32
    %532 = arith.index_cast %531 : i32 to index
    %c0_157 = arith.constant 0 : index
    %533 = vector.load %arg10[%532, %c0_157] : memref<64x512xf32, #tpu.memory_space<vmem>>, vector<8x512xf32>
    %534 = arith.truncf %529 : vector<8x128xf32> to vector<8x128xbf16>
    %c0_158 = arith.constant 0 : index
    %c0_159 = arith.constant 0 : index
    %535 = vector.load %arg5[%c0_158, %c0_159] : memref<128x512xbf16, #tpu.memory_space<vmem>>, vector<128x512xbf16>
    %cst_160 = arith.constant dense<0.000000e+00> : vector<8x512xf32>
    %536 = tpu.matmul %534, %535, %cst_160 {dimension_numbers = #tpu.dot_dimension_numbers<[1], [0], [0], [1], [0, 0, 1, 1], [], []>} : vector<8x128xbf16>, vector<128x512xbf16>, vector<8x512xf32> -> vector<8x512xf32>
    %537 = arith.addf %533, %536 : vector<8x512xf32>
    %538 = vector.extract_strided_slice %537 {offsets = [0, 0], sizes = [8, 128], strides = [1, 1]} : vector<8x512xf32> to vector<8x128xf32>
    %539 = arith.negf %538 : vector<8x128xf32>
    %540 = math.exp %539 : vector<8x128xf32>
    %cst_161 = arith.constant 1.000000e+00 : f32
    %541 = vector.broadcast %cst_161 : f32 to vector<8x128xf32>
    %542 = arith.addf %541, %540 : vector<8x128xf32>
    %543 = arith.divf %541, %542 : vector<8x128xf32>
    %544 = vector.extract_strided_slice %537 {offsets = [0, 128], sizes = [8, 128], strides = [1, 1]} : vector<8x512xf32> to vector<8x128xf32>
    %545 = arith.negf %544 : vector<8x128xf32>
    %546 = math.exp %545 : vector<8x128xf32>
    %cst_162 = arith.constant 1.000000e+00 : f32
    %547 = vector.broadcast %cst_162 : f32 to vector<8x128xf32>
    %548 = arith.addf %547, %546 : vector<8x128xf32>
    %549 = arith.divf %547, %548 : vector<8x128xf32>
    %550 = vector.extract_strided_slice %537 {offsets = [0, 256], sizes = [8, 128], strides = [1, 1]} : vector<8x512xf32> to vector<8x128xf32>
    %551 = math.tanh %550 : vector<8x128xf32>
    %552 = vector.extract_strided_slice %537 {offsets = [0, 384], sizes = [8, 128], strides = [1, 1]} : vector<8x512xf32> to vector<8x128xf32>
    %553 = arith.negf %552 : vector<8x128xf32>
    %554 = math.exp %553 : vector<8x128xf32>
    %cst_163 = arith.constant 1.000000e+00 : f32
    %555 = vector.broadcast %cst_163 : f32 to vector<8x128xf32>
    %556 = arith.addf %555, %554 : vector<8x128xf32>
    %557 = arith.divf %555, %556 : vector<8x128xf32>
    %558 = arith.mulf %549, %527 : vector<8x128xf32>
    %559 = arith.mulf %543, %551 : vector<8x128xf32>
    %560 = arith.addf %558, %559 : vector<8x128xf32>
    %561 = math.tanh %560 : vector<8x128xf32>
    %562 = arith.mulf %557, %561 : vector<8x128xf32>
    %c8_i32_164 = arith.constant 8 : i32
    %563 = arith.truncf %562 : vector<8x128xf32> to vector<8x128xbf16>
    %c0_165 = arith.constant 0 : index
    %c0_166 = arith.constant 0 : index
    %564 = vector.load %arg7[%c0_165, %c0_166] : memref<128x3xbf16, #tpu.memory_space<vmem>>, vector<128x3xbf16>
    %cst_167 = arith.constant dense<0.000000e+00> : vector<8x3xf32>
    %565 = tpu.matmul %563, %564, %cst_167 {dimension_numbers = #tpu.dot_dimension_numbers<[1], [0], [0], [1], [0, 0, 1, 1], [], []>} : vector<8x128xbf16>, vector<128x3xbf16>, vector<8x3xf32> -> vector<8x3xf32>
    %c0_168 = arith.constant 0 : index
    %c0_169 = arith.constant 0 : index
    %566 = vector.load %arg8[%c0_168, %c0_169] : memref<1x3xf32, #tpu.memory_space<vmem>>, vector<1x3xf32>
    %567 = vector.broadcast %566 : vector<1x3xf32> to vector<8x3xf32>
    %568 = arith.addf %565, %567 : vector<8x3xf32>
    %c0_170 = arith.constant 0 : index
    %c0_171 = arith.constant 0 : index
    %569 = vector.load %arg9[%c0_170, %c0_171] : memref<8x3xf32, #tpu.memory_space<vmem>>, vector<8x3xf32>
    tpu.vector_store %arg9[%c0_170, %c0_171], %568 {strides = array<i32>} : memref<8x3xf32, #tpu.memory_space<vmem>>, vector<8x3xf32>,
    return
  }
}

</mosaic_0001>

<llo_original>
// kernel: tpu_custom_call.1
$region0: #{tpu_custom_call.1}
  #allocation0 [shape = 'u32[]', space=smem, size = 0x4, offset = 0x4, fixed_abs, tag = 'smem constant byte address 0x4 - core index']
  #allocation1 [shape = 'u32[144,128]{1,0:T(1,128)}', space=vmem, size = 0x12000, scoped, tag = 'internal scratch']
  #allocation2 [shape = 'f32[64,512]{1,0:T(8,128)}', space=vmem, size = 0x20000, scoped, tag = 'scratch operand']
  #allocation3 [shape = 'f32[64,128]{1,0:T(8,128)}', space=vmem, size = 0x8000, scoped, tag = 'scratch operand']
  %s0 = inlined_call_operand.vmem [shape: bf16[64,8], index: 0, kind: input, shape index: {}]
  %s1 = inlined_call_operand.vmem [shape: bf16[8,512], index: 1, kind: input, shape index: {}]
  %s2 = inlined_call_operand.hbm [shape: bf16[128,512], index: 2, kind: input, shape index: {}]
  %s3 = inlined_call_operand.vmem [shape: f32[1,512], index: 3, kind: input, shape index: {}]
  %s4 = inlined_call_operand.hbm [shape: bf16[128,512], index: 4, kind: input, shape index: {}]
  %s5 = inlined_call_operand.hbm [shape: bf16[128,512], index: 5, kind: input, shape index: {}]
  %s6 = inlined_call_operand.vmem [shape: f32[1,512], index: 6, kind: input, shape index: {}]
  %s7 = inlined_call_operand.vmem [shape: bf16[128,3], index: 7, kind: input, shape index: {}]
  %s8 = inlined_call_operand.vmem [shape: f32[1,3], index: 8, kind: input, shape index: {}]
  %s9 = inlined_call_operand.vmem [shape: f32[8,3], index: 9, kind: output, shape index: {}]
  %s10 = sld [smem:[#allocation0]]
  $region58: #{tpu_custom_call.1} parent=0
    _
  %s12 = ssub.s32 1, %s10
  %s13 = scalar_select 0, %s12, %s10
  $region1: #{tpu_custom_call.1} parent=0
    #allocation4 [shape = 'u8[131072]{0}', space=vmem, size = 0x20000, scoped, tag = 'input window, operand 2, single buffered']
    #allocation5 [shape = 's32[1]{0}', space=sflag, size = 0x4, scoped, tag = 'scoped memory for tpu_custom_call.1']
    #allocation6 [shape = 'u8[131072]{0}', space=vmem, size = 0x20000, scoped, tag = 'input window, operand 4, single buffered']
    #allocation7 [shape = 's32[1]{0}', space=sflag, size = 0x4, scoped, tag = 'scoped memory for tpu_custom_call.1']
    #allocation8 [shape = 'u8[131072]{0}', space=vmem, size = 0x20000, scoped, tag = 'input window, operand 5, single buffered']
    %14 = vsyncpa [#allocation5], 0
    %15 = vsyncpa [#allocation7], 0
    // Predicated region
    $region2: #{tpu_custom_call.1} parent=1 // pred_check
      _
    $region3: #{tpu_custom_call.1} parent=1 // pred_check_branch
      %17 = sbr.rel (0) target = $region5
    $region4: #{tpu_custom_call.1} parent=1 // pred_region
      _
    $region5: #{tpu_custom_call.1} parent=1 // pred_fallthru
      _
    // Predicated region
    $region6: #{tpu_custom_call.1} parent=1 // pred_check
      _
    $region7: #{tpu_custom_call.1} parent=1 // pred_check_branch
      %19 = sbr.rel (0) target = $region9
    $region8: #{tpu_custom_call.1} parent=1 // pred_region
      _
    $region9: #{tpu_custom_call.1} parent=1 // pred_fallthru
      _
    // Predicated region
    $region10: #{tpu_custom_call.1} parent=1 // pred_check
      _
    $region11: #{tpu_custom_call.1} parent=1 // pred_check_branch
      %21 = sbr.rel (0) target = $region13
    $region12: #{tpu_custom_call.1} parent=1 // pred_region
      %s23 = ssub.s32 4096, 4096
      %24 = vsyncadd [#allocation5], %s23
      %s25 = sshll.u32 [#allocation4], 4
      %s26 = int_to_ptr.vmem [resolvable:$true] %s25
      %31 = dma.hbm_to_vmem [thread:$0]  %s2, 4096, %s26, [#allocation5], 256, 256, 16
    $region13: #{tpu_custom_call.1} parent=1 // pred_fallthru
      _
    // Predicated region
    $region14: #{tpu_custom_call.1} parent=1 // pred_check
      _
    $region15: #{tpu_custom_call.1} parent=1 // pred_check_branch
      %33 = sbr.rel (0) target = $region17
    $region16: #{tpu_custom_call.1} parent=1 // pred_region
      _
    $region17: #{tpu_custom_call.1} parent=1 // pred_fallthru
      _
    // Predicated region
    $region18: #{tpu_custom_call.1} parent=1 // pred_check
      _
    $region19: #{tpu_custom_call.1} parent=1 // pred_check_branch
      %35 = sbr.rel (0) target = $region21
    $region20: #{tpu_custom_call.1} parent=1 // pred_region
      %s37 = ssub.s32 4096, 4096
      %38 = vsyncadd [#allocation7], %s37
      %s39 = sshll.u32 [#allocation6], 4
      %s40 = int_to_ptr.vmem [resolvable:$true] %s39
      %45 = dma.hbm_to_vmem [thread:$0]  %s4, 4096, %s40, [#allocation7], 256, 256, 16
    $region21: #{tpu_custom_call.1} parent=1 // pred_fallthru
      _
    // Predicated region
    $region22: #{tpu_custom_call.1} parent=1 // pred_check
      _
    $region23: #{tpu_custom_call.1} parent=1 // pred_check_branch
      %47 = sbr.rel (0) target = $region25
    $region24: #{tpu_custom_call.1} parent=1 // pred_region
      %s49 = ssub.s32 4096, 4096
      %50 = vsyncadd [#allocation7], %s49
      %s51 = sshll.u32 [#allocation8], 4
      %s52 = int_to_ptr.vmem [resolvable:$true] %s51
      %57 = dma.hbm_to_vmem [thread:$0]  %s5, 4096, %s52, [#allocation7], 256, 256, 16
    $region25: #{tpu_custom_call.1} parent=1 // pred_fallthru
      _
    // Predicated region
    $region26: #{tpu_custom_call.1} parent=1 // pred_check
      _
    $region27: #{tpu_custom_call.1} parent=1 // pred_check_branch
      %59 = sbr.rel (0) target = $region29
    $region28: #{tpu_custom_call.1} parent=1 // pred_region
      _
    $region29: #{tpu_custom_call.1} parent=1 // pred_fallthru
      _
    // Predicated region
    $region30: #{tpu_custom_call.1} parent=1 // pred_check
      _
    $region31: #{tpu_custom_call.1} parent=1 // pred_check_branch
      %61 = sbr.rel (0) target = $region33
    $region32: #{tpu_custom_call.1} parent=1 // pred_region
      _
    $region33: #{tpu_custom_call.1} parent=1 // pred_fallthru
      _
    // Predicated region
    $region34: #{tpu_custom_call.1} parent=1 // pred_check
      _
    $region35: #{tpu_custom_call.1} parent=1 // pred_check_branch
      %63 = sbr.rel (0) target = $region37
    $region36: #{tpu_custom_call.1} parent=1 // pred_region
      _
    $region37: #{tpu_custom_call.1} parent=1 // pred_fallthru
      _
    // Predicated region
    $region38: #{tpu_custom_call.1} parent=1 // pred_check
      _
    $region39: #{tpu_custom_call.1} parent=1 // pred_check_branch
      %65 = sbr.rel (0) target = $region41
    $region40: #{tpu_custom_call.1} parent=1 // pred_region
      %66 = dma.done [#allocation5], 4096
    $region41: #{tpu_custom_call.1} parent=1 // pred_fallthru
      _
    // Predicated region
    $region42: #{tpu_custom_call.1} parent=1 // pred_check
      _
    $region43: #{tpu_custom_call.1} parent=1 // pred_check_branch
      %68 = sbr.rel (0) target = $region45
    $region44: #{tpu_custom_call.1} parent=1 // pred_region
      %69 = dma.done [#allocation7], 4096
    $region45: #{tpu_custom_call.1} parent=1 // pred_fallthru
      _
    // Predicated region
    $region46: #{tpu_custom_call.1} parent=1 // pred_check
      _
    $region47: #{tpu_custom_call.1} parent=1 // pred_check_branch
      %71 = sbr.rel (0) target = $region49
    $region48: #{tpu_custom_call.1} parent=1 // pred_region
      %72 = dma.done [#allocation7], 4096
    $region49: #{tpu_custom_call.1} parent=1 // pred_fallthru
      _
    %v74 = vld [vmem:[%s0] sm:$0xf]
    %v75 = vld [vmem:[%s0 + $0x4] sm:$0xf]
    %v76 = vld [vmem:[%s0 + $0x8] sm:$0xf]
    %v77 = vld [vmem:[%s0 + $0xc] sm:$0xf]
    %v78 = vld [vmem:[%s0 + $0x10] sm:$0xf]
    %v79 = vld [vmem:[%s0 + $0x14] sm:$0xf]
    %v80 = vld [vmem:[%s0 + $0x18] sm:$0xf]
    %v81 = vld [vmem:[%s0 + $0x1c] sm:$0xf]
    %v82 = vld [vmem:[%s1] sm:$0xff]
    %v83 = vld [vmem:[%s1 + $0x8] sm:$0xff]
    %v84 = vld [vmem:[%s3] sm:$0xf]
    %v86 = vlaneseq
    %v87 = vshrl.u32 %v86, 7
    %v88 = vsub.s32 0, %v87
    %v89 = vrot.slane %v84, %v88
    %v90 = vlaneseq
    %v91 = vshrl.u32 %v90, 7
    %v92 = vsub.s32 1, %v91
    %v93 = vrot.slane %v84, %v92
    %v94 = vlaneseq
    %v95 = vshrl.u32 %v94, 7
    %v96 = vsub.s32 2, %v95
    %v97 = vrot.slane %v84, %v96
    %v98 = vlaneseq
    %v99 = vshrl.u32 %v98, 7
    %v100 = vsub.s32 3, %v99
    %v101 = vrot.slane %v84, %v100
    %v114 = vunpack.c.l.b16 %v74
    %v115 = vunpack.c.l.b16 %v75
    %v116 = vunpack.c.l.b16 %v76
    %v117 = vunpack.c.l.b16 %v77
    %v118 = vunpack.c.l.b16 %v78
    %v119 = vunpack.c.l.b16 %v79
    %v120 = vunpack.c.l.b16 %v80
    %v121 = vunpack.c.l.b16 %v81
    %v122 = vpack.c.b16 %v115, %v114
    %v123 = vpack.c.b16 %v117, %v116
    %v124 = vpack.c.b16 %v119, %v118
    %v125 = vpack.c.b16 %v121, %v120
    %v128 = vunpack.c.l.b16 %v82
    %v129 = vunpack.c.h.b16 %v82
    %v130 = vunpack.c.l.b16 %v83
    %v131 = vunpack.c.h.b16 %v83
    %v132 = vpack.c.b16 %v128, %v128
    %v133 = vpack.c.b16 %v129, %v129
    %v134 = vpack.c.b16 %v130, %v130
    %v135 = vpack.c.b16 %v131, %v131
    %vm136 = vcmask 64512
    %v138 = vsel %vm136, %v122, 0
    %v141 = vsel %vm136, %v123, 0
    %v144 = vsel %vm136, %v124, 0
    %v147 = vsel %vm136, %v125, 0
    %vm149 = vcmask 1043456
    %v151 = vsel %vm149, %v132, 0
    %v154 = vsel %vm149, %v133, 0
    %v157 = vsel %vm149, %v134, 0
    %v160 = vsel %vm149, %v135, 0
    %162 = vmatprep.subr.bf16.mxu0 0
    %163 = vmatpush1.bf16.msra.mxu0 0
    %164 = vmatprep.subr.bf16.mxu0 0
    %165 = vmatpush1.bf16.msra.mxu0 0
    %166 = vmatprep.subr.bf16.mxu0 0
    %167 = vmatpush1.bf16.msra.mxu0 0
    %168 = vmatprep.subr.bf16.mxu0 0
    %169 = vmatpush1.bf16.msra.mxu0 0
    %170 = vmatprep.subr.bf16.mxu0 0
    %171 = vmatpush1.bf16.msra.mxu0 0
    %172 = vmatprep.subr.bf16.mxu0 0
    %173 = vmatpush1.bf16.msra.mxu0 0
    %174 = vmatprep.subr.bf16.mxu0 0
    %175 = vmatpush1.bf16.msra.mxu0 0
    %176 = vmatprep.subr.bf16.mxu0 %v154
    %177 = vmatpush1.bf16.msra.mxu0 %v151
    %178 = vmatprep.subr.bf16.mxu0 0
    %179 = vmatpush2.bf16.msra.mxu0 0
    %180 = vmatprep.subr.bf16.mxu0 0
    %181 = vmatpush2.bf16.msra.mxu0 0
    %182 = vmatprep.subr.bf16.mxu0 0
    %183 = vmatpush2.bf16.msra.mxu0 0
    %184 = vmatprep.subr.bf16.mxu0 0
    %185 = vmatpush2.bf16.msra.mxu0 0
    %186 = vmatprep.subr.bf16.mxu0 0
    %187 = vmatpush2.bf16.msra.mxu0 0
    %188 = vmatprep.subr.bf16.mxu0 0
    %189 = vmatpush2.bf16.msra.mxu0 0
    %190 = vmatprep.subr.bf16.mxu0 0
    %191 = vmatpush2.bf16.msra.mxu0 0
    %192 = vmatprep.subr.bf16.mxu0 0
    %193 = vmatpush2.bf16.msra.mxu0 0
    %194 = vmatprep.mubr.bf16.mxu0 0
    %195 = vmatmul.mubr.bf16.gmra.mxu0 %v138
    %v196 = vpop.f32.mrf.mxu0
    %v197 = vadd.f32 %v89, %v196
    %v198 = vpop.f32.mrf.mxu0
    %v199 = vadd.f32 %v93, %v198
    %v200 = vpop.f32.mrf.mxu0
    %v201 = vadd.f32 %v89, %v200
    %v202 = vpop.f32.mrf.mxu0
    %v203 = vadd.f32 %v93, %v202
    %204 = vmatprep.mubr.bf16.mxu0 0
    %205 = vmatmul.mubr.bf16.gmra.mxu0 %v141
    %v206 = vpop.f32.mrf.mxu0
    %v207 = vadd.f32 %v89, %v206
    %v208 = vpop.f32.mrf.mxu0
    %v209 = vadd.f32 %v93, %v208
    %v210 = vpop.f32.mrf.mxu0
    %v211 = vadd.f32 %v89, %v210
    %v212 = vpop.f32.mrf.mxu0
    %v213 = vadd.f32 %v93, %v212
    %214 = vmatprep.mubr.bf16.mxu0 0
    %215 = vmatmul.mubr.bf16.gmra.mxu0 %v144
    %v216 = vpop.f32.mrf.mxu0
    %v217 = vadd.f32 %v89, %v216
    %v218 = vpop.f32.mrf.mxu0
    %v219 = vadd.f32 %v93, %v218
    %v220 = vpop.f32.mrf.mxu0
    %v221 = vadd.f32 %v89, %v220
    %v222 = vpop.f32.mrf.mxu0
    %v223 = vadd.f32 %v93, %v222
    %224 = vmatprep.mubr.bf16.mxu0 0
    %225 = vmatmul.mubr.bf16.gmra.mxu0 %v147
    %v226 = vpop.f32.mrf.mxu0
    %v227 = vadd.f32 %v89, %v226
    %v228 = vpop.f32.mrf.mxu0
    %v229 = vadd.f32 %v93, %v228
    %v230 = vpop.f32.mrf.mxu0
    %v231 = vadd.f32 %v89, %v230
    %v232 = vpop.f32.mrf.mxu0
    %v233 = vadd.f32 %v93, %v232
    %234 = vdwg.mxu0
    %235 = vmatprep.subr.bf16.mxu0 0
    %236 = vmatpush1.bf16.msra.mxu0 0
    %237 = vmatprep.subr.bf16.mxu0 0
    %238 = vmatpush1.bf16.msra.mxu0 0
    %239 = vmatprep.subr.bf16.mxu0 0
    %240 = vmatpush1.bf16.msra.mxu0 0
    %241 = vmatprep.subr.bf16.mxu0 0
    %242 = vmatpush1.bf16.msra.mxu0 0
    %243 = vmatprep.subr.bf16.mxu0 0
    %244 = vmatpush1.bf16.msra.mxu0 0
    %245 = vmatprep.subr.bf16.mxu0 0
    %246 = vmatpush1.bf16.msra.mxu0 0
    %247 = vmatprep.subr.bf16.mxu0 0
    %248 = vmatpush1.bf16.msra.mxu0 0
    %249 = vmatprep.subr.bf16.mxu0 %v160
    %250 = vmatpush1.bf16.msra.mxu0 %v157
    %251 = vmatprep.subr.bf16.mxu0 0
    %252 = vmatpush2.bf16.msra.mxu0 0
    %253 = vmatprep.subr.bf16.mxu0 0
    %254 = vmatpush2.bf16.msra.mxu0 0
    %255 = vmatprep.subr.bf16.mxu0 0
    %256 = vmatpush2.bf16.msra.mxu0 0
    %257 = vmatprep.subr.bf16.mxu0 0
    %258 = vmatpush2.bf16.msra.mxu0 0
    %259 = vmatprep.subr.bf16.mxu0 0
    %260 = vmatpush2.bf16.msra.mxu0 0
    %261 = vmatprep.subr.bf16.mxu0 0
    %262 = vmatpush2.bf16.msra.mxu0 0
    %263 = vmatprep.subr.bf16.mxu0 0
    %264 = vmatpush2.bf16.msra.mxu0 0
    %265 = vmatprep.subr.bf16.mxu0 0
    %266 = vmatpush2.bf16.msra.mxu0 0
    %267 = vmatprep.mubr.bf16.mxu0 0
    %268 = vmatmul.mubr.bf16.gmra.mxu0 %v138
    %v269 = vpop.f32.mrf.mxu0
    %v270 = vadd.f32 %v97, %v269
    %v271 = vpop.f32.mrf.mxu0
    %v272 = vadd.f32 %v101, %v271
    %v273 = vpop.f32.mrf.mxu0
    %v274 = vadd.f32 %v97, %v273
    %v275 = vpop.f32.mrf.mxu0
    %v276 = vadd.f32 %v101, %v275
    %277 = vmatprep.mubr.bf16.mxu0 0
    %278 = vmatmul.mubr.bf16.gmra.mxu0 %v141
    %v279 = vpop.f32.mrf.mxu0
    %v280 = vadd.f32 %v97, %v279
    %v281 = vpop.f32.mrf.mxu0
    %v282 = vadd.f32 %v101, %v281
    %v283 = vpop.f32.mrf.mxu0
    %v284 = vadd.f32 %v97, %v283
    %v285 = vpop.f32.mrf.mxu0
    %v286 = vadd.f32 %v101, %v285
    %287 = vmatprep.mubr.bf16.mxu0 0
    %288 = vmatmul.mubr.bf16.gmra.mxu0 %v144
    %v289 = vpop.f32.mrf.mxu0
    %v290 = vadd.f32 %v97, %v289
    %v291 = vpop.f32.mrf.mxu0
    %v292 = vadd.f32 %v101, %v291
    %v293 = vpop.f32.mrf.mxu0
    %v294 = vadd.f32 %v97, %v293
    %v295 = vpop.f32.mrf.mxu0
    %v296 = vadd.f32 %v101, %v295
    %297 = vmatprep.mubr.bf16.mxu0 0
    %298 = vmatmul.mubr.bf16.gmra.mxu0 %v147
    %v299 = vpop.f32.mrf.mxu0
    %v300 = vadd.f32 %v97, %v299
    %v301 = vpop.f32.mrf.mxu0
    %v302 = vadd.f32 %v101, %v301
    %v303 = vpop.f32.mrf.mxu0
    %v304 = vadd.f32 %v97, %v303
    %v305 = vpop.f32.mrf.mxu0
    %v306 = vadd.f32 %v101, %v305
    %307 = vdwg.mxu0
    %308 = vst [vmem:[#allocation2] sm:$0xff] %v197
    %309 = vst [vmem:[#allocation2 + $0x8] sm:$0xff] %v199
    %310 = vst [vmem:[#allocation2 + $0x10] sm:$0xff] %v270
    %311 = vst [vmem:[#allocation2 + $0x18] sm:$0xff] %v272
    %312 = vst [vmem:[#allocation2 + $0x20] sm:$0xff] %v201
    %313 = vst [vmem:[#allocation2 + $0x28] sm:$0xff] %v203
    %314 = vst [vmem:[#allocation2 + $0x30] sm:$0xff] %v274
    %315 = vst [vmem:[#allocation2 + $0x38] sm:$0xff] %v276
    %316 = vst [vmem:[#allocation2 + $0x40] sm:$0xff] %v207
    %317 = vst [vmem:[#allocation2 + $0x48] sm:$0xff] %v209
    %318 = vst [vmem:[#allocation2 + $0x50] sm:$0xff] %v280
    %319 = vst [vmem:[#allocation2 + $0x58] sm:$0xff] %v282
    %320 = vst [vmem:[#allocation2 + $0x60] sm:$0xff] %v211
    %321 = vst [vmem:[#allocation2 + $0x68] sm:$0xff] %v213
    %322 = vst [vmem:[#allocation2 + $0x70] sm:$0xff] %v284
    %323 = vst [vmem:[#allocation2 + $0x78] sm:$0xff] %v286
    %324 = vst [vmem:[#allocation2 + $0x80] sm:$0xff] %v217
    %325 = vst [vmem:[#allocation2 + $0x88] sm:$0xff] %v219
    %326 = vst [vmem:[#allocation2 + $0x90] sm:$0xff] %v290
    %327 = vst [vmem:[#allocation2 + $0x98] sm:$0xff] %v292
    %328 = vst [vmem:[#allocation2 + $0xa0] sm:$0xff] %v221
    %329 = vst [vmem:[#allocation2 + $0xa8] sm:$0xff] %v223
    %330 = vst [vmem:[#allocation2 + $0xb0] sm:$0xff] %v294
    %331 = vst [vmem:[#allocation2 + $0xb8] sm:$0xff] %v296
    %332 = vst [vmem:[#allocation2 + $0xc0] sm:$0xff] %v227
    %333 = vst [vmem:[#allocation2 + $0xc8] sm:$0xff] %v229
    %334 = vst [vmem:[#allocation2 + $0xd0] sm:$0xff] %v300
    %335 = vst [vmem:[#allocation2 + $0xd8] sm:$0xff] %v302
    %336 = vst [vmem:[#allocation2 + $0xe0] sm:$0xff] %v231
    %337 = vst [vmem:[#allocation2 + $0xe8] sm:$0xff] %v233
    %338 = vst [vmem:[#allocation2 + $0xf0] sm:$0xff] %v304
    %339 = vst [vmem:[#allocation2 + $0xf8] sm:$0xff] %v306
    %s340 = smul.u32 0, 4
    %s341 = smul.addr %s340, 8
    %s342 = scalar_lea.vmem [#allocation2], %s341
    %v343 = vld [vmem:[%s342] sm:$0xff]
    %v344 = vld [vmem:[%s342 + $0x8] sm:$0xff]
    %v345 = vld [vmem:[%s342 + $0x10] sm:$0xff]
    %v346 = vld [vmem:[%s342 + $0x18] sm:$0xff]
    %v347 = vld [vmem:[#allocation4] sm:$0xff]
    %v348 = vld [vmem:[#allocation4 + $0x8] sm:$0xff]
    %v349 = vld [vmem:[#allocation4 + $0x10] sm:$0xff]
    %v350 = vld [vmem:[#allocation4 + $0x18] sm:$0xff]
    %v351 = vld [vmem:[#allocation4 + $0x20] sm:$0xff]
    %v352 = vld [vmem:[#allocation4 + $0x28] sm:$0xff]
    %v353 = vld [vmem:[#allocation4 + $0x30] sm:$0xff]
    %v354 = vld [vmem:[#allocation4 + $0x38] sm:$0xff]
    %v355 = vld [vmem:[#allocation4 + $0x40] sm:$0xff]
    %v356 = vld [vmem:[#allocation4 + $0x48] sm:$0xff]
    %v357 = vld [vmem:[#allocation4 + $0x50] sm:$0xff]
    %v358 = vld [vmem:[#allocation4 + $0x58] sm:$0xff]
    %v359 = vld [vmem:[#allocation4 + $0x60] sm:$0xff]
    %v360 = vld [vmem:[#allocation4 + $0x68] sm:$0xff]
    %v361 = vld [vmem:[#allocation4 + $0x70] sm:$0xff]
    %v362 = vld [vmem:[#allocation4 + $0x78] sm:$0xff]
    %v363 = vld [vmem:[#allocation4 + $0x80] sm:$0xff]
    %v364 = vld [vmem:[#allocation4 + $0x88] sm:$0xff]
    %v365 = vld [vmem:[#allocation4 + $0x90] sm:$0xff]
    %v366 = vld [vmem:[#allocation4 + $0x98] sm:$0xff]
    %v367 = vld [vmem:[#allocation4 + $0xa0] sm:$0xff]
    %v368 = vld [vmem:[#allocation4 + $0xa8] sm:$0xff]
    %v369 = vld [vmem:[#allocation4 + $0xb0] sm:$0xff]
    %v370 = vld [vmem:[#allocation4 + $0xb8] sm:$0xff]
    %v371 = vld [vmem:[#allocation4 + $0xc0] sm:$0xff]
    %v372 = vld [vmem:[#allocation4 + $0xc8] sm:$0xff]
    %v373 = vld [vmem:[#allocation4 + $0xd0] sm:$0xff]
    %v374 = vld [vmem:[#allocation4 + $0xd8] sm:$0xff]
    %v375 = vld [vmem:[#allocation4 + $0xe0] sm:$0xff]
    %v376 = vld [vmem:[#allocation4 + $0xe8] sm:$0xff]
    %v377 = vld [vmem:[#allocation4 + $0xf0] sm:$0xff]
    %v378 = vld [vmem:[#allocation4 + $0xf8] sm:$0xff]
    %v411 = vunpack.c.l.b16 %v347
    %v412 = vunpack.c.h.b16 %v347
    %v413 = vunpack.c.l.b16 %v348
    %v414 = vunpack.c.h.b16 %v348
    %v415 = vunpack.c.l.b16 %v349
    %v416 = vunpack.c.h.b16 %v349
    %v417 = vunpack.c.l.b16 %v350
    %v418 = vunpack.c.h.b16 %v350
    %v419 = vunpack.c.l.b16 %v351
    %v420 = vunpack.c.h.b16 %v351
    %v421 = vunpack.c.l.b16 %v352
    %v422 = vunpack.c.h.b16 %v352
    %v423 = vunpack.c.l.b16 %v353
    %v424 = vunpack.c.h.b16 %v353
    %v425 = vunpack.c.l.b16 %v354
    %v426 = vunpack.c.h.b16 %v354
    %v427 = vunpack.c.l.b16 %v355
    %v428 = vunpack.c.h.b16 %v355
    %v429 = vunpack.c.l.b16 %v356
    %v430 = vunpack.c.h.b16 %v356
    %v431 = vunpack.c.l.b16 %v357
    %v432 = vunpack.c.h.b16 %v357
    %v433 = vunpack.c.l.b16 %v358
    %v434 = vunpack.c.h.b16 %v358
    %v435 = vunpack.c.l.b16 %v359
    %v436 = vunpack.c.h.b16 %v359
    %v437 = vunpack.c.l.b16 %v360
    %v438 = vunpack.c.h.b16 %v360
    %v439 = vunpack.c.l.b16 %v361
    %v440 = vunpack.c.h.b16 %v361
    %v441 = vunpack.c.l.b16 %v362
    %v442 = vunpack.c.h.b16 %v362
    %v443 = vunpack.c.l.b16 %v363
    %v444 = vunpack.c.h.b16 %v363
    %v445 = vunpack.c.l.b16 %v364
    %v446 = vunpack.c.h.b16 %v364
    %v447 = vunpack.c.l.b16 %v365
    %v448 = vunpack.c.h.b16 %v365
    %v449 = vunpack.c.l.b16 %v366
    %v450 = vunpack.c.h.b16 %v366
    %v451 = vunpack.c.l.b16 %v367
    %v452 = vunpack.c.h.b16 %v367
    %v453 = vunpack.c.l.b16 %v368
    %v454 = vunpack.c.h.b16 %v368
    %v455 = vunpack.c.l.b16 %v369
    %v456 = vunpack.c.h.b16 %v369
    %v457 = vunpack.c.l.b16 %v370
    %v458 = vunpack.c.h.b16 %v370
    %v459 = vunpack.c.l.b16 %v371
    %v460 = vunpack.c.h.b16 %v371
    %v461 = vunpack.c.l.b16 %v372
    %v462 = vunpack.c.h.b16 %v372
    %v463 = vunpack.c.l.b16 %v373
    %v464 = vunpack.c.h.b16 %v373
    %v465 = vunpack.c.l.b16 %v374
    %v466 = vunpack.c.h.b16 %v374
    %v467 = vunpack.c.l.b16 %v375
    %v468 = vunpack.c.h.b16 %v375
    %v469 = vunpack.c.l.b16 %v376
    %v470 = vunpack.c.h.b16 %v376
    %v471 = vunpack.c.l.b16 %v377
    %v472 = vunpack.c.h.b16 %v377
    %v473 = vunpack.c.l.b16 %v378
    %v474 = vunpack.c.h.b16 %v378
    %v475 = vpack.c.b16 %v415, %v411
    %v476 = vpack.c.b16 %v416, %v412
    %v477 = vpack.c.b16 %v417, %v413
    %v478 = vpack.c.b16 %v418, %v414
    %v479 = vpack.c.b16 %v423, %v419
    %v480 = vpack.c.b16 %v424, %v420
    %v481 = vpack.c.b16 %v425, %v421
    %v482 = vpack.c.b16 %v426, %v422
    %v483 = vpack.c.b16 %v431, %v427
    %v484 = vpack.c.b16 %v432, %v428
    %v485 = vpack.c.b16 %v433, %v429
    %v486 = vpack.c.b16 %v434, %v430
    %v487 = vpack.c.b16 %v439, %v435
    %v488 = vpack.c.b16 %v440, %v436
    %v489 = vpack.c.b16 %v441, %v437
    %v490 = vpack.c.b16 %v442, %v438
    %v491 = vpack.c.b16 %v447, %v443
    %v492 = vpack.c.b16 %v448, %v444
    %v493 = vpack.c.b16 %v449, %v445
    %v494 = vpack.c.b16 %v450, %v446
    %v495 = vpack.c.b16 %v455, %v451
    %v496 = vpack.c.b16 %v456, %v452
    %v497 = vpack.c.b16 %v457, %v453
    %v498 = vpack.c.b16 %v458, %v454
    %v499 = vpack.c.b16 %v463, %v459
    %v500 = vpack.c.b16 %v464, %v460
    %v501 = vpack.c.b16 %v465, %v461
    %v502 = vpack.c.b16 %v466, %v462
    %v503 = vpack.c.b16 %v471, %v467
    %v504 = vpack.c.b16 %v472, %v468
    %v505 = vpack.c.b16 %v473, %v469
    %v506 = vpack.c.b16 %v474, %v470
    %539 = vmatprep.subr.bf16.mxu0 %v504
    %540 = vmatpush1.bf16.msra.mxu0 %v503
    %541 = vmatprep.subr.bf16.mxu0 %v500
    %542 = vmatpush1.bf16.msra.mxu0 %v499
    %543 = vmatprep.subr.bf16.mxu0 %v496
    %544 = vmatpush1.bf16.msra.mxu0 %v495
    %545 = vmatprep.subr.bf16.mxu0 %v492
    %546 = vmatpush1.bf16.msra.mxu0 %v491
    %547 = vmatprep.subr.bf16.mxu0 %v488
    %548 = vmatpush1.bf16.msra.mxu0 %v487
    %549 = vmatprep.subr.bf16.mxu0 %v484
    %550 = vmatpush1.bf16.msra.mxu0 %v483
    %551 = vmatprep.subr.bf16.mxu0 %v480
    %552 = vmatpush1.bf16.msra.mxu0 %v479
    %553 = vmatprep.subr.bf16.mxu0 %v476
    %554 = vmatpush1.bf16.msra.mxu0 %v475
    %555 = vmatprep.subr.bf16.mxu0 0
    %556 = vmatpush2.bf16.msra.mxu0 0
    %557 = vmatprep.subr.bf16.mxu0 0
    %558 = vmatpush2.bf16.msra.mxu0 0
    %559 = vmatprep.subr.bf16.mxu0 0
    %560 = vmatpush2.bf16.msra.mxu0 0
    %561 = vmatprep.subr.bf16.mxu0 0
    %562 = vmatpush2.bf16.msra.mxu0 0
    %563 = vmatprep.subr.bf16.mxu0 0
    %564 = vmatpush2.bf16.msra.mxu0 0
    %565 = vmatprep.subr.bf16.mxu0 0
    %566 = vmatpush2.bf16.msra.mxu0 0
    %567 = vmatprep.subr.bf16.mxu0 0
    %568 = vmatpush2.bf16.msra.mxu0 0
    %569 = vmatprep.subr.bf16.mxu0 0
    %570 = vmatpush2.bf16.msra.mxu0 0
    %571 = vmatprep.mubr.bf16.mxu0 0
    %572 = vmatmul.mubr.bf16.gmra.mxu0 0
    %v573 = vpop.f32.mrf.mxu0
    %v574 = vadd.f32 0.0, %v573
    %v575 = vpop.f32.mrf.mxu0
    %v576 = vadd.f32 0.0, %v575
    %v577 = vpop.f32.mrf.mxu0
    %v578 = vpop.f32.mrf.mxu0
    %579 = vdwg.mxu0
    %580 = vmatprep.subr.bf16.mxu0 %v506
    %581 = vmatpush1.bf16.msra.mxu0 %v505
    %582 = vmatprep.subr.bf16.mxu0 %v502
    %583 = vmatpush1.bf16.msra.mxu0 %v501
    %584 = vmatprep.subr.bf16.mxu0 %v498
    %585 = vmatpush1.bf16.msra.mxu0 %v497
    %586 = vmatprep.subr.bf16.mxu0 %v494
    %587 = vmatpush1.bf16.msra.mxu0 %v493
    %588 = vmatprep.subr.bf16.mxu0 %v490
    %589 = vmatpush1.bf16.msra.mxu0 %v489
    %590 = vmatprep.subr.bf16.mxu0 %v486
    %591 = vmatpush1.bf16.msra.mxu0 %v485
    %592 = vmatprep.subr.bf16.mxu0 %v482
    %593 = vmatpush1.bf16.msra.mxu0 %v481
    %594 = vmatprep.subr.bf16.mxu0 %v478
    %595 = vmatpush1.bf16.msra.mxu0 %v477
    %596 = vmatprep.subr.bf16.mxu0 0
    %597 = vmatpush2.bf16.msra.mxu0 0
    %598 = vmatprep.subr.bf16.mxu0 0
    %599 = vmatpush2.bf16.msra.mxu0 0
    %600 = vmatprep.subr.bf16.mxu0 0
    %601 = vmatpush2.bf16.msra.mxu0 0
    %602 = vmatprep.subr.bf16.mxu0 0
    %603 = vmatpush2.bf16.msra.mxu0 0
    %604 = vmatprep.subr.bf16.mxu0 0
    %605 = vmatpush2.bf16.msra.mxu0 0
    %606 = vmatprep.subr.bf16.mxu0 0
    %607 = vmatpush2.bf16.msra.mxu0 0
    %608 = vmatprep.subr.bf16.mxu0 0
    %609 = vmatpush2.bf16.msra.mxu0 0
    %610 = vmatprep.subr.bf16.mxu0 0
    %611 = vmatpush2.bf16.msra.mxu0 0
    %612 = vmatprep.mubr.bf16.mxu0 0
    %613 = vmatmul.mubr.bf16.gmra.mxu0 0
    %v614 = vpop.f32.mrf.mxu0
    %v615 = vadd.f32 0.0, %v614
    %v616 = vpop.f32.mrf.mxu0
    %v617 = vadd.f32 0.0, %v616
    %v618 = vpop.f32.mrf.mxu0
    %v619 = vpop.f32.mrf.mxu0
    %620 = vdwg.mxu0
    %v621 = vadd.f32 %v343, %v574
    %v622 = vadd.f32 %v344, %v576
    %v623 = vadd.f32 %v345, %v615
    %v624 = vadd.f32 %v346, %v617
    %v625 = vxor.u32 %v621, 2147483648
    %v626 = vmul.f32 %v625, 1.442695
    %v627 = vpow.pop %v626
    %v628 = vadd.f32 %v627, 1.0
    %v629 = vrcp.pop %v628
    %v630 = vmul.f32 1.0, %v629
    %v631 = vxor.u32 %v622, 2147483648
    %v632 = vmul.f32 %v631, 1.442695
    %v633 = vpow.pop %v632
    %v634 = vadd.f32 %v633, 1.0
    %v635 = vrcp.pop %v634
    %v636 = vmul.f32 1.0, %v635
    %v637 = vtanh.pop %v623
    %v638 = vxor.u32 %v624, 2147483648
    %v639 = vmul.f32 %v638, 1.442695
    %v640 = vpow.pop %v639
    %v641 = vadd.f32 %v640, 1.0
    %v642 = vrcp.pop %v641
    %v643 = vmul.f32 1.0, %v642
    %v644 = vmul.f32 %v636, 0.0
    %v645 = vmul.f32 %v630, %v637
    %v646 = vadd.f32 %v644, %v645
    %v647 = vtanh.pop %v646
    %v648 = vmul.f32 %v643, %v647
    %649 = vst [vmem:[#allocation3] sm:$0xff] %v648
    %s650 = smul.u32 1, 4
    %s651 = smul.addr %s650, 8
    %s652 = scalar_lea.vmem [#allocation2], %s651
    %v653 = vld [vmem:[%s652] sm:$0xff]
    %v654 = vld [vmem:[%s652 + $0x8] sm:$0xff]
    %v655 = vld [vmem:[%s652 + $0x10] sm:$0xff]
    %v656 = vld [vmem:[%s652 + $0x18] sm:$0xff]
    %v657 = vpack.c.bf16 %v648, %v648
    %v658 = vld [vmem:[#allocation4] sm:$0xff]
    %v659 = vld [vmem:[#allocation4 + $0x8] sm:$0xff]
    %v660 = vld [vmem:[#allocation4 + $0x10] sm:$0xff]
    %v661 = vld [vmem:[#allocation4 + $0x18] sm:$0xff]
    %v662 = vld [vmem:[#allocation4 + $0x20] sm:$0xff]
    %v663 = vld [vmem:[#allocation4 + $0x28] sm:$0xff]
    %v664 = vld [vmem:[#allocation4 + $0x30] sm:$0xff]
    %v665 = vld [vmem:[#allocation4 + $0x38] sm:$0xff]
    %v666 = vld [vmem:[#allocation4 + $0x40] sm:$0xff]
    %v667 = vld [vmem:[#allocation4 + $0x48] sm:$0xff]
    %v668 = vld [vmem:[#allocation4 + $0x50] sm:$0xff]
    %v669 = vld [vmem:[#allocation4 + $0x58] sm:$0xff]
    %v670 = vld [vmem:[#allocation4 + $0x60] sm:$0xff]
    %v671 = vld [vmem:[#allocation4 + $0x68] sm:$0xff]
    %v672 = vld [vmem:[#allocation4 + $0x70] sm:$0xff]
    %v673 = vld [vmem:[#allocation4 + $0x78] sm:$0xff]
    %v674 = vld [vmem:[#allocation4 + $0x80] sm:$0xff]
    %v675 = vld [vmem:[#allocation4 + $0x88] sm:$0xff]
    %v676 = vld [vmem:[#allocation4 + $0x90] sm:$0xff]
    %v677 = vld [vmem:[#allocation4 + $0x98] sm:$0xff]
    %v678 = vld [vmem:[#allocation4 + $0xa0] sm:$0xff]
    %v679 = vld [vmem:[#allocation4 + $0xa8] sm:$0xff]
    %v680 = vld [vmem:[#allocation4 + $0xb0] sm:$0xff]
    %v681 = vld [vmem:[#allocation4 + $0xb8] sm:$0xff]
    %v682 = vld [vmem:[#allocation4 + $0xc0] sm:$0xff]
    %v683 = vld [vmem:[#allocation4 + $0xc8] sm:$0xff]
    %v684 = vld [vmem:[#allocation4 + $0xd0] sm:$0xff]
    %v685 = vld [vmem:[#allocation4 + $0xd8] sm:$0xff]
    %v686 = vld [vmem:[#allocation4 + $0xe0] sm:$0xff]
    %v687 = vld [vmem:[#allocation4 + $0xe8] sm:$0xff]
    %v688 = vld [vmem:[#allocation4 + $0xf0] sm:$0xff]
    %v689 = vld [vmem:[#allocation4 + $0xf8] sm:$0xff]
    %v722 = vunpack.c.l.b16 %v658
    %v723 = vunpack.c.h.b16 %v658
    %v724 = vunpack.c.l.b16 %v659
    %v725 = vunpack.c.h.b16 %v659
    %v726 = vunpack.c.l.b16 %v660
    %v727 = vunpack.c.h.b16 %v660
    %v728 = vunpack.c.l.b16 %v661
    %v729 = vunpack.c.h.b16 %v661
    %v730 = vunpack.c.l.b16 %v662
    %v731 = vunpack.c.h.b16 %v662
    %v732 = vunpack.c.l.b16 %v663
    %v733 = vunpack.c.h.b16 %v663
    %v734 = vunpack.c.l.b16 %v664
    %v735 = vunpack.c.h.b16 %v664
    %v736 = vunpack.c.l.b16 %v665
    %v737 = vunpack.c.h.b16 %v665
    %v738 = vunpack.c.l.b16 %v666
    %v739 = vunpack.c.h.b16 %v666
    %v740 = vunpack.c.l.b16 %v667
    %v741 = vunpack.c.h.b16 %v667
    %v742 = vunpack.c.l.b16 %v668
    %v743 = vunpack.c.h.b16 %v668
    %v744 = vunpack.c.l.b16 %v669
    %v745 = vunpack.c.h.b16 %v669
    %v746 = vunpack.c.l.b16 %v670
    %v747 = vunpack.c.h.b16 %v670
    %v748 = vunpack.c.l.b16 %v671
    %v749 = vunpack.c.h.b16 %v671
    %v750 = vunpack.c.l.b16 %v672
    %v751 = vunpack.c.h.b16 %v672
    %v752 = vunpack.c.l.b16 %v673
    %v753 = vunpack.c.h.b16 %v673
    %v754 = vunpack.c.l.b16 %v674
    %v755 = vunpack.c.h.b16 %v674
    %v756 = vunpack.c.l.b16 %v675
    %v757 = vunpack.c.h.b16 %v675
    %v758 = vunpack.c.l.b16 %v676
    %v759 = vunpack.c.h.b16 %v676
    %v760 = vunpack.c.l.b16 %v677
    %v761 = vunpack.c.h.b16 %v677
    %v762 = vunpack.c.l.b16 %v678
    %v763 = vunpack.c.h.b16 %v678
    %v764 = vunpack.c.l.b16 %v679
    %v765 = vunpack.c.h.b16 %v679
    %v766 = vunpack.c.l.b16 %v680
    %v767 = vunpack.c.h.b16 %v680
    %v768 = vunpack.c.l.b16 %v681
    %v769 = vunpack.c.h.b16 %v681
    %v770 = vunpack.c.l.b16 %v682
    %v771 = vunpack.c.h.b16 %v682
    %v772 = vunpack.c.l.b16 %v683
    %v773 = vunpack.c.h.b16 %v683
    %v774 = vunpack.c.l.b16 %v684
    %v775 = vunpack.c.h.b16 %v684
    %v776 = vunpack.c.l.b16 %v685
    %v777 = vunpack.c.h.b16 %v685
    %v778 = vunpack.c.l.b16 %v686
    %v779 = vunpack.c.h.b16 %v686
    %v780 = vunpack.c.l.b16 %v687
    %v781 = vunpack.c.h.b16 %v687
    %v782 = vunpack.c.l.b16 %v688
    %v783 = vunpack.c.h.b16 %v688
    %v784 = vunpack.c.l.b16 %v689
    %v785 = vunpack.c.h.b16 %v689
    %v786 = vpack.c.b16 %v726, %v722
    %v787 = vpack.c.b16 %v727, %v723
    %v788 = vpack.c.b16 %v728, %v724
    %v789 = vpack.c.b16 %v729, %v725
    %v790 = vpack.c.b16 %v734, %v730
    %v791 = vpack.c.b16 %v735, %v731
    %v792 = vpack.c.b16 %v736, %v732
    %v793 = vpack.c.b16 %v737, %v733
    %v794 = vpack.c.b16 %v742, %v738
    %v795 = vpack.c.b16 %v743, %v739
    %v796 = vpack.c.b16 %v744, %v740
    %v797 = vpack.c.b16 %v745, %v741
    %v798 = vpack.c.b16 %v750, %v746
    %v799 = vpack.c.b16 %v751, %v747
    %v800 = vpack.c.b16 %v752, %v748
    %v801 = vpack.c.b16 %v753, %v749
    %v802 = vpack.c.b16 %v758, %v754
    %v803 = vpack.c.b16 %v759, %v755
    %v804 = vpack.c.b16 %v760, %v756
    %v805 = vpack.c.b16 %v761, %v757
    %v806 = vpack.c.b16 %v766, %v762
    %v807 = vpack.c.b16 %v767, %v763
    %v808 = vpack.c.b16 %v768, %v764
    %v809 = vpack.c.b16 %v769, %v765
    %v810 = vpack.c.b16 %v774, %v770
    %v811 = vpack.c.b16 %v775, %v771
    %v812 = vpack.c.b16 %v776, %v772
    %v813 = vpack.c.b16 %v777, %v773
    %v814 = vpack.c.b16 %v782, %v778
    %v815 = vpack.c.b16 %v783, %v779
    %v816 = vpack.c.b16 %v784, %v780
    %v817 = vpack.c.b16 %v785, %v781
    %850 = vmatprep.subr.bf16.mxu0 %v815
    %851 = vmatpush1.bf16.msra.mxu0 %v814
    %852 = vmatprep.subr.bf16.mxu0 %v811
    %853 = vmatpush1.bf16.msra.mxu0 %v810
    %854 = vmatprep.subr.bf16.mxu0 %v807
    %855 = vmatpush1.bf16.msra.mxu0 %v806
    %856 = vmatprep.subr.bf16.mxu0 %v803
    %857 = vmatpush1.bf16.msra.mxu0 %v802
    %858 = vmatprep.subr.bf16.mxu0 %v799
    %859 = vmatpush1.bf16.msra.mxu0 %v798
    %860 = vmatprep.subr.bf16.mxu0 %v795
    %861 = vmatpush1.bf16.msra.mxu0 %v794
    %862 = vmatprep.subr.bf16.mxu0 %v791
    %863 = vmatpush1.bf16.msra.mxu0 %v790
    %864 = vmatprep.subr.bf16.mxu0 %v787
    %865 = vmatpush1.bf16.msra.mxu0 %v786
    %866 = vmatprep.subr.bf16.mxu0 0
    %867 = vmatpush2.bf16.msra.mxu0 0
    %868 = vmatprep.subr.bf16.mxu0 0
    %869 = vmatpush2.bf16.msra.mxu0 0
    %870 = vmatprep.subr.bf16.mxu0 0
    %871 = vmatpush2.bf16.msra.mxu0 0
    %872 = vmatprep.subr.bf16.mxu0 0
    %873 = vmatpush2.bf16.msra.mxu0 0
    %874 = vmatprep.subr.bf16.mxu0 0
    %875 = vmatpush2.bf16.msra.mxu0 0
    %876 = vmatprep.subr.bf16.mxu0 0
    %877 = vmatpush2.bf16.msra.mxu0 0
    %878 = vmatprep.subr.bf16.mxu0 0
    %879 = vmatpush2.bf16.msra.mxu0 0
    %880 = vmatprep.subr.bf16.mxu0 0
    %881 = vmatpush2.bf16.msra.mxu0 0
    %882 = vmatprep.mubr.bf16.mxu0 0
    %883 = vmatmul.mubr.bf16.gmra.mxu0 %v657
    %v884 = vpop.f32.mrf.mxu0
    %v885 = vadd.f32 0.0, %v884
    %v886 = vpop.f32.mrf.mxu0
    %v887 = vadd.f32 0.0, %v886
    %v888 = vpop.f32.mrf.mxu0
    %v889 = vpop.f32.mrf.mxu0
    %890 = vdwg.mxu0
    %891 = vmatprep.subr.bf16.mxu0 %v817
    %892 = vmatpush1.bf16.msra.mxu0 %v816
    %893 = vmatprep.subr.bf16.mxu0 %v813
    %894 = vmatpush1.bf16.msra.mxu0 %v812
    %895 = vmatprep.subr.bf16.mxu0 %v809
    %896 = vmatpush1.bf16.msra.mxu0 %v808
    %897 = vmatprep.subr.bf16.mxu0 %v805
    %898 = vmatpush1.bf16.msra.mxu0 %v804
    %899 = vmatprep.subr.bf16.mxu0 %v801
    %900 = vmatpush1.bf16.msra.mxu0 %v800
    %901 = vmatprep.subr.bf16.mxu0 %v797
    %902 = vmatpush1.bf16.msra.mxu0 %v796
    %903 = vmatprep.subr.bf16.mxu0 %v793
    %904 = vmatpush1.bf16.msra.mxu0 %v792
    %905 = vmatprep.subr.bf16.mxu0 %v789
    %906 = vmatpush1.bf16.msra.mxu0 %v788
    %907 = vmatprep.subr.bf16.mxu0 0
    %908 = vmatpush2.bf16.msra.mxu0 0
    %909 = vmatprep.subr.bf16.mxu0 0
    %910 = vmatpush2.bf16.msra.mxu0 0
    %911 = vmatprep.subr.bf16.mxu0 0
    %912 = vmatpush2.bf16.msra.mxu0 0
    %913 = vmatprep.subr.bf16.mxu0 0
    %914 = vmatpush2.bf16.msra.mxu0 0
    %915 = vmatprep.subr.bf16.mxu0 0
    %916 = vmatpush2.bf16.msra.mxu0 0
    %917 = vmatprep.subr.bf16.mxu0 0
    %918 = vmatpush2.bf16.msra.mxu0 0
    %919 = vmatprep.subr.bf16.mxu0 0
    %920 = vmatpush2.bf16.msra.mxu0 0
    %921 = vmatprep.subr.bf16.mxu0 0
    %922 = vmatpush2.bf16.msra.mxu0 0
    %923 = vmatprep.mubr.bf16.mxu0 0
    %924 = vmatmul.mubr.bf16.gmra.mxu0 %v657
    %v925 = vpop.f32.mrf.mxu0
    %v926 = vadd.f32 0.0, %v925
    %v927 = vpop.f32.mrf.mxu0
    %v928 = vadd.f32 0.0, %v927
    %v929 = vpop.f32.mrf.mxu0
    %v930 = vpop.f32.mrf.mxu0
    %931 = vdwg.mxu0
    %v932 = vadd.f32 %v653, %v885
    %v933 = vadd.f32 %v654, %v887
    %v934 = vadd.f32 %v655, %v926
    %v935 = vadd.f32 %v656, %v928
    %v936 = vxor.u32 %v932, 2147483648
    %v937 = vmul.f32 %v936, 1.442695
    %v938 = vpow.pop %v937
    %v939 = vadd.f32 %v938, 1.0
    %v940 = vrcp.pop %v939
    %v941 = vmul.f32 1.0, %v940
    %v942 = vxor.u32 %v933, 2147483648
    %v943 = vmul.f32 %v942, 1.442695
    %v944 = vpow.pop %v943
    %v945 = vadd.f32 %v944, 1.0
    %v946 = vrcp.pop %v945
    %v947 = vmul.f32 1.0, %v946
    %v948 = vtanh.pop %v934
    %v949 = vxor.u32 %v935, 2147483648
    %v950 = vmul.f32 %v949, 1.442695
    %v951 = vpow.pop %v950
    %v952 = vadd.f32 %v951, 1.0
    %v953 = vrcp.pop %v952
    %v954 = vmul.f32 1.0, %v953
    %v955 = vmul.f32 %v947, %v646
    %v956 = vmul.f32 %v941, %v948
    %v957 = vadd.f32 %v955, %v956
    %v958 = vtanh.pop %v957
    %v959 = vmul.f32 %v954, %v958
    %s960 = scalar_lea.vmem [#allocation3], 8
    %961 = vst [vmem:[%s960] sm:$0xff] %v959
    %s962 = smul.u32 2, 4
    %s963 = smul.addr %s962, 8
    %s964 = scalar_lea.vmem [#allocation2], %s963
    %v965 = vld [vmem:[%s964] sm:$0xff]
    %v966 = vld [vmem:[%s964 + $0x8] sm:$0xff]
    %v967 = vld [vmem:[%s964 + $0x10] sm:$0xff]
    %v968 = vld [vmem:[%s964 + $0x18] sm:$0xff]
    %v969 = vpack.c.bf16 %v959, %v959
    %v970 = vld [vmem:[#allocation4] sm:$0xff]
    %v971 = vld [vmem:[#allocation4 + $0x8] sm:$0xff]
    %v972 = vld [vmem:[#allocation4 + $0x10] sm:$0xff]
    %v973 = vld [vmem:[#allocation4 + $0x18] sm:$0xff]
    %v974 = vld [vmem:[#allocation4 + $0x20] sm:$0xff]
    %v975 = vld [vmem:[#allocation4 + $0x28] sm:$0xff]
    %v976 = vld [vmem:[#allocation4 + $0x30] sm:$0xff]
    %v977 = vld [vmem:[#allocation4 + $0x38] sm:$0xff]
    %v978 = vld [vmem:[#allocation4 + $0x40] sm:$0xff]
    %v979 = vld [vmem:[#allocation4 + $0x48] sm:$0xff]
    %v980 = vld [vmem:[#allocation4 + $0x50] sm:$0xff]
    %v981 = vld [vmem:[#allocation4 + $0x58] sm:$0xff]
    %v982 = vld [vmem:[#allocation4 + $0x60] sm:$0xff]
    %v983 = vld [vmem:[#allocation4 + $0x68] sm:$0xff]
    %v984 = vld [vmem:[#allocation4 + $0x70] sm:$0xff]
    %v985 = vld [vmem:[#allocation4 + $0x78] sm:$0xff]
    %v986 = vld [vmem:[#allocation4 + $0x80] sm:$0xff]
    %v987 = vld [vmem:[#allocation4 + $0x88] sm:$0xff]
    %v988 = vld [vmem:[#allocation4 + $0x90] sm:$0xff]
    %v989 = vld [vmem:[#allocation4 + $0x98] sm:$0xff]
    %v990 = vld [vmem:[#allocation4 + $0xa0] sm:$0xff]
    %v991 = vld [vmem:[#allocation4 + $0xa8] sm:$0xff]
    %v992 = vld [vmem:[#allocation4 + $0xb0] sm:$0xff]
    %v993 = vld [vmem:[#allocation4 + $0xb8] sm:$0xff]
    %v994 = vld [vmem:[#allocation4 + $0xc0] sm:$0xff]
    %v995 = vld [vmem:[#allocation4 + $0xc8] sm:$0xff]
    %v996 = vld [vmem:[#allocation4 + $0xd0] sm:$0xff]
    %v997 = vld [vmem:[#allocation4 + $0xd8] sm:$0xff]
    %v998 = vld [vmem:[#allocation4 + $0xe0] sm:$0xff]
    %v999 = vld [vmem:[#allocation4 + $0xe8] sm:$0xff]
    %v1000 = vld [vmem:[#allocation4 + $0xf0] sm:$0xff]
    %v1001 = vld [vmem:[#allocation4 + $0xf8] sm:$0xff]
    %v1034 = vunpack.c.l.b16 %v970
    %v1035 = vunpack.c.h.b16 %v970
    %v1036 = vunpack.c.l.b16 %v971
    %v1037 = vunpack.c.h.b16 %v971
    %v1038 = vunpack.c.l.b16 %v972
    %v1039 = vunpack.c.h.b16 %v972
    %v1040 = vunpack.c.l.b16 %v973
    %v1041 = vunpack.c.h.b16 %v973
    %v1042 = vunpack.c.l.b16 %v974
    %v1043 = vunpack.c.h.b16 %v974
    %v1044 = vunpack.c.l.b16 %v975
    %v1045 = vunpack.c.h.b16 %v975
    %v1046 = vunpack.c.l.b16 %v976
    %v1047 = vunpack.c.h.b16 %v976
    %v1048 = vunpack.c.l.b16 %v977
    %v1049 = vunpack.c.h.b16 %v977
    %v1050 = vunpack.c.l.b16 %v978
    %v1051 = vunpack.c.h.b16 %v978
    %v1052 = vunpack.c.l.b16 %v979
    %v1053 = vunpack.c.h.b16 %v979
    %v1054 = vunpack.c.l.b16 %v980
    %v1055 = vunpack.c.h.b16 %v980
    %v1056 = vunpack.c.l.b16 %v981
    %v1057 = vunpack.c.h.b16 %v981
    %v1058 = vunpack.c.l.b16 %v982
    %v1059 = vunpack.c.h.b16 %v982
    %v1060 = vunpack.c.l.b16 %v983
    %v1061 = vunpack.c.h.b16 %v983
    %v1062 = vunpack.c.l.b16 %v984
    %v1063 = vunpack.c.h.b16 %v984
    %v1064 = vunpack.c.l.b16 %v985
    %v1065 = vunpack.c.h.b16 %v985
    %v1066 = vunpack.c.l.b16 %v986
    %v1067 = vunpack.c.h.b16 %v986
    %v1068 = vunpack.c.l.b16 %v987
    %v1069 = vunpack.c.h.b16 %v987
    %v1070 = vunpack.c.l.b16 %v988
    %v1071 = vunpack.c.h.b16 %v988
    %v1072 = vunpack.c.l.b16 %v989
    %v1073 = vunpack.c.h.b16 %v989
    %v1074 = vunpack.c.l.b16 %v990
    %v1075 = vunpack.c.h.b16 %v990
    %v1076 = vunpack.c.l.b16 %v991
    %v1077 = vunpack.c.h.b16 %v991
    %v1078 = vunpack.c.l.b16 %v992
    %v1079 = vunpack.c.h.b16 %v992
    %v1080 = vunpack.c.l.b16 %v993
    %v1081 = vunpack.c.h.b16 %v993
    %v1082 = vunpack.c.l.b16 %v994
    %v1083 = vunpack.c.h.b16 %v994
    %v1084 = vunpack.c.l.b16 %v995
    %v1085 = vunpack.c.h.b16 %v995
    %v1086 = vunpack.c.l.b16 %v996
    %v1087 = vunpack.c.h.b16 %v996
    %v1088 = vunpack.c.l.b16 %v997
    %v1089 = vunpack.c.h.b16 %v997
    %v1090 = vunpack.c.l.b16 %v998
    %v1091 = vunpack.c.h.b16 %v998
    %v1092 = vunpack.c.l.b16 %v999
    %v1093 = vunpack.c.h.b16 %v999
    %v1094 = vunpack.c.l.b16 %v1000
    %v1095 = vunpack.c.h.b16 %v1000
    %v1096 = vunpack.c.l.b16 %v1001
    %v1097 = vunpack.c.h.b16 %v1001
    %v1098 = vpack.c.b16 %v1038, %v1034
    %v1099 = vpack.c.b16 %v1039, %v1035
    %v1100 = vpack.c.b16 %v1040, %v1036
    %v1101 = vpack.c.b16 %v1041, %v1037
    %v1102 = vpack.c.b16 %v1046, %v1042
    %v1103 = vpack.c.b16 %v1047, %v1043
    %v1104 = vpack.c.b16 %v1048, %v1044
    %v1105 = vpack.c.b16 %v1049, %v1045
    %v1106 = vpack.c.b16 %v1054, %v1050
    %v1107 = vpack.c.b16 %v1055, %v1051
    %v1108 = vpack.c.b16 %v1056, %v1052
    %v1109 = vpack.c.b16 %v1057, %v1053
    %v1110 = vpack.c.b16 %v1062, %v1058
    %v1111 = vpack.c.b16 %v1063, %v1059
    %v1112 = vpack.c.b16 %v1064, %v1060
    %v1113 = vpack.c.b16 %v1065, %v1061
    %v1114 = vpack.c.b16 %v1070, %v1066
    %v1115 = vpack.c.b16 %v1071, %v1067
    %v1116 = vpack.c.b16 %v1072, %v1068
    %v1117 = vpack.c.b16 %v1073, %v1069
    %v1118 = vpack.c.b16 %v1078, %v1074
    %v1119 = vpack.c.b16 %v1079, %v1075
    %v1120 = vpack.c.b16 %v1080, %v1076
    %v1121 = vpack.c.b16 %v1081, %v1077
    %v1122 = vpack.c.b16 %v1086, %v1082
    %v1123 = vpack.c.b16 %v1087, %v1083
    %v1124 = vpack.c.b16 %v1088, %v1084
    %v1125 = vpack.c.b16 %v1089, %v1085
    %v1126 = vpack.c.b16 %v1094, %v1090
    %v1127 = vpack.c.b16 %v1095, %v1091
    %v1128 = vpack.c.b16 %v1096, %v1092
    %v1129 = vpack.c.b16 %v1097, %v1093
    %1162 = vmatprep.subr.bf16.mxu0 %v1127
    %1163 = vmatpush1.bf16.msra.mxu0 %v1126
    %1164 = vmatprep.subr.bf16.mxu0 %v1123
    %1165 = vmatpush1.bf16.msra.mxu0 %v1122
    %1166 = vmatprep.subr.bf16.mxu0 %v1119
    %1167 = vmatpush1.bf16.msra.mxu0 %v1118
    %1168 = vmatprep.subr.bf16.mxu0 %v1115
    %1169 = vmatpush1.bf16.msra.mxu0 %v1114
    %1170 = vmatprep.subr.bf16.mxu0 %v1111
    %1171 = vmatpush1.bf16.msra.mxu0 %v1110
    %1172 = vmatprep.subr.bf16.mxu0 %v1107
    %1173 = vmatpush1.bf16.msra.mxu0 %v1106
    %1174 = vmatprep.subr.bf16.mxu0 %v1103
    %1175 = vmatpush1.bf16.msra.mxu0 %v1102
    %1176 = vmatprep.subr.bf16.mxu0 %v1099
    %1177 = vmatpush1.bf16.msra.mxu0 %v1098
    %1178 = vmatprep.subr.bf16.mxu0 0
    %1179 = vmatpush2.bf16.msra.mxu0 0
    %1180 = vmatprep.subr.bf16.mxu0 0
    %1181 = vmatpush2.bf16.msra.mxu0 0
    %1182 = vmatprep.subr.bf16.mxu0 0
    %1183 = vmatpush2.bf16.msra.mxu0 0
    %1184 = vmatprep.subr.bf16.mxu0 0
    %1185 = vmatpush2.bf16.msra.mxu0 0
    %1186 = vmatprep.subr.bf16.mxu0 0
    %1187 = vmatpush2.bf16.msra.mxu0 0
    %1188 = vmatprep.subr.bf16.mxu0 0
    %1189 = vmatpush2.bf16.msra.mxu0 0
    %1190 = vmatprep.subr.bf16.mxu0 0
    %1191 = vmatpush2.bf16.msra.mxu0 0
    %1192 = vmatprep.subr.bf16.mxu0 0
    %1193 = vmatpush2.bf16.msra.mxu0 0
    %1194 = vmatprep.mubr.bf16.mxu0 0
    %1195 = vmatmul.mubr.bf16.gmra.mxu0 %v969
    %v1196 = vpop.f32.mrf.mxu0
    %v1197 = vadd.f32 0.0, %v1196
    %v1198 = vpop.f32.mrf.mxu0
    %v1199 = vadd.f32 0.0, %v1198
    %v1200 = vpop.f32.mrf.mxu0
    %v1201 = vpop.f32.mrf.mxu0
    %1202 = vdwg.mxu0
    %1203 = vmatprep.subr.bf16.mxu0 %v1129
    %1204 = vmatpush1.bf16.msra.mxu0 %v1128
    %1205 = vmatprep.subr.bf16.mxu0 %v1125
    %1206 = vmatpush1.bf16.msra.mxu0 %v1124
    %1207 = vmatprep.subr.bf16.mxu0 %v1121
    %1208 = vmatpush1.bf16.msra.mxu0 %v1120
    %1209 = vmatprep.subr.bf16.mxu0 %v1117
    %1210 = vmatpush1.bf16.msra.mxu0 %v1116
    %1211 = vmatprep.subr.bf16.mxu0 %v1113
    %1212 = vmatpush1.bf16.msra.mxu0 %v1112
    %1213 = vmatprep.subr.bf16.mxu0 %v1109
    %1214 = vmatpush1.bf16.msra.mxu0 %v1108
    %1215 = vmatprep.subr.bf16.mxu0 %v1105
    %1216 = vmatpush1.bf16.msra.mxu0 %v1104
    %1217 = vmatprep.subr.bf16.mxu0 %v1101
    %1218 = vmatpush1.bf16.msra.mxu0 %v1100
    %1219 = vmatprep.subr.bf16.mxu0 0
    %1220 = vmatpush2.bf16.msra.mxu0 0
    %1221 = vmatprep.subr.bf16.mxu0 0
    %1222 = vmatpush2.bf16.msra.mxu0 0
    %1223 = vmatprep.subr.bf16.mxu0 0
    %1224 = vmatpush2.bf16.msra.mxu0 0
    %1225 = vmatprep.subr.bf16.mxu0 0
    %1226 = vmatpush2.bf16.msra.mxu0 0
    %1227 = vmatprep.subr.bf16.mxu0 0
    %1228 = vmatpush2.bf16.msra.mxu0 0
    %1229 = vmatprep.subr.bf16.mxu0 0
    %1230 = vmatpush2.bf16.msra.mxu0 0
    %1231 = vmatprep.subr.bf16.mxu0 0
    %1232 = vmatpush2.bf16.msra.mxu0 0
    %1233 = vmatprep.subr.bf16.mxu0 0
    %1234 = vmatpush2.bf16.msra.mxu0 0
    %1235 = vmatprep.mubr.bf16.mxu0 0
    %1236 = vmatmul.mubr.bf16.gmra.mxu0 %v969
    %v1237 = vpop.f32.mrf.mxu0
    %v1238 = vadd.f32 0.0, %v1237
    %v1239 = vpop.f32.mrf.mxu0
    %v1240 = vadd.f32 0.0, %v1239
    %v1241 = vpop.f32.mrf.mxu0
    %v1242 = vpop.f32.mrf.mxu0
    %1243 = vdwg.mxu0
    %v1244 = vadd.f32 %v965, %v1197
    %v1245 = vadd.f32 %v966, %v1199
    %v1246 = vadd.f32 %v967, %v1238
    %v1247 = vadd.f32 %v968, %v1240
    %v1248 = vxor.u32 %v1244, 2147483648
    %v1249 = vmul.f32 %v1248, 1.442695
    %v1250 = vpow.pop %v1249
    %v1251 = vadd.f32 %v1250, 1.0
    %v1252 = vrcp.pop %v1251
    %v1253 = vmul.f32 1.0, %v1252
    %v1254 = vxor.u32 %v1245, 2147483648
    %v1255 = vmul.f32 %v1254, 1.442695
    %v1256 = vpow.pop %v1255
    %v1257 = vadd.f32 %v1256, 1.0
    %v1258 = vrcp.pop %v1257
    %v1259 = vmul.f32 1.0, %v1258
    %v1260 = vtanh.pop %v1246
    %v1261 = vxor.u32 %v1247, 2147483648
    %v1262 = vmul.f32 %v1261, 1.442695
    %v1263 = vpow.pop %v1262
    %v1264 = vadd.f32 %v1263, 1.0
    %v1265 = vrcp.pop %v1264
    %v1266 = vmul.f32 1.0, %v1265
    %v1267 = vmul.f32 %v1259, %v957
    %v1268 = vmul.f32 %v1253, %v1260
    %v1269 = vadd.f32 %v1267, %v1268
    %v1270 = vtanh.pop %v1269
    %v1271 = vmul.f32 %v1266, %v1270
    %s1272 = scalar_lea.vmem [#allocation3], 16
    %1273 = vst [vmem:[%s1272] sm:$0xff] %v1271
    %s1274 = smul.u32 3, 4
    %s1275 = smul.addr %s1274, 8
    %s1276 = scalar_lea.vmem [#allocation2], %s1275
    %v1277 = vld [vmem:[%s1276] sm:$0xff]
    %v1278 = vld [vmem:[%s1276 + $0x8] sm:$0xff]
    %v1279 = vld [vmem:[%s1276 + $0x10] sm:$0xff]
    %v1280 = vld [vmem:[%s1276 + $0x18] sm:$0xff]
    %v1281 = vpack.c.bf16 %v1271, %v1271
    %v1282 = vld [vmem:[#allocation4] sm:$0xff]
    %v1283 = vld [vmem:[#allocation4 + $0x8] sm:$0xff]
    %v1284 = vld [vmem:[#allocation4 + $0x10] sm:$0xff]
    %v1285 = vld [vmem:[#allocation4 + $0x18] sm:$0xff]
    %v1286 = vld [vmem:[#allocation4 + $0x20] sm:$0xff]
    %v1287 = vld [vmem:[#allocation4 + $0x28] sm:$0xff]
    %v1288 = vld [vmem:[#allocation4 + $0x30] sm:$0xff]
    %v1289 = vld [vmem:[#allocation4 + $0x38] sm:$0xff]
    %v1290 = vld [vmem:[#allocation4 + $0x40] sm:$0xff]
    %v1291 = vld [vmem:[#allocation4 + $0x48] sm:$0xff]
    %v1292 = vld [vmem:[#allocation4 + $0x50] sm:$0xff]
    %v1293 = vld [vmem:[#allocation4 + $0x58] sm:$0xff]
    %v1294 = vld [vmem:[#allocation4 + $0x60] sm:$0xff]
    %v1295 = vld [vmem:[#allocation4 + $0x68] sm:$0xff]
    %v1296 = vld [vmem:[#allocation4 + $0x70] sm:$0xff]
    %v1297 = vld [vmem:[#allocation4 + $0x78] sm:$0xff]
    %v1298 = vld [vmem:[#allocation4 + $0x80] sm:$0xff]
    %v1299 = vld [vmem:[#allocation4 + $0x88] sm:$0xff]
    %v1300 = vld [vmem:[#allocation4 + $0x90] sm:$0xff]
    %v1301 = vld [vmem:[#allocation4 + $0x98] sm:$0xff]
    %v1302 = vld [vmem:[#allocation4 + $0xa0] sm:$0xff]
    %v1303 = vld [vmem:[#allocation4 + $0xa8] sm:$0xff]
    %v1304 = vld [vmem:[#allocation4 + $0xb0] sm:$0xff]
    %v1305 = vld [vmem:[#allocation4 + $0xb8] sm:$0xff]
    %v1306 = vld [vmem:[#allocation4 + $0xc0] sm:$0xff]
    %v1307 = vld [vmem:[#allocation4 + $0xc8] sm:$0xff]
    %v1308 = vld [vmem:[#allocation4 + $0xd0] sm:$0xff]
    %v1309 = vld [vmem:[#allocation4 + $0xd8] sm:$0xff]
    %v1310 = vld [vmem:[#allocation4 + $0xe0] sm:$0xff]
    %v1311 = vld [vmem:[#allocation4 + $0xe8] sm:$0xff]
    %v1312 = vld [vmem:[#allocation4 + $0xf0] sm:$0xff]
    %v1313 = vld [vmem:[#allocation4 + $0xf8] sm:$0xff]
    %v1346 = vunpack.c.l.b16 %v1282
    %v1347 = vunpack.c.h.b16 %v1282
    %v1348 = vunpack.c.l.b16 %v1283
    %v1349 = vunpack.c.h.b16 %v1283
    %v1350 = vunpack.c.l.b16 %v1284
    %v1351 = vunpack.c.h.b16 %v1284
    %v1352 = vunpack.c.l.b16 %v1285
    %v1353 = vunpack.c.h.b16 %v1285
    %v1354 = vunpack.c.l.b16 %v1286
    %v1355 = vunpack.c.h.b16 %v1286
    %v1356 = vunpack.c.l.b16 %v1287
    %v1357 = vunpack.c.h.b16 %v1287
    %v1358 = vunpack.c.l.b16 %v1288
    %v1359 = vunpack.c.h.b16 %v1288
    %v1360 = vunpack.c.l.b16 %v1289
    %v1361 = vunpack.c.h.b16 %v1289
    %v1362 = vunpack.c.l.b16 %v1290
    %v1363 = vunpack.c.h.b16 %v1290
    %v1364 = vunpack.c.l.b16 %v1291
    %v1365 = vunpack.c.h.b16 %v1291
    %v1366 = vunpack.c.l.b16 %v1292
    %v1367 = vunpack.c.h.b16 %v1292
    %v1368 = vunpack.c.l.b16 %v1293
    %v1369 = vunpack.c.h.b16 %v1293
    %v1370 = vunpack.c.l.b16 %v1294
    %v1371 = vunpack.c.h.b16 %v1294
    %v1372 = vunpack.c.l.b16 %v1295
    %v1373 = vunpack.c.h.b16 %v1295
    %v1374 = vunpack.c.l.b16 %v1296
    %v1375 = vunpack.c.h.b16 %v1296
    %v1376 = vunpack.c.l.b16 %v1297
    %v1377 = vunpack.c.h.b16 %v1297
    %v1378 = vunpack.c.l.b16 %v1298
    %v1379 = vunpack.c.h.b16 %v1298
    %v1380 = vunpack.c.l.b16 %v1299
    %v1381 = vunpack.c.h.b16 %v1299
    %v1382 = vunpack.c.l.b16 %v1300
    %v1383 = vunpack.c.h.b16 %v1300
    %v1384 = vunpack.c.l.b16 %v1301
    %v1385 = vunpack.c.h.b16 %v1301
    %v1386 = vunpack.c.l.b16 %v1302
    %v1387 = vunpack.c.h.b16 %v1302
    %v1388 = vunpack.c.l.b16 %v1303
    %v1389 = vunpack.c.h.b16 %v1303
    %v1390 = vunpack.c.l.b16 %v1304
    %v1391 = vunpack.c.h.b16 %v1304
    %v1392 = vunpack.c.l.b16 %v1305
    %v1393 = vunpack.c.h.b16 %v1305
    %v1394 = vunpack.c.l.b16 %v1306
    %v1395 = vunpack.c.h.b16 %v1306
    %v1396 = vunpack.c.l.b16 %v1307
    %v1397 = vunpack.c.h.b16 %v1307
    %v1398 = vunpack.c.l.b16 %v1308
    %v1399 = vunpack.c.h.b16 %v1308
    %v1400 = vunpack.c.l.b16 %v1309
    %v1401 = vunpack.c.h.b16 %v1309
    %v1402 = vunpack.c.l.b16 %v1310
    %v1403 = vunpack.c.h.b16 %v1310
    %v1404 = vunpack.c.l.b16 %v1311
    %v1405 = vunpack.c.h.b16 %v1311
    %v1406 = vunpack.c.l.b16 %v1312
    %v1407 = vunpack.c.h.b16 %v1312
    %v1408 = vunpack.c.l.b16 %v1313
    %v1409 = vunpack.c.h.b16 %v1313
    %v1410 = vpack.c.b16 %v1350, %v1346
    %v1411 = vpack.c.b16 %v1351, %v1347
    %v1412 = vpack.c.b16 %v1352, %v1348
    %v1413 = vpack.c.b16 %v1353, %v1349
    %v1414 = vpack.c.b16 %v1358, %v1354
    %v1415 = vpack.c.b16 %v1359, %v1355
    %v1416 = vpack.c.b16 %v1360, %v1356
    %v1417 = vpack.c.b16 %v1361, %v1357
    %v1418 = vpack.c.b16 %v1366, %v1362
    %v1419 = vpack.c.b16 %v1367, %v1363
    %v1420 = vpack.c.b16 %v1368, %v1364
    %v1421 = vpack.c.b16 %v1369, %v1365
    %v1422 = vpack.c.b16 %v1374, %v1370
    %v1423 = vpack.c.b16 %v1375, %v1371
    %v1424 = vpack.c.b16 %v1376, %v1372
    %v1425 = vpack.c.b16 %v1377, %v1373
    %v1426 = vpack.c.b16 %v1382, %v1378
    %v1427 = vpack.c.b16 %v1383, %v1379
    %v1428 = vpack.c.b16 %v1384, %v1380
    %v1429 = vpack.c.b16 %v1385, %v1381
    %v1430 = vpack.c.b16 %v1390, %v1386
    %v1431 = vpack.c.b16 %v1391, %v1387
    %v1432 = vpack.c.b16 %v1392, %v1388
    %v1433 = vpack.c.b16 %v1393, %v1389
    %v1434 = vpack.c.b16 %v1398, %v1394
    %v1435 = vpack.c.b16 %v1399, %v1395
    %v1436 = vpack.c.b16 %v1400, %v1396
    %v1437 = vpack.c.b16 %v1401, %v1397
    %v1438 = vpack.c.b16 %v1406, %v1402
    %v1439 = vpack.c.b16 %v1407, %v1403
    %v1440 = vpack.c.b16 %v1408, %v1404
    %v1441 = vpack.c.b16 %v1409, %v1405
    %1474 = vmatprep.subr.bf16.mxu0 %v1439
    %1475 = vmatpush1.bf16.msra.mxu0 %v1438
    %1476 = vmatprep.subr.bf16.mxu0 %v1435
    %1477 = vmatpush1.bf16.msra.mxu0 %v1434
    %1478 = vmatprep.subr.bf16.mxu0 %v1431
    %1479 = vmatpush1.bf16.msra.mxu0 %v1430
    %1480 = vmatprep.subr.bf16.mxu0 %v1427
    %1481 = vmatpush1.bf16.msra.mxu0 %v1426
    %1482 = vmatprep.subr.bf16.mxu0 %v1423
    %1483 = vmatpush1.bf16.msra.mxu0 %v1422
    %1484 = vmatprep.subr.bf16.mxu0 %v1419
    %1485 = vmatpush1.bf16.msra.mxu0 %v1418
    %1486 = vmatprep.subr.bf16.mxu0 %v1415
    %1487 = vmatpush1.bf16.msra.mxu0 %v1414
    %1488 = vmatprep.subr.bf16.mxu0 %v1411
    %1489 = vmatpush1.bf16.msra.mxu0 %v1410
    %1490 = vmatprep.subr.bf16.mxu0 0
    %1491 = vmatpush2.bf16.msra.mxu0 0
    %1492 = vmatprep.subr.bf16.mxu0 0
    %1493 = vmatpush2.bf16.msra.mxu0 0
    %1494 = vmatprep.subr.bf16.mxu0 0
    %1495 = vmatpush2.bf16.msra.mxu0 0
    %1496 = vmatprep.subr.bf16.mxu0 0
    %1497 = vmatpush2.bf16.msra.mxu0 0
    %1498 = vmatprep.subr.bf16.mxu0 0
    %1499 = vmatpush2.bf16.msra.mxu0 0
    %1500 = vmatprep.subr.bf16.mxu0 0
    %1501 = vmatpush2.bf16.msra.mxu0 0
    %1502 = vmatprep.subr.bf16.mxu0 0
    %1503 = vmatpush2.bf16.msra.mxu0 0
    %1504 = vmatprep.subr.bf16.mxu0 0
    %1505 = vmatpush2.bf16.msra.mxu0 0
    %1506 = vmatprep.mubr.bf16.mxu0 0
    %1507 = vmatmul.mubr.bf16.gmra.mxu0 %v1281
    %v1508 = vpop.f32.mrf.mxu0
    %v1509 = vadd.f32 0.0, %v1508
    %v1510 = vpop.f32.mrf.mxu0
    %v1511 = vadd.f32 0.0, %v1510
    %v1512 = vpop.f32.mrf.mxu0
    %v1513 = vpop.f32.mrf.mxu0
    %1514 = vdwg.mxu0
    %1515 = vmatprep.subr.bf16.mxu0 %v1441
    %1516 = vmatpush1.bf16.msra.mxu0 %v1440
    %1517 = vmatprep.subr.bf16.mxu0 %v1437
    %1518 = vmatpush1.bf16.msra.mxu0 %v1436
    %1519 = vmatprep.subr.bf16.mxu0 %v1433
    %1520 = vmatpush1.bf16.msra.mxu0 %v1432
    %1521 = vmatprep.subr.bf16.mxu0 %v1429
    %1522 = vmatpush1.bf16.msra.mxu0 %v1428
    %1523 = vmatprep.subr.bf16.mxu0 %v1425
    %1524 = vmatpush1.bf16.msra.mxu0 %v1424
    %1525 = vmatprep.subr.bf16.mxu0 %v1421
    %1526 = vmatpush1.bf16.msra.mxu0 %v1420
    %1527 = vmatprep.subr.bf16.mxu0 %v1417
    %1528 = vmatpush1.bf16.msra.mxu0 %v1416
    %1529 = vmatprep.subr.bf16.mxu0 %v1413
    %1530 = vmatpush1.bf16.msra.mxu0 %v1412
    %1531 = vmatprep.subr.bf16.mxu0 0
    %1532 = vmatpush2.bf16.msra.mxu0 0
    %1533 = vmatprep.subr.bf16.mxu0 0
    %1534 = vmatpush2.bf16.msra.mxu0 0
    %1535 = vmatprep.subr.bf16.mxu0 0
    %1536 = vmatpush2.bf16.msra.mxu0 0
    %1537 = vmatprep.subr.bf16.mxu0 0
    %1538 = vmatpush2.bf16.msra.mxu0 0
    %1539 = vmatprep.subr.bf16.mxu0 0
    %1540 = vmatpush2.bf16.msra.mxu0 0
    %1541 = vmatprep.subr.bf16.mxu0 0
    %1542 = vmatpush2.bf16.msra.mxu0 0
    %1543 = vmatprep.subr.bf16.mxu0 0
    %1544 = vmatpush2.bf16.msra.mxu0 0
    %1545 = vmatprep.subr.bf16.mxu0 0
    %1546 = vmatpush2.bf16.msra.mxu0 0
    %1547 = vmatprep.mubr.bf16.mxu0 0
    %1548 = vmatmul.mubr.bf16.gmra.mxu0 %v1281
    %v1549 = vpop.f32.mrf.mxu0
    %v1550 = vadd.f32 0.0, %v1549
    %v1551 = vpop.f32.mrf.mxu0
    %v1552 = vadd.f32 0.0, %v1551
    %v1553 = vpop.f32.mrf.mxu0
    %v1554 = vpop.f32.mrf.mxu0
    %1555 = vdwg.mxu0
    %v1556 = vadd.f32 %v1277, %v1509
    %v1557 = vadd.f32 %v1278, %v1511
    %v1558 = vadd.f32 %v1279, %v1550
    %v1559 = vadd.f32 %v1280, %v1552
    %v1560 = vxor.u32 %v1556, 2147483648
    %v1561 = vmul.f32 %v1560, 1.442695
    %v1562 = vpow.pop %v1561
    %v1563 = vadd.f32 %v1562, 1.0
    %v1564 = vrcp.pop %v1563
    %v1565 = vmul.f32 1.0, %v1564
    %v1566 = vxor.u32 %v1557, 2147483648
    %v1567 = vmul.f32 %v1566, 1.442695
    %v1568 = vpow.pop %v1567
    %v1569 = vadd.f32 %v1568, 1.0
    %v1570 = vrcp.pop %v1569
    %v1571 = vmul.f32 1.0, %v1570
    %v1572 = vtanh.pop %v1558
    %v1573 = vxor.u32 %v1559, 2147483648
    %v1574 = vmul.f32 %v1573, 1.442695
    %v1575 = vpow.pop %v1574
    %v1576 = vadd.f32 %v1575, 1.0
    %v1577 = vrcp.pop %v1576
    %v1578 = vmul.f32 1.0, %v1577
    %v1579 = vmul.f32 %v1571, %v1269
    %v1580 = vmul.f32 %v1565, %v1572
    %v1581 = vadd.f32 %v1579, %v1580
    %v1582 = vtanh.pop %v1581
    %v1583 = vmul.f32 %v1578, %v1582
    %s1584 = scalar_lea.vmem [#allocation3], 24
    %1585 = vst [vmem:[%s1584] sm:$0xff] %v1583
    %s1586 = smul.u32 4, 4
    %s1587 = smul.addr %s1586, 8
    %s1588 = scalar_lea.vmem [#allocation2], %s1587
    %v1589 = vld [vmem:[%s1588] sm:$0xff]
    %v1590 = vld [vmem:[%s1588 + $0x8] sm:$0xff]
    %v1591 = vld [vmem:[%s1588 + $0x10] sm:$0xff]
    %v1592 = vld [vmem:[%s1588 + $0x18] sm:$0xff]
    %v1593 = vpack.c.bf16 %v1583, %v1583
    %v1594 = vld [vmem:[#allocation4] sm:$0xff]
    %v1595 = vld [vmem:[#allocation4 + $0x8] sm:$0xff]
    %v1596 = vld [vmem:[#allocation4 + $0x10] sm:$0xff]
    %v1597 = vld [vmem:[#allocation4 + $0x18] sm:$0xff]
    %v1598 = vld [vmem:[#allocation4 + $0x20] sm:$0xff]
    %v1599 = vld [vmem:[#allocation4 + $0x28] sm:$0xff]
    %v1600 = vld [vmem:[#allocation4 + $0x30] sm:$0xff]
    %v1601 = vld [vmem:[#allocation4 + $0x38] sm:$0xff]
    %v1602 = vld [vmem:[#allocation4 + $0x40] sm:$0xff]
    %v1603 = vld [vmem:[#allocation4 + $0x48] sm:$0xff]
    %v1604 = vld [vmem:[#allocation4 + $0x50] sm:$0xff]
    %v1605 = vld [vmem:[#allocation4 + $0x58] sm:$0xff]
    %v1606 = vld [vmem:[#allocation4 + $0x60] sm:$0xff]
    %v1607 = vld [vmem:[#allocation4 + $0x68] sm:$0xff]
    %v1608 = vld [vmem:[#allocation4 + $0x70] sm:$0xff]
    %v1609 = vld [vmem:[#allocation4 + $0x78] sm:$0xff]
    %v1610 = vld [vmem:[#allocation4 + $0x80] sm:$0xff]
    %v1611 = vld [vmem:[#allocation4 + $0x88] sm:$0xff]
    %v1612 = vld [vmem:[#allocation4 + $0x90] sm:$0xff]
    %v1613 = vld [vmem:[#allocation4 + $0x98] sm:$0xff]
    %v1614 = vld [vmem:[#allocation4 + $0xa0] sm:$0xff]
    %v1615 = vld [vmem:[#allocation4 + $0xa8] sm:$0xff]
    %v1616 = vld [vmem:[#allocation4 + $0xb0] sm:$0xff]
    %v1617 = vld [vmem:[#allocation4 + $0xb8] sm:$0xff]
    %v1618 = vld [vmem:[#allocation4 + $0xc0] sm:$0xff]
    %v1619 = vld [vmem:[#allocation4 + $0xc8] sm:$0xff]
    %v1620 = vld [vmem:[#allocation4 + $0xd0] sm:$0xff]
    %v1621 = vld [vmem:[#allocation4 + $0xd8] sm:$0xff]
    %v1622 = vld [vmem:[#allocation4 + $0xe0] sm:$0xff]
    %v1623 = vld [vmem:[#allocation4 + $0xe8] sm:$0xff]
    %v1624 = vld [vmem:[#allocation4 + $0xf0] sm:$0xff]
    %v1625 = vld [vmem:[#allocation4 + $0xf8] sm:$0xff]
    %v1658 = vunpack.c.l.b16 %v1594
    %v1659 = vunpack.c.h.b16 %v1594
    %v1660 = vunpack.c.l.b16 %v1595
    %v1661 = vunpack.c.h.b16 %v1595
    %v1662 = vunpack.c.l.b16 %v1596
    %v1663 = vunpack.c.h.b16 %v1596
    %v1664 = vunpack.c.l.b16 %v1597
    %v1665 = vunpack.c.h.b16 %v1597
    %v1666 = vunpack.c.l.b16 %v1598
    %v1667 = vunpack.c.h.b16 %v1598
    %v1668 = vunpack.c.l.b16 %v1599
    %v1669 = vunpack.c.h.b16 %v1599
    %v1670 = vunpack.c.l.b16 %v1600
    %v1671 = vunpack.c.h.b16 %v1600
    %v1672 = vunpack.c.l.b16 %v1601
    %v1673 = vunpack.c.h.b16 %v1601
    %v1674 = vunpack.c.l.b16 %v1602
    %v1675 = vunpack.c.h.b16 %v1602
    %v1676 = vunpack.c.l.b16 %v1603
    %v1677 = vunpack.c.h.b16 %v1603
    %v1678 = vunpack.c.l.b16 %v1604
    %v1679 = vunpack.c.h.b16 %v1604
    %v1680 = vunpack.c.l.b16 %v1605
    %v1681 = vunpack.c.h.b16 %v1605
    %v1682 = vunpack.c.l.b16 %v1606
    %v1683 = vunpack.c.h.b16 %v1606
    %v1684 = vunpack.c.l.b16 %v1607
    %v1685 = vunpack.c.h.b16 %v1607
    %v1686 = vunpack.c.l.b16 %v1608
    %v1687 = vunpack.c.h.b16 %v1608
    %v1688 = vunpack.c.l.b16 %v1609
    %v1689 = vunpack.c.h.b16 %v1609
    %v1690 = vunpack.c.l.b16 %v1610
    %v1691 = vunpack.c.h.b16 %v1610
    %v1692 = vunpack.c.l.b16 %v1611
    %v1693 = vunpack.c.h.b16 %v1611
    %v1694 = vunpack.c.l.b16 %v1612
    %v1695 = vunpack.c.h.b16 %v1612
    %v1696 = vunpack.c.l.b16 %v1613
    %v1697 = vunpack.c.h.b16 %v1613
    %v1698 = vunpack.c.l.b16 %v1614
    %v1699 = vunpack.c.h.b16 %v1614
    %v1700 = vunpack.c.l.b16 %v1615
    %v1701 = vunpack.c.h.b16 %v1615
    %v1702 = vunpack.c.l.b16 %v1616
    %v1703 = vunpack.c.h.b16 %v1616
    %v1704 = vunpack.c.l.b16 %v1617
    %v1705 = vunpack.c.h.b16 %v1617
    %v1706 = vunpack.c.l.b16 %v1618
    %v1707 = vunpack.c.h.b16 %v1618
    %v1708 = vunpack.c.l.b16 %v1619
    %v1709 = vunpack.c.h.b16 %v1619
    %v1710 = vunpack.c.l.b16 %v1620
    %v1711 = vunpack.c.h.b16 %v1620
    %v1712 = vunpack.c.l.b16 %v1621
    %v1713 = vunpack.c.h.b16 %v1621
    %v1714 = vunpack.c.l.b16 %v1622
    %v1715 = vunpack.c.h.b16 %v1622
    %v1716 = vunpack.c.l.b16 %v1623
    %v1717 = vunpack.c.h.b16 %v1623
    %v1718 = vunpack.c.l.b16 %v1624
    %v1719 = vunpack.c.h.b16 %v1624
    %v1720 = vunpack.c.l.b16 %v1625
    %v1721 = vunpack.c.h.b16 %v1625
    %v1722 = vpack.c.b16 %v1662, %v1658
    %v1723 = vpack.c.b16 %v1663, %v1659
    %v1724 = vpack.c.b16 %v1664, %v1660
    %v1725 = vpack.c.b16 %v1665, %v1661
    %v1726 = vpack.c.b16 %v1670, %v1666
    %v1727 = vpack.c.b16 %v1671, %v1667
    %v1728 = vpack.c.b16 %v1672, %v1668
    %v1729 = vpack.c.b16 %v1673, %v1669
    %v1730 = vpack.c.b16 %v1678, %v1674
    %v1731 = vpack.c.b16 %v1679, %v1675
    %v1732 = vpack.c.b16 %v1680, %v1676
    %v1733 = vpack.c.b16 %v1681, %v1677
    %v1734 = vpack.c.b16 %v1686, %v1682
    %v1735 = vpack.c.b16 %v1687, %v1683
    %v1736 = vpack.c.b16 %v1688, %v1684
    %v1737 = vpack.c.b16 %v1689, %v1685
    %v1738 = vpack.c.b16 %v1694, %v1690
    %v1739 = vpack.c.b16 %v1695, %v1691
    %v1740 = vpack.c.b16 %v1696, %v1692
    %v1741 = vpack.c.b16 %v1697, %v1693
    %v1742 = vpack.c.b16 %v1702, %v1698
    %v1743 = vpack.c.b16 %v1703, %v1699
    %v1744 = vpack.c.b16 %v1704, %v1700
    %v1745 = vpack.c.b16 %v1705, %v1701
    %v1746 = vpack.c.b16 %v1710, %v1706
    %v1747 = vpack.c.b16 %v1711, %v1707
    %v1748 = vpack.c.b16 %v1712, %v1708
    %v1749 = vpack.c.b16 %v1713, %v1709
    %v1750 = vpack.c.b16 %v1718, %v1714
    %v1751 = vpack.c.b16 %v1719, %v1715
    %v1752 = vpack.c.b16 %v1720, %v1716
    %v1753 = vpack.c.b16 %v1721, %v1717
    %1786 = vmatprep.subr.bf16.mxu0 %v1751
    %1787 = vmatpush1.bf16.msra.mxu0 %v1750
    %1788 = vmatprep.subr.bf16.mxu0 %v1747
    %1789 = vmatpush1.bf16.msra.mxu0 %v1746
    %1790 = vmatprep.subr.bf16.mxu0 %v1743
    %1791 = vmatpush1.bf16.msra.mxu0 %v1742
    %1792 = vmatprep.subr.bf16.mxu0 %v1739
    %1793 = vmatpush1.bf16.msra.mxu0 %v1738
    %1794 = vmatprep.subr.bf16.mxu0 %v1735
    %1795 = vmatpush1.bf16.msra.mxu0 %v1734
    %1796 = vmatprep.subr.bf16.mxu0 %v1731
    %1797 = vmatpush1.bf16.msra.mxu0 %v1730
    %1798 = vmatprep.subr.bf16.mxu0 %v1727
    %1799 = vmatpush1.bf16.msra.mxu0 %v1726
    %1800 = vmatprep.subr.bf16.mxu0 %v1723
    %1801 = vmatpush1.bf16.msra.mxu0 %v1722
    %1802 = vmatprep.subr.bf16.mxu0 0
    %1803 = vmatpush2.bf16.msra.mxu0 0
    %1804 = vmatprep.subr.bf16.mxu0 0
    %1805 = vmatpush2.bf16.msra.mxu0 0
    %1806 = vmatprep.subr.bf16.mxu0 0
    %1807 = vmatpush2.bf16.msra.mxu0 0
    %1808 = vmatprep.subr.bf16.mxu0 0
    %1809 = vmatpush2.bf16.msra.mxu0 0
    %1810 = vmatprep.subr.bf16.mxu0 0
    %1811 = vmatpush2.bf16.msra.mxu0 0
    %1812 = vmatprep.subr.bf16.mxu0 0
    %1813 = vmatpush2.bf16.msra.mxu0 0
    %1814 = vmatprep.subr.bf16.mxu0 0
    %1815 = vmatpush2.bf16.msra.mxu0 0
    %1816 = vmatprep.subr.bf16.mxu0 0
    %1817 = vmatpush2.bf16.msra.mxu0 0
    %1818 = vmatprep.mubr.bf16.mxu0 0
    %1819 = vmatmul.mubr.bf16.gmra.mxu0 %v1593
    %v1820 = vpop.f32.mrf.mxu0
    %v1821 = vadd.f32 0.0, %v1820
    %v1822 = vpop.f32.mrf.mxu0
    %v1823 = vadd.f32 0.0, %v1822
    %v1824 = vpop.f32.mrf.mxu0
    %v1825 = vpop.f32.mrf.mxu0
    %1826 = vdwg.mxu0
    %1827 = vmatprep.subr.bf16.mxu0 %v1753
    %1828 = vmatpush1.bf16.msra.mxu0 %v1752
    %1829 = vmatprep.subr.bf16.mxu0 %v1749
    %1830 = vmatpush1.bf16.msra.mxu0 %v1748
    %1831 = vmatprep.subr.bf16.mxu0 %v1745
    %1832 = vmatpush1.bf16.msra.mxu0 %v1744
    %1833 = vmatprep.subr.bf16.mxu0 %v1741
    %1834 = vmatpush1.bf16.msra.mxu0 %v1740
    %1835 = vmatprep.subr.bf16.mxu0 %v1737
    %1836 = vmatpush1.bf16.msra.mxu0 %v1736
    %1837 = vmatprep.subr.bf16.mxu0 %v1733
    %1838 = vmatpush1.bf16.msra.mxu0 %v1732
    %1839 = vmatprep.subr.bf16.mxu0 %v1729
    %1840 = vmatpush1.bf16.msra.mxu0 %v1728
    %1841 = vmatprep.subr.bf16.mxu0 %v1725
    %1842 = vmatpush1.bf16.msra.mxu0 %v1724
    %1843 = vmatprep.subr.bf16.mxu0 0
    %1844 = vmatpush2.bf16.msra.mxu0 0
    %1845 = vmatprep.subr.bf16.mxu0 0
    %1846 = vmatpush2.bf16.msra.mxu0 0
    %1847 = vmatprep.subr.bf16.mxu0 0
    %1848 = vmatpush2.bf16.msra.mxu0 0
    %1849 = vmatprep.subr.bf16.mxu0 0
    %1850 = vmatpush2.bf16.msra.mxu0 0
    %1851 = vmatprep.subr.bf16.mxu0 0
    %1852 = vmatpush2.bf16.msra.mxu0 0
    %1853 = vmatprep.subr.bf16.mxu0 0
    %1854 = vmatpush2.bf16.msra.mxu0 0
    %1855 = vmatprep.subr.bf16.mxu0 0
    %1856 = vmatpush2.bf16.msra.mxu0 0
    %1857 = vmatprep.subr.bf16.mxu0 0
    %1858 = vmatpush2.bf16.msra.mxu0 0
    %1859 = vmatprep.mubr.bf16.mxu0 0
    %1860 = vmatmul.mubr.bf16.gmra.mxu0 %v1593
    %v1861 = vpop.f32.mrf.mxu0
    %v1862 = vadd.f32 0.0, %v1861
    %v1863 = vpop.f32.mrf.mxu0
    %v1864 = vadd.f32 0.0, %v1863
    %v1865 = vpop.f32.mrf.mxu0
    %v1866 = vpop.f32.mrf.mxu0
    %1867 = vdwg.mxu0
    %v1868 = vadd.f32 %v1589, %v1821
    %v1869 = vadd.f32 %v1590, %v1823
    %v1870 = vadd.f32 %v1591, %v1862
    %v1871 = vadd.f32 %v1592, %v1864
    %v1872 = vxor.u32 %v1868, 2147483648
    %v1873 = vmul.f32 %v1872, 1.442695
    %v1874 = vpow.pop %v1873
    %v1875 = vadd.f32 %v1874, 1.0
    %v1876 = vrcp.pop %v1875
    %v1877 = vmul.f32 1.0, %v1876
    %v1878 = vxor.u32 %v1869, 2147483648
    %v1879 = vmul.f32 %v1878, 1.442695
    %v1880 = vpow.pop %v1879
    %v1881 = vadd.f32 %v1880, 1.0
    %v1882 = vrcp.pop %v1881
    %v1883 = vmul.f32 1.0, %v1882
    %v1884 = vtanh.pop %v1870
    %v1885 = vxor.u32 %v1871, 2147483648
    %v1886 = vmul.f32 %v1885, 1.442695
    %v1887 = vpow.pop %v1886
    %v1888 = vadd.f32 %v1887, 1.0
    %v1889 = vrcp.pop %v1888
    %v1890 = vmul.f32 1.0, %v1889
    %v1891 = vmul.f32 %v1883, %v1581
    %v1892 = vmul.f32 %v1877, %v1884
    %v1893 = vadd.f32 %v1891, %v1892
    %v1894 = vtanh.pop %v1893
    %v1895 = vmul.f32 %v1890, %v1894
    %s1896 = scalar_lea.vmem [#allocation3], 32
    %1897 = vst [vmem:[%s1896] sm:$0xff] %v1895
    %s1898 = smul.u32 5, 4
    %s1899 = smul.addr %s1898, 8
    %s1900 = scalar_lea.vmem [#allocation2], %s1899
    %v1901 = vld [vmem:[%s1900] sm:$0xff]
    %v1902 = vld [vmem:[%s1900 + $0x8] sm:$0xff]
    %v1903 = vld [vmem:[%s1900 + $0x10] sm:$0xff]
    %v1904 = vld [vmem:[%s1900 + $0x18] sm:$0xff]
    %v1905 = vpack.c.bf16 %v1895, %v1895
    %v1906 = vld [vmem:[#allocation4] sm:$0xff]
    %v1907 = vld [vmem:[#allocation4 + $0x8] sm:$0xff]
    %v1908 = vld [vmem:[#allocation4 + $0x10] sm:$0xff]
    %v1909 = vld [vmem:[#allocation4 + $0x18] sm:$0xff]
    %v1910 = vld [vmem:[#allocation4 + $0x20] sm:$0xff]
    %v1911 = vld [vmem:[#allocation4 + $0x28] sm:$0xff]
    %v1912 = vld [vmem:[#allocation4 + $0x30] sm:$0xff]
    %v1913 = vld [vmem:[#allocation4 + $0x38] sm:$0xff]
    %v1914 = vld [vmem:[#allocation4 + $0x40] sm:$0xff]
    %v1915 = vld [vmem:[#allocation4 + $0x48] sm:$0xff]
    %v1916 = vld [vmem:[#allocation4 + $0x50] sm:$0xff]
    %v1917 = vld [vmem:[#allocation4 + $0x58] sm:$0xff]
    %v1918 = vld [vmem:[#allocation4 + $0x60] sm:$0xff]
    %v1919 = vld [vmem:[#allocation4 + $0x68] sm:$0xff]
    %v1920 = vld [vmem:[#allocation4 + $0x70] sm:$0xff]
    %v1921 = vld [vmem:[#allocation4 + $0x78] sm:$0xff]
    %v1922 = vld [vmem:[#allocation4 + $0x80] sm:$0xff]
    %v1923 = vld [vmem:[#allocation4 + $0x88] sm:$0xff]
    %v1924 = vld [vmem:[#allocation4 + $0x90] sm:$0xff]
    %v1925 = vld [vmem:[#allocation4 + $0x98] sm:$0xff]
    %v1926 = vld [vmem:[#allocation4 + $0xa0] sm:$0xff]
    %v1927 = vld [vmem:[#allocation4 + $0xa8] sm:$0xff]
    %v1928 = vld [vmem:[#allocation4 + $0xb0] sm:$0xff]
    %v1929 = vld [vmem:[#allocation4 + $0xb8] sm:$0xff]
    %v1930 = vld [vmem:[#allocation4 + $0xc0] sm:$0xff]
    %v1931 = vld [vmem:[#allocation4 + $0xc8] sm:$0xff]
    %v1932 = vld [vmem:[#allocation4 + $0xd0] sm:$0xff]
    %v1933 = vld [vmem:[#allocation4 + $0xd8] sm:$0xff]
    %v1934 = vld [vmem:[#allocation4 + $0xe0] sm:$0xff]
    %v1935 = vld [vmem:[#allocation4 + $0xe8] sm:$0xff]
    %v1936 = vld [vmem:[#allocation4 + $0xf0] sm:$0xff]
    %v1937 = vld [vmem:[#allocation4 + $0xf8] sm:$0xff]
    %v1970 = vunpack.c.l.b16 %v1906
    %v1971 = vunpack.c.h.b16 %v1906
    %v1972 = vunpack.c.l.b16 %v1907
    %v1973 = vunpack.c.h.b16 %v1907
    %v1974 = vunpack.c.l.b16 %v1908
    %v1975 = vunpack.c.h.b16 %v1908
    %v1976 = vunpack.c.l.b16 %v1909
    %v1977 = vunpack.c.h.b16 %v1909
    %v1978 = vunpack.c.l.b16 %v1910
    %v1979 = vunpack.c.h.b16 %v1910
    %v1980 = vunpack.c.l.b16 %v1911
    %v1981 = vunpack.c.h.b16 %v1911
    %v1982 = vunpack.c.l.b16 %v1912
    %v1983 = vunpack.c.h.b16 %v1912
    %v1984 = vunpack.c.l.b16 %v1913
    %v1985 = vunpack.c.h.b16 %v1913
    %v1986 = vunpack.c.l.b16 %v1914
    %v1987 = vunpack.c.h.b16 %v1914
    %v1988 = vunpack.c.l.b16 %v1915
    %v1989 = vunpack.c.h.b16 %v1915
    %v1990 = vunpack.c.l.b16 %v1916
    %v1991 = vunpack.c.h.b16 %v1916
    %v1992 = vunpack.c.l.b16 %v1917
    %v1993 = vunpack.c.h.b16 %v1917
    %v1994 = vunpack.c.l.b16 %v1918
    %v1995 = vunpack.c.h.b16 %v1918
    %v1996 = vunpack.c.l.b16 %v1919
    %v1997 = vunpack.c.h.b16 %v1919
    %v1998 = vunpack.c.l.b16 %v1920
    %v1999 = vunpack.c.h.b16 %v1920
    %v2000 = vunpack.c.l.b16 %v1921
    %v2001 = vunpack.c.h.b16 %v1921
    %v2002 = vunpack.c.l.b16 %v1922
    %v2003 = vunpack.c.h.b16 %v1922
    %v2004 = vunpack.c.l.b16 %v1923
    %v2005 = vunpack.c.h.b16 %v1923
    %v2006 = vunpack.c.l.b16 %v1924
    %v2007 = vunpack.c.h.b16 %v1924
    %v2008 = vunpack.c.l.b16 %v1925
    %v2009 = vunpack.c.h.b16 %v1925
    %v2010 = vunpack.c.l.b16 %v1926
    %v2011 = vunpack.c.h.b16 %v1926
    %v2012 = vunpack.c.l.b16 %v1927
    %v2013 = vunpack.c.h.b16 %v1927
    %v2014 = vunpack.c.l.b16 %v1928
    %v2015 = vunpack.c.h.b16 %v1928
    %v2016 = vunpack.c.l.b16 %v1929
    %v2017 = vunpack.c.h.b16 %v1929
    %v2018 = vunpack.c.l.b16 %v1930
    %v2019 = vunpack.c.h.b16 %v1930
    %v2020 = vunpack.c.l.b16 %v1931
    %v2021 = vunpack.c.h.b16 %v1931
    %v2022 = vunpack.c.l.b16 %v1932
    %v2023 = vunpack.c.h.b16 %v1932
    %v2024 = vunpack.c.l.b16 %v1933
    %v2025 = vunpack.c.h.b16 %v1933
    %v2026 = vunpack.c.l.b16 %v1934
    %v2027 = vunpack.c.h.b16 %v1934
    %v2028 = vunpack.c.l.b16 %v1935
    %v2029 = vunpack.c.h.b16 %v1935
    %v2030 = vunpack.c.l.b16 %v1936
    %v2031 = vunpack.c.h.b16 %v1936
    %v2032 = vunpack.c.l.b16 %v1937
    %v2033 = vunpack.c.h.b16 %v1937
    %v2034 = vpack.c.b16 %v1974, %v1970
    %v2035 = vpack.c.b16 %v1975, %v1971
    %v2036 = vpack.c.b16 %v1976, %v1972
    %v2037 = vpack.c.b16 %v1977, %v1973
    %v2038 = vpack.c.b16 %v1982, %v1978
    %v2039 = vpack.c.b16 %v1983, %v1979
    %v2040 = vpack.c.b16 %v1984, %v1980
    %v2041 = vpack.c.b16 %v1985, %v1981
    %v2042 = vpack.c.b16 %v1990, %v1986
    %v2043 = vpack.c.b16 %v1991, %v1987
    %v2044 = vpack.c.b16 %v1992, %v1988
    %v2045 = vpack.c.b16 %v1993, %v1989
    %v2046 = vpack.c.b16 %v1998, %v1994
    %v2047 = vpack.c.b16 %v1999, %v1995
    %v2048 = vpack.c.b16 %v2000, %v1996
    %v2049 = vpack.c.b16 %v2001, %v1997
    %v2050 = vpack.c.b16 %v2006, %v2002
    %v2051 = vpack.c.b16 %v2007, %v2003
    %v2052 = vpack.c.b16 %v2008, %v2004
    %v2053 = vpack.c.b16 %v2009, %v2005
    %v2054 = vpack.c.b16 %v2014, %v2010
    %v2055 = vpack.c.b16 %v2015, %v2011
    %v2056 = vpack.c.b16 %v2016, %v2012
    %v2057 = vpack.c.b16 %v2017, %v2013
    %v2058 = vpack.c.b16 %v2022, %v2018
    %v2059 = vpack.c.b16 %v2023, %v2019
    %v2060 = vpack.c.b16 %v2024, %v2020
    %v2061 = vpack.c.b16 %v2025, %v2021
    %v2062 = vpack.c.b16 %v2030, %v2026
    %v2063 = vpack.c.b16 %v2031, %v2027
    %v2064 = vpack.c.b16 %v2032, %v2028
    %v2065 = vpack.c.b16 %v2033, %v2029
    %2098 = vmatprep.subr.bf16.mxu0 %v2063
    %2099 = vmatpush1.bf16.msra.mxu0 %v2062
    %2100 = vmatprep.subr.bf16.mxu0 %v2059
    %2101 = vmatpush1.bf16.msra.mxu0 %v2058
    %2102 = vmatprep.subr.bf16.mxu0 %v2055
    %2103 = vmatpush1.bf16.msra.mxu0 %v2054
    %2104 = vmatprep.subr.bf16.mxu0 %v2051
    %2105 = vmatpush1.bf16.msra.mxu0 %v2050
    %2106 = vmatprep.subr.bf16.mxu0 %v2047
    %2107 = vmatpush1.bf16.msra.mxu0 %v2046
    %2108 = vmatprep.subr.bf16.mxu0 %v2043
    %2109 = vmatpush1.bf16.msra.mxu0 %v2042
    %2110 = vmatprep.subr.bf16.mxu0 %v2039
    %2111 = vmatpush1.bf16.msra.mxu0 %v2038
    %2112 = vmatprep.subr.bf16.mxu0 %v2035
    %2113 = vmatpush1.bf16.msra.mxu0 %v2034
    %2114 = vmatprep.subr.bf16.mxu0 0
    %2115 = vmatpush2.bf16.msra.mxu0 0
    %2116 = vmatprep.subr.bf16.mxu0 0
    %2117 = vmatpush2.bf16.msra.mxu0 0
    %2118 = vmatprep.subr.bf16.mxu0 0
    %2119 = vmatpush2.bf16.msra.mxu0 0
    %2120 = vmatprep.subr.bf16.mxu0 0
    %2121 = vmatpush2.bf16.msra.mxu0 0
    %2122 = vmatprep.subr.bf16.mxu0 0
    %2123 = vmatpush2.bf16.msra.mxu0 0
    %2124 = vmatprep.subr.bf16.mxu0 0
    %2125 = vmatpush2.bf16.msra.mxu0 0
    %2126 = vmatprep.subr.bf16.mxu0 0
    %2127 = vmatpush2.bf16.msra.mxu0 0
    %2128 = vmatprep.subr.bf16.mxu0 0
    %2129 = vmatpush2.bf16.msra.mxu0 0
    %2130 = vmatprep.mubr.bf16.mxu0 0
    %2131 = vmatmul.mubr.bf16.gmra.mxu0 %v1905
    %v2132 = vpop.f32.mrf.mxu0
    %v2133 = vadd.f32 0.0, %v2132
    %v2134 = vpop.f32.mrf.mxu0
    %v2135 = vadd.f32 0.0, %v2134
    %v2136 = vpop.f32.mrf.mxu0
    %v2137 = vpop.f32.mrf.mxu0
    %2138 = vdwg.mxu0
    %2139 = vmatprep.subr.bf16.mxu0 %v2065
    %2140 = vmatpush1.bf16.msra.mxu0 %v2064
    %2141 = vmatprep.subr.bf16.mxu0 %v2061
    %2142 = vmatpush1.bf16.msra.mxu0 %v2060
    %2143 = vmatprep.subr.bf16.mxu0 %v2057
    %2144 = vmatpush1.bf16.msra.mxu0 %v2056
    %2145 = vmatprep.subr.bf16.mxu0 %v2053
    %2146 = vmatpush1.bf16.msra.mxu0 %v2052
    %2147 = vmatprep.subr.bf16.mxu0 %v2049
    %2148 = vmatpush1.bf16.msra.mxu0 %v2048
    %2149 = vmatprep.subr.bf16.mxu0 %v2045
    %2150 = vmatpush1.bf16.msra.mxu0 %v2044
    %2151 = vmatprep.subr.bf16.mxu0 %v2041
    %2152 = vmatpush1.bf16.msra.mxu0 %v2040
    %2153 = vmatprep.subr.bf16.mxu0 %v2037
    %2154 = vmatpush1.bf16.msra.mxu0 %v2036
    %2155 = vmatprep.subr.bf16.mxu0 0
    %2156 = vmatpush2.bf16.msra.mxu0 0
    %2157 = vmatprep.subr.bf16.mxu0 0
    %2158 = vmatpush2.bf16.msra.mxu0 0
    %2159 = vmatprep.subr.bf16.mxu0 0
    %2160 = vmatpush2.bf16.msra.mxu0 0
    %2161 = vmatprep.subr.bf16.mxu0 0
    %2162 = vmatpush2.bf16.msra.mxu0 0
    %2163 = vmatprep.subr.bf16.mxu0 0
    %2164 = vmatpush2.bf16.msra.mxu0 0
    %2165 = vmatprep.subr.bf16.mxu0 0
    %2166 = vmatpush2.bf16.msra.mxu0 0
    %2167 = vmatprep.subr.bf16.mxu0 0
    %2168 = vmatpush2.bf16.msra.mxu0 0
    %2169 = vmatprep.subr.bf16.mxu0 0
    %2170 = vmatpush2.bf16.msra.mxu0 0
    %2171 = vmatprep.mubr.bf16.mxu0 0
    %2172 = vmatmul.mubr.bf16.gmra.mxu0 %v1905
    %v2173 = vpop.f32.mrf.mxu0
    %v2174 = vadd.f32 0.0, %v2173
    %v2175 = vpop.f32.mrf.mxu0
    %v2176 = vadd.f32 0.0, %v2175
    %v2177 = vpop.f32.mrf.mxu0
    %v2178 = vpop.f32.mrf.mxu0
    %2179 = vdwg.mxu0
    %v2180 = vadd.f32 %v1901, %v2133
    %v2181 = vadd.f32 %v1902, %v2135
    %v2182 = vadd.f32 %v1903, %v2174
    %v2183 = vadd.f32 %v1904, %v2176
    %v2184 = vxor.u32 %v2180, 2147483648
    %v2185 = vmul.f32 %v2184, 1.442695
    %v2186 = vpow.pop %v2185
    %v2187 = vadd.f32 %v2186, 1.0
    %v2188 = vrcp.pop %v2187
    %v2189 = vmul.f32 1.0, %v2188
    %v2190 = vxor.u32 %v2181, 2147483648
    %v2191 = vmul.f32 %v2190, 1.442695
    %v2192 = vpow.pop %v2191
    %v2193 = vadd.f32 %v2192, 1.0
    %v2194 = vrcp.pop %v2193
    %v2195 = vmul.f32 1.0, %v2194
    %v2196 = vtanh.pop %v2182
    %v2197 = vxor.u32 %v2183, 2147483648
    %v2198 = vmul.f32 %v2197, 1.442695
    %v2199 = vpow.pop %v2198
    %v2200 = vadd.f32 %v2199, 1.0
    %v2201 = vrcp.pop %v2200
    %v2202 = vmul.f32 1.0, %v2201
    %v2203 = vmul.f32 %v2195, %v1893
    %v2204 = vmul.f32 %v2189, %v2196
    %v2205 = vadd.f32 %v2203, %v2204
    %v2206 = vtanh.pop %v2205
    %v2207 = vmul.f32 %v2202, %v2206
    %s2208 = scalar_lea.vmem [#allocation3], 40
    %2209 = vst [vmem:[%s2208] sm:$0xff] %v2207
    %s2210 = smul.u32 6, 4
    %s2211 = smul.addr %s2210, 8
    %s2212 = scalar_lea.vmem [#allocation2], %s2211
    %v2213 = vld [vmem:[%s2212] sm:$0xff]
    %v2214 = vld [vmem:[%s2212 + $0x8] sm:$0xff]
    %v2215 = vld [vmem:[%s2212 + $0x10] sm:$0xff]
    %v2216 = vld [vmem:[%s2212 + $0x18] sm:$0xff]
    %v2217 = vpack.c.bf16 %v2207, %v2207
    %v2218 = vld [vmem:[#allocation4] sm:$0xff]
    %v2219 = vld [vmem:[#allocation4 + $0x8] sm:$0xff]
    %v2220 = vld [vmem:[#allocation4 + $0x10] sm:$0xff]
    %v2221 = vld [vmem:[#allocation4 + $0x18] sm:$0xff]
    %v2222 = vld [vmem:[#allocation4 + $0x20] sm:$0xff]
    %v2223 = vld [vmem:[#allocation4 + $0x28] sm:$0xff]
    %v2224 = vld [vmem:[#allocation4 + $0x30] sm:$0xff]
    %v2225 = vld [vmem:[#allocation4 + $0x38] sm:$0xff]
    %v2226 = vld [vmem:[#allocation4 + $0x40] sm:$0xff]
    %v2227 = vld [vmem:[#allocation4 + $0x48] sm:$0xff]
    %v2228 = vld [vmem:[#allocation4 + $0x50] sm:$0xff]
    %v2229 = vld [vmem:[#allocation4 + $0x58] sm:$0xff]
    %v2230 = vld [vmem:[#allocation4 + $0x60] sm:$0xff]
    %v2231 = vld [vmem:[#allocation4 + $0x68] sm:$0xff]
    %v2232 = vld [vmem:[#allocation4 + $0x70] sm:$0xff]
    %v2233 = vld [vmem:[#allocation4 + $0x78] sm:$0xff]
    %v2234 = vld [vmem:[#allocation4 + $0x80] sm:$0xff]
    %v2235 = vld [vmem:[#allocation4 + $0x88] sm:$0xff]
    %v2236 = vld [vmem:[#allocation4 + $0x90] sm:$0xff]
    %v2237 = vld [vmem:[#allocation4 + $0x98] sm:$0xff]
    %v2238 = vld [vmem:[#allocation4 + $0xa0] sm:$0xff]
    %v2239 = vld [vmem:[#allocation4 + $0xa8] sm:$0xff]
    %v2240 = vld [vmem:[#allocation4 + $0xb0] sm:$0xff]
    %v2241 = vld [vmem:[#allocation4 + $0xb8] sm:$0xff]
    %v2242 = vld [vmem:[#allocation4 + $0xc0] sm:$0xff]
    %v2243 = vld [vmem:[#allocation4 + $0xc8] sm:$0xff]
    %v2244 = vld [vmem:[#allocation4 + $0xd0] sm:$0xff]
    %v2245 = vld [vmem:[#allocation4 + $0xd8] sm:$0xff]
    %v2246 = vld [vmem:[#allocation4 + $0xe0] sm:$0xff]
    %v2247 = vld [vmem:[#allocation4 + $0xe8] sm:$0xff]
    %v2248 = vld [vmem:[#allocation4 + $0xf0] sm:$0xff]
    %v2249 = vld [vmem:[#allocation4 + $0xf8] sm:$0xff]
    %v2282 = vunpack.c.l.b16 %v2218
    %v2283 = vunpack.c.h.b16 %v2218
    %v2284 = vunpack.c.l.b16 %v2219
    %v2285 = vunpack.c.h.b16 %v2219
    %v2286 = vunpack.c.l.b16 %v2220
    %v2287 = vunpack.c.h.b16 %v2220
    %v2288 = vunpack.c.l.b16 %v2221
    %v2289 = vunpack.c.h.b16 %v2221
    %v2290 = vunpack.c.l.b16 %v2222
    %v2291 = vunpack.c.h.b16 %v2222
    %v2292 = vunpack.c.l.b16 %v2223
    %v2293 = vunpack.c.h.b16 %v2223
    %v2294 = vunpack.c.l.b16 %v2224
    %v2295 = vunpack.c.h.b16 %v2224
    %v2296 = vunpack.c.l.b16 %v2225
    %v2297 = vunpack.c.h.b16 %v2225
    %v2298 = vunpack.c.l.b16 %v2226
    %v2299 = vunpack.c.h.b16 %v2226
    %v2300 = vunpack.c.l.b16 %v2227
    %v2301 = vunpack.c.h.b16 %v2227
    %v2302 = vunpack.c.l.b16 %v2228
    %v2303 = vunpack.c.h.b16 %v2228
    %v2304 = vunpack.c.l.b16 %v2229
    %v2305 = vunpack.c.h.b16 %v2229
    %v2306 = vunpack.c.l.b16 %v2230
    %v2307 = vunpack.c.h.b16 %v2230
    %v2308 = vunpack.c.l.b16 %v2231
    %v2309 = vunpack.c.h.b16 %v2231
    %v2310 = vunpack.c.l.b16 %v2232
    %v2311 = vunpack.c.h.b16 %v2232
    %v2312 = vunpack.c.l.b16 %v2233
    %v2313 = vunpack.c.h.b16 %v2233
    %v2314 = vunpack.c.l.b16 %v2234
    %v2315 = vunpack.c.h.b16 %v2234
    %v2316 = vunpack.c.l.b16 %v2235
    %v2317 = vunpack.c.h.b16 %v2235
    %v2318 = vunpack.c.l.b16 %v2236
    %v2319 = vunpack.c.h.b16 %v2236
    %v2320 = vunpack.c.l.b16 %v2237
    %v2321 = vunpack.c.h.b16 %v2237
    %v2322 = vunpack.c.l.b16 %v2238
    %v2323 = vunpack.c.h.b16 %v2238
    %v2324 = vunpack.c.l.b16 %v2239
    %v2325 = vunpack.c.h.b16 %v2239
    %v2326 = vunpack.c.l.b16 %v2240
    %v2327 = vunpack.c.h.b16 %v2240
    %v2328 = vunpack.c.l.b16 %v2241
    %v2329 = vunpack.c.h.b16 %v2241
    %v2330 = vunpack.c.l.b16 %v2242
    %v2331 = vunpack.c.h.b16 %v2242
    %v2332 = vunpack.c.l.b16 %v2243
    %v2333 = vunpack.c.h.b16 %v2243
    %v2334 = vunpack.c.l.b16 %v2244
    %v2335 = vunpack.c.h.b16 %v2244
    %v2336 = vunpack.c.l.b16 %v2245
    %v2337 = vunpack.c.h.b16 %v2245
    %v2338 = vunpack.c.l.b16 %v2246
    %v2339 = vunpack.c.h.b16 %v2246
    %v2340 = vunpack.c.l.b16 %v2247
    %v2341 = vunpack.c.h.b16 %v2247
    %v2342 = vunpack.c.l.b16 %v2248
    %v2343 = vunpack.c.h.b16 %v2248
    %v2344 = vunpack.c.l.b16 %v2249
    %v2345 = vunpack.c.h.b16 %v2249
    %v2346 = vpack.c.b16 %v2286, %v2282
    %v2347 = vpack.c.b16 %v2287, %v2283
    %v2348 = vpack.c.b16 %v2288, %v2284
    %v2349 = vpack.c.b16 %v2289, %v2285
    %v2350 = vpack.c.b16 %v2294, %v2290
    %v2351 = vpack.c.b16 %v2295, %v2291
    %v2352 = vpack.c.b16 %v2296, %v2292
    %v2353 = vpack.c.b16 %v2297, %v2293
    %v2354 = vpack.c.b16 %v2302, %v2298
    %v2355 = vpack.c.b16 %v2303, %v2299
    %v2356 = vpack.c.b16 %v2304, %v2300
    %v2357 = vpack.c.b16 %v2305, %v2301
    %v2358 = vpack.c.b16 %v2310, %v2306
    %v2359 = vpack.c.b16 %v2311, %v2307
    %v2360 = vpack.c.b16 %v2312, %v2308
    %v2361 = vpack.c.b16 %v2313, %v2309
    %v2362 = vpack.c.b16 %v2318, %v2314
    %v2363 = vpack.c.b16 %v2319, %v2315
    %v2364 = vpack.c.b16 %v2320, %v2316
    %v2365 = vpack.c.b16 %v2321, %v2317
    %v2366 = vpack.c.b16 %v2326, %v2322
    %v2367 = vpack.c.b16 %v2327, %v2323
    %v2368 = vpack.c.b16 %v2328, %v2324
    %v2369 = vpack.c.b16 %v2329, %v2325
    %v2370 = vpack.c.b16 %v2334, %v2330
    %v2371 = vpack.c.b16 %v2335, %v2331
    %v2372 = vpack.c.b16 %v2336, %v2332
    %v2373 = vpack.c.b16 %v2337, %v2333
    %v2374 = vpack.c.b16 %v2342, %v2338
    %v2375 = vpack.c.b16 %v2343, %v2339
    %v2376 = vpack.c.b16 %v2344, %v2340
    %v2377 = vpack.c.b16 %v2345, %v2341
    %2410 = vmatprep.subr.bf16.mxu0 %v2375
    %2411 = vmatpush1.bf16.msra.mxu0 %v2374
    %2412 = vmatprep.subr.bf16.mxu0 %v2371
    %2413 = vmatpush1.bf16.msra.mxu0 %v2370
    %2414 = vmatprep.subr.bf16.mxu0 %v2367
    %2415 = vmatpush1.bf16.msra.mxu0 %v2366
    %2416 = vmatprep.subr.bf16.mxu0 %v2363
    %2417 = vmatpush1.bf16.msra.mxu0 %v2362
    %2418 = vmatprep.subr.bf16.mxu0 %v2359
    %2419 = vmatpush1.bf16.msra.mxu0 %v2358
    %2420 = vmatprep.subr.bf16.mxu0 %v2355
    %2421 = vmatpush1.bf16.msra.mxu0 %v2354
    %2422 = vmatprep.subr.bf16.mxu0 %v2351
    %2423 = vmatpush1.bf16.msra.mxu0 %v2350
    %2424 = vmatprep.subr.bf16.mxu0 %v2347
    %2425 = vmatpush1.bf16.msra.mxu0 %v2346
    %2426 = vmatprep.subr.bf16.mxu0 0
    %2427 = vmatpush2.bf16.msra.mxu0 0
    %2428 = vmatprep.subr.bf16.mxu0 0
    %2429 = vmatpush2.bf16.msra.mxu0 0
    %2430 = vmatprep.subr.bf16.mxu0 0
    %2431 = vmatpush2.bf16.msra.mxu0 0
    %2432 = vmatprep.subr.bf16.mxu0 0
    %2433 = vmatpush2.bf16.msra.mxu0 0
    %2434 = vmatprep.subr.bf16.mxu0 0
    %2435 = vmatpush2.bf16.msra.mxu0 0
    %2436 = vmatprep.subr.bf16.mxu0 0
    %2437 = vmatpush2.bf16.msra.mxu0 0
    %2438 = vmatprep.subr.bf16.mxu0 0
    %2439 = vmatpush2.bf16.msra.mxu0 0
    %2440 = vmatprep.subr.bf16.mxu0 0
    %2441 = vmatpush2.bf16.msra.mxu0 0
    %2442 = vmatprep.mubr.bf16.mxu0 0
    %2443 = vmatmul.mubr.bf16.gmra.mxu0 %v2217
    %v2444 = vpop.f32.mrf.mxu0
    %v2445 = vadd.f32 0.0, %v2444
    %v2446 = vpop.f32.mrf.mxu0
    %v2447 = vadd.f32 0.0, %v2446
    %v2448 = vpop.f32.mrf.mxu0
    %v2449 = vpop.f32.mrf.mxu0
    %2450 = vdwg.mxu0
    %2451 = vmatprep.subr.bf16.mxu0 %v2377
    %2452 = vmatpush1.bf16.msra.mxu0 %v2376
    %2453 = vmatprep.subr.bf16.mxu0 %v2373
    %2454 = vmatpush1.bf16.msra.mxu0 %v2372
    %2455 = vmatprep.subr.bf16.mxu0 %v2369
    %2456 = vmatpush1.bf16.msra.mxu0 %v2368
    %2457 = vmatprep.subr.bf16.mxu0 %v2365
    %2458 = vmatpush1.bf16.msra.mxu0 %v2364
    %2459 = vmatprep.subr.bf16.mxu0 %v2361
    %2460 = vmatpush1.bf16.msra.mxu0 %v2360
    %2461 = vmatprep.subr.bf16.mxu0 %v2357
    %2462 = vmatpush1.bf16.msra.mxu0 %v2356
    %2463 = vmatprep.subr.bf16.mxu0 %v2353
    %2464 = vmatpush1.bf16.msra.mxu0 %v2352
    %2465 = vmatprep.subr.bf16.mxu0 %v2349
    %2466 = vmatpush1.bf16.msra.mxu0 %v2348
    %2467 = vmatprep.subr.bf16.mxu0 0
    %2468 = vmatpush2.bf16.msra.mxu0 0
    %2469 = vmatprep.subr.bf16.mxu0 0
    %2470 = vmatpush2.bf16.msra.mxu0 0
    %2471 = vmatprep.subr.bf16.mxu0 0
    %2472 = vmatpush2.bf16.msra.mxu0 0
    %2473 = vmatprep.subr.bf16.mxu0 0
    %2474 = vmatpush2.bf16.msra.mxu0 0
    %2475 = vmatprep.subr.bf16.mxu0 0
    %2476 = vmatpush2.bf16.msra.mxu0 0
    %2477 = vmatprep.subr.bf16.mxu0 0
    %2478 = vmatpush2.bf16.msra.mxu0 0
    %2479 = vmatprep.subr.bf16.mxu0 0
    %2480 = vmatpush2.bf16.msra.mxu0 0
    %2481 = vmatprep.subr.bf16.mxu0 0
    %2482 = vmatpush2.bf16.msra.mxu0 0
    %2483 = vmatprep.mubr.bf16.mxu0 0
    %2484 = vmatmul.mubr.bf16.gmra.mxu0 %v2217
    %v2485 = vpop.f32.mrf.mxu0
    %v2486 = vadd.f32 0.0, %v2485
    %v2487 = vpop.f32.mrf.mxu0
    %v2488 = vadd.f32 0.0, %v2487
    %v2489 = vpop.f32.mrf.mxu0
    %v2490 = vpop.f32.mrf.mxu0
    %2491 = vdwg.mxu0
    %v2492 = vadd.f32 %v2213, %v2445
    %v2493 = vadd.f32 %v2214, %v2447
    %v2494 = vadd.f32 %v2215, %v2486
    %v2495 = vadd.f32 %v2216, %v2488
    %v2496 = vxor.u32 %v2492, 2147483648
    %v2497 = vmul.f32 %v2496, 1.442695
    %v2498 = vpow.pop %v2497
    %v2499 = vadd.f32 %v2498, 1.0
    %v2500 = vrcp.pop %v2499
    %v2501 = vmul.f32 1.0, %v2500
    %v2502 = vxor.u32 %v2493, 2147483648
    %v2503 = vmul.f32 %v2502, 1.442695
    %v2504 = vpow.pop %v2503
    %v2505 = vadd.f32 %v2504, 1.0
    %v2506 = vrcp.pop %v2505
    %v2507 = vmul.f32 1.0, %v2506
    %v2508 = vtanh.pop %v2494
    %v2509 = vxor.u32 %v2495, 2147483648
    %v2510 = vmul.f32 %v2509, 1.442695
    %v2511 = vpow.pop %v2510
    %v2512 = vadd.f32 %v2511, 1.0
    %v2513 = vrcp.pop %v2512
    %v2514 = vmul.f32 1.0, %v2513
    %v2515 = vmul.f32 %v2507, %v2205
    %v2516 = vmul.f32 %v2501, %v2508
    %v2517 = vadd.f32 %v2515, %v2516
    %v2518 = vtanh.pop %v2517
    %v2519 = vmul.f32 %v2514, %v2518
    %s2520 = scalar_lea.vmem [#allocation3], 48
    %2521 = vst [vmem:[%s2520] sm:$0xff] %v2519
    %s2522 = smul.u32 7, 4
    %s2523 = smul.addr %s2522, 8
    %s2524 = scalar_lea.vmem [#allocation2], %s2523
    %v2525 = vld [vmem:[%s2524] sm:$0xff]
    %v2526 = vld [vmem:[%s2524 + $0x8] sm:$0xff]
    %v2527 = vld [vmem:[%s2524 + $0x10] sm:$0xff]
    %v2528 = vld [vmem:[%s2524 + $0x18] sm:$0xff]
    %v2529 = vpack.c.bf16 %v2519, %v2519
    %v2530 = vld [vmem:[#allocation4] sm:$0xff]
    %v2531 = vld [vmem:[#allocation4 + $0x8] sm:$0xff]
    %v2532 = vld [vmem:[#allocation4 + $0x10] sm:$0xff]
    %v2533 = vld [vmem:[#allocation4 + $0x18] sm:$0xff]
    %v2534 = vld [vmem:[#allocation4 + $0x20] sm:$0xff]
    %v2535 = vld [vmem:[#allocation4 + $0x28] sm:$0xff]
    %v2536 = vld [vmem:[#allocation4 + $0x30] sm:$0xff]
    %v2537 = vld [vmem:[#allocation4 + $0x38] sm:$0xff]
    %v2538 = vld [vmem:[#allocation4 + $0x40] sm:$0xff]
    %v2539 = vld [vmem:[#allocation4 + $0x48] sm:$0xff]
    %v2540 = vld [vmem:[#allocation4 + $0x50] sm:$0xff]
    %v2541 = vld [vmem:[#allocation4 + $0x58] sm:$0xff]
    %v2542 = vld [vmem:[#allocation4 + $0x60] sm:$0xff]
    %v2543 = vld [vmem:[#allocation4 + $0x68] sm:$0xff]
    %v2544 = vld [vmem:[#allocation4 + $0x70] sm:$0xff]
    %v2545 = vld [vmem:[#allocation4 + $0x78] sm:$0xff]
    %v2546 = vld [vmem:[#allocation4 + $0x80] sm:$0xff]
    %v2547 = vld [vmem:[#allocation4 + $0x88] sm:$0xff]
    %v2548 = vld [vmem:[#allocation4 + $0x90] sm:$0xff]
    %v2549 = vld [vmem:[#allocation4 + $0x98] sm:$0xff]
    %v2550 = vld [vmem:[#allocation4 + $0xa0] sm:$0xff]
    %v2551 = vld [vmem:[#allocation4 + $0xa8] sm:$0xff]
    %v2552 = vld [vmem:[#allocation4 + $0xb0] sm:$0xff]
    %v2553 = vld [vmem:[#allocation4 + $0xb8] sm:$0xff]
    %v2554 = vld [vmem:[#allocation4 + $0xc0] sm:$0xff]
    %v2555 = vld [vmem:[#allocation4 + $0xc8] sm:$0xff]
    %v2556 = vld [vmem:[#allocation4 + $0xd0] sm:$0xff]
    %v2557 = vld [vmem:[#allocation4 + $0xd8] sm:$0xff]
    %v2558 = vld [vmem:[#allocation4 + $0xe0] sm:$0xff]
    %v2559 = vld [vmem:[#allocation4 + $0xe8] sm:$0xff]
    %v2560 = vld [vmem:[#allocation4 + $0xf0] sm:$0xff]
    %v2561 = vld [vmem:[#allocation4 + $0xf8] sm:$0xff]
    %v2594 = vunpack.c.l.b16 %v2530
    %v2595 = vunpack.c.h.b16 %v2530
    %v2596 = vunpack.c.l.b16 %v2531
    %v2597 = vunpack.c.h.b16 %v2531
    %v2598 = vunpack.c.l.b16 %v2532
    %v2599 = vunpack.c.h.b16 %v2532
    %v2600 = vunpack.c.l.b16 %v2533
    %v2601 = vunpack.c.h.b16 %v2533
    %v2602 = vunpack.c.l.b16 %v2534
    %v2603 = vunpack.c.h.b16 %v2534
    %v2604 = vunpack.c.l.b16 %v2535
    %v2605 = vunpack.c.h.b16 %v2535
    %v2606 = vunpack.c.l.b16 %v2536
    %v2607 = vunpack.c.h.b16 %v2536
    %v2608 = vunpack.c.l.b16 %v2537
    %v2609 = vunpack.c.h.b16 %v2537
    %v2610 = vunpack.c.l.b16 %v2538
    %v2611 = vunpack.c.h.b16 %v2538
    %v2612 = vunpack.c.l.b16 %v2539
    %v2613 = vunpack.c.h.b16 %v2539
    %v2614 = vunpack.c.l.b16 %v2540
    %v2615 = vunpack.c.h.b16 %v2540
    %v2616 = vunpack.c.l.b16 %v2541
    %v2617 = vunpack.c.h.b16 %v2541
    %v2618 = vunpack.c.l.b16 %v2542
    %v2619 = vunpack.c.h.b16 %v2542
    %v2620 = vunpack.c.l.b16 %v2543
    %v2621 = vunpack.c.h.b16 %v2543
    %v2622 = vunpack.c.l.b16 %v2544
    %v2623 = vunpack.c.h.b16 %v2544
    %v2624 = vunpack.c.l.b16 %v2545
    %v2625 = vunpack.c.h.b16 %v2545
    %v2626 = vunpack.c.l.b16 %v2546
    %v2627 = vunpack.c.h.b16 %v2546
    %v2628 = vunpack.c.l.b16 %v2547
    %v2629 = vunpack.c.h.b16 %v2547
    %v2630 = vunpack.c.l.b16 %v2548
    %v2631 = vunpack.c.h.b16 %v2548
    %v2632 = vunpack.c.l.b16 %v2549
    %v2633 = vunpack.c.h.b16 %v2549
    %v2634 = vunpack.c.l.b16 %v2550
    %v2635 = vunpack.c.h.b16 %v2550
    %v2636 = vunpack.c.l.b16 %v2551
    %v2637 = vunpack.c.h.b16 %v2551
    %v2638 = vunpack.c.l.b16 %v2552
    %v2639 = vunpack.c.h.b16 %v2552
    %v2640 = vunpack.c.l.b16 %v2553
    %v2641 = vunpack.c.h.b16 %v2553
    %v2642 = vunpack.c.l.b16 %v2554
    %v2643 = vunpack.c.h.b16 %v2554
    %v2644 = vunpack.c.l.b16 %v2555
    %v2645 = vunpack.c.h.b16 %v2555
    %v2646 = vunpack.c.l.b16 %v2556
    %v2647 = vunpack.c.h.b16 %v2556
    %v2648 = vunpack.c.l.b16 %v2557
    %v2649 = vunpack.c.h.b16 %v2557
    %v2650 = vunpack.c.l.b16 %v2558
    %v2651 = vunpack.c.h.b16 %v2558
    %v2652 = vunpack.c.l.b16 %v2559
    %v2653 = vunpack.c.h.b16 %v2559
    %v2654 = vunpack.c.l.b16 %v2560
    %v2655 = vunpack.c.h.b16 %v2560
    %v2656 = vunpack.c.l.b16 %v2561
    %v2657 = vunpack.c.h.b16 %v2561
    %v2658 = vpack.c.b16 %v2598, %v2594
    %v2659 = vpack.c.b16 %v2599, %v2595
    %v2660 = vpack.c.b16 %v2600, %v2596
    %v2661 = vpack.c.b16 %v2601, %v2597
    %v2662 = vpack.c.b16 %v2606, %v2602
    %v2663 = vpack.c.b16 %v2607, %v2603
    %v2664 = vpack.c.b16 %v2608, %v2604
    %v2665 = vpack.c.b16 %v2609, %v2605
    %v2666 = vpack.c.b16 %v2614, %v2610
    %v2667 = vpack.c.b16 %v2615, %v2611
    %v2668 = vpack.c.b16 %v2616, %v2612
    %v2669 = vpack.c.b16 %v2617, %v2613
    %v2670 = vpack.c.b16 %v2622, %v2618
    %v2671 = vpack.c.b16 %v2623, %v2619
    %v2672 = vpack.c.b16 %v2624, %v2620
    %v2673 = vpack.c.b16 %v2625, %v2621
    %v2674 = vpack.c.b16 %v2630, %v2626
    %v2675 = vpack.c.b16 %v2631, %v2627
    %v2676 = vpack.c.b16 %v2632, %v2628
    %v2677 = vpack.c.b16 %v2633, %v2629
    %v2678 = vpack.c.b16 %v2638, %v2634
    %v2679 = vpack.c.b16 %v2639, %v2635
    %v2680 = vpack.c.b16 %v2640, %v2636
    %v2681 = vpack.c.b16 %v2641, %v2637
    %v2682 = vpack.c.b16 %v2646, %v2642
    %v2683 = vpack.c.b16 %v2647, %v2643
    %v2684 = vpack.c.b16 %v2648, %v2644
    %v2685 = vpack.c.b16 %v2649, %v2645
    %v2686 = vpack.c.b16 %v2654, %v2650
    %v2687 = vpack.c.b16 %v2655, %v2651
    %v2688 = vpack.c.b16 %v2656, %v2652
    %v2689 = vpack.c.b16 %v2657, %v2653
    %2722 = vmatprep.subr.bf16.mxu0 %v2687
    %2723 = vmatpush1.bf16.msra.mxu0 %v2686
    %2724 = vmatprep.subr.bf16.mxu0 %v2683
    %2725 = vmatpush1.bf16.msra.mxu0 %v2682
    %2726 = vmatprep.subr.bf16.mxu0 %v2679
    %2727 = vmatpush1.bf16.msra.mxu0 %v2678
    %2728 = vmatprep.subr.bf16.mxu0 %v2675
    %2729 = vmatpush1.bf16.msra.mxu0 %v2674
    %2730 = vmatprep.subr.bf16.mxu0 %v2671
    %2731 = vmatpush1.bf16.msra.mxu0 %v2670
    %2732 = vmatprep.subr.bf16.mxu0 %v2667
    %2733 = vmatpush1.bf16.msra.mxu0 %v2666
    %2734 = vmatprep.subr.bf16.mxu0 %v2663
    %2735 = vmatpush1.bf16.msra.mxu0 %v2662
    %2736 = vmatprep.subr.bf16.mxu0 %v2659
    %2737 = vmatpush1.bf16.msra.mxu0 %v2658
    %2738 = vmatprep.subr.bf16.mxu0 0
    %2739 = vmatpush2.bf16.msra.mxu0 0
    %2740 = vmatprep.subr.bf16.mxu0 0
    %2741 = vmatpush2.bf16.msra.mxu0 0
    %2742 = vmatprep.subr.bf16.mxu0 0
    %2743 = vmatpush2.bf16.msra.mxu0 0
    %2744 = vmatprep.subr.bf16.mxu0 0
    %2745 = vmatpush2.bf16.msra.mxu0 0
    %2746 = vmatprep.subr.bf16.mxu0 0
    %2747 = vmatpush2.bf16.msra.mxu0 0
    %2748 = vmatprep.subr.bf16.mxu0 0
    %2749 = vmatpush2.bf16.msra.mxu0 0
    %2750 = vmatprep.subr.bf16.mxu0 0
    %2751 = vmatpush2.bf16.msra.mxu0 0
    %2752 = vmatprep.subr.bf16.mxu0 0
    %2753 = vmatpush2.bf16.msra.mxu0 0
    %2754 = vmatprep.mubr.bf16.mxu0 0
    %2755 = vmatmul.mubr.bf16.gmra.mxu0 %v2529
    %v2756 = vpop.f32.mrf.mxu0
    %v2757 = vadd.f32 0.0, %v2756
    %v2758 = vpop.f32.mrf.mxu0
    %v2759 = vadd.f32 0.0, %v2758
    %v2760 = vpop.f32.mrf.mxu0
    %v2761 = vpop.f32.mrf.mxu0
    %2762 = vdwg.mxu0
    %2763 = vmatprep.subr.bf16.mxu0 %v2689
    %2764 = vmatpush1.bf16.msra.mxu0 %v2688
    %2765 = vmatprep.subr.bf16.mxu0 %v2685
    %2766 = vmatpush1.bf16.msra.mxu0 %v2684
    %2767 = vmatprep.subr.bf16.mxu0 %v2681
    %2768 = vmatpush1.bf16.msra.mxu0 %v2680
    %2769 = vmatprep.subr.bf16.mxu0 %v2677
    %2770 = vmatpush1.bf16.msra.mxu0 %v2676
    %2771 = vmatprep.subr.bf16.mxu0 %v2673
    %2772 = vmatpush1.bf16.msra.mxu0 %v2672
    %2773 = vmatprep.subr.bf16.mxu0 %v2669
    %2774 = vmatpush1.bf16.msra.mxu0 %v2668
    %2775 = vmatprep.subr.bf16.mxu0 %v2665
    %2776 = vmatpush1.bf16.msra.mxu0 %v2664
    %2777 = vmatprep.subr.bf16.mxu0 %v2661
    %2778 = vmatpush1.bf16.msra.mxu0 %v2660
    %2779 = vmatprep.subr.bf16.mxu0 0
    %2780 = vmatpush2.bf16.msra.mxu0 0
    %2781 = vmatprep.subr.bf16.mxu0 0
    %2782 = vmatpush2.bf16.msra.mxu0 0
    %2783 = vmatprep.subr.bf16.mxu0 0
    %2784 = vmatpush2.bf16.msra.mxu0 0
    %2785 = vmatprep.subr.bf16.mxu0 0
    %2786 = vmatpush2.bf16.msra.mxu0 0
    %2787 = vmatprep.subr.bf16.mxu0 0
    %2788 = vmatpush2.bf16.msra.mxu0 0
    %2789 = vmatprep.subr.bf16.mxu0 0
    %2790 = vmatpush2.bf16.msra.mxu0 0
    %2791 = vmatprep.subr.bf16.mxu0 0
    %2792 = vmatpush2.bf16.msra.mxu0 0
    %2793 = vmatprep.subr.bf16.mxu0 0
    %2794 = vmatpush2.bf16.msra.mxu0 0
    %2795 = vmatprep.mubr.bf16.mxu0 0
    %2796 = vmatmul.mubr.bf16.gmra.mxu0 %v2529
    %v2797 = vpop.f32.mrf.mxu0
    %v2798 = vadd.f32 0.0, %v2797
    %v2799 = vpop.f32.mrf.mxu0
    %v2800 = vadd.f32 0.0, %v2799
    %v2801 = vpop.f32.mrf.mxu0
    %v2802 = vpop.f32.mrf.mxu0
    %2803 = vdwg.mxu0
    %v2804 = vadd.f32 %v2525, %v2757
    %v2805 = vadd.f32 %v2526, %v2759
    %v2806 = vadd.f32 %v2527, %v2798
    %v2807 = vadd.f32 %v2528, %v2800
    %v2808 = vxor.u32 %v2804, 2147483648
    %v2809 = vmul.f32 %v2808, 1.442695
    %v2810 = vpow.pop %v2809
    %v2811 = vadd.f32 %v2810, 1.0
    %v2812 = vrcp.pop %v2811
    %v2813 = vmul.f32 1.0, %v2812
    %v2814 = vxor.u32 %v2805, 2147483648
    %v2815 = vmul.f32 %v2814, 1.442695
    %v2816 = vpow.pop %v2815
    %v2817 = vadd.f32 %v2816, 1.0
    %v2818 = vrcp.pop %v2817
    %v2819 = vmul.f32 1.0, %v2818
    %v2820 = vtanh.pop %v2806
    %v2821 = vxor.u32 %v2807, 2147483648
    %v2822 = vmul.f32 %v2821, 1.442695
    %v2823 = vpow.pop %v2822
    %v2824 = vadd.f32 %v2823, 1.0
    %v2825 = vrcp.pop %v2824
    %v2826 = vmul.f32 1.0, %v2825
    %v2827 = vmul.f32 %v2819, %v2517
    %v2828 = vmul.f32 %v2813, %v2820
    %v2829 = vadd.f32 %v2827, %v2828
    %v2830 = vtanh.pop %v2829
    %v2831 = vmul.f32 %v2826, %v2830
    %s2832 = scalar_lea.vmem [#allocation3], 56
    %2833 = vst [vmem:[%s2832] sm:$0xff] %v2831
    %v2834 = vld [vmem:[#allocation3] sm:$0xff]
    %v2835 = vld [vmem:[#allocation3 + $0x8] sm:$0xff]
    %v2836 = vld [vmem:[#allocation3 + $0x10] sm:$0xff]
    %v2837 = vld [vmem:[#allocation3 + $0x18] sm:$0xff]
    %v2838 = vld [vmem:[#allocation3 + $0x20] sm:$0xff]
    %v2839 = vld [vmem:[#allocation3 + $0x28] sm:$0xff]
    %v2840 = vld [vmem:[#allocation3 + $0x30] sm:$0xff]
    %v2841 = vld [vmem:[#allocation3 + $0x38] sm:$0xff]
    %v2842 = vpack.c.bf16 %v2835, %v2834
    %v2843 = vpack.c.bf16 %v2837, %v2836
    %v2844 = vpack.c.bf16 %v2839, %v2838
    %v2845 = vpack.c.bf16 %v2841, %v2840
    %v2846 = vld [vmem:[#allocation6] sm:$0xff]
    %v2847 = vld [vmem:[#allocation6 + $0x8] sm:$0xff]
    %v2848 = vld [vmem:[#allocation6 + $0x10] sm:$0xff]
    %v2849 = vld [vmem:[#allocation6 + $0x18] sm:$0xff]
    %v2850 = vld [vmem:[#allocation6 + $0x20] sm:$0xff]
    %v2851 = vld [vmem:[#allocation6 + $0x28] sm:$0xff]
    %v2852 = vld [vmem:[#allocation6 + $0x30] sm:$0xff]
    %v2853 = vld [vmem:[#allocation6 + $0x38] sm:$0xff]
    %v2854 = vld [vmem:[#allocation6 + $0x40] sm:$0xff]
    %v2855 = vld [vmem:[#allocation6 + $0x48] sm:$0xff]
    %v2856 = vld [vmem:[#allocation6 + $0x50] sm:$0xff]
    %v2857 = vld [vmem:[#allocation6 + $0x58] sm:$0xff]
    %v2858 = vld [vmem:[#allocation6 + $0x60] sm:$0xff]
    %v2859 = vld [vmem:[#allocation6 + $0x68] sm:$0xff]
    %v2860 = vld [vmem:[#allocation6 + $0x70] sm:$0xff]
    %v2861 = vld [vmem:[#allocation6 + $0x78] sm:$0xff]
    %v2862 = vld [vmem:[#allocation6 + $0x80] sm:$0xff]
    %v2863 = vld [vmem:[#allocation6 + $0x88] sm:$0xff]
    %v2864 = vld [vmem:[#allocation6 + $0x90] sm:$0xff]
    %v2865 = vld [vmem:[#allocation6 + $0x98] sm:$0xff]
    %v2866 = vld [vmem:[#allocation6 + $0xa0] sm:$0xff]
    %v2867 = vld [vmem:[#allocation6 + $0xa8] sm:$0xff]
    %v2868 = vld [vmem:[#allocation6 + $0xb0] sm:$0xff]
    %v2869 = vld [vmem:[#allocation6 + $0xb8] sm:$0xff]
    %v2870 = vld [vmem:[#allocation6 + $0xc0] sm:$0xff]
    %v2871 = vld [vmem:[#allocation6 + $0xc8] sm:$0xff]
    %v2872 = vld [vmem:[#allocation6 + $0xd0] sm:$0xff]
    %v2873 = vld [vmem:[#allocation6 + $0xd8] sm:$0xff]
    %v2874 = vld [vmem:[#allocation6 + $0xe0] sm:$0xff]
    %v2875 = vld [vmem:[#allocation6 + $0xe8] sm:$0xff]
    %v2876 = vld [vmem:[#allocation6 + $0xf0] sm:$0xff]
    %v2877 = vld [vmem:[#allocation6 + $0xf8] sm:$0xff]
    %v2878 = vld [vmem:[%s6] sm:$0xf]
    %v2880 = vlaneseq
    %v2881 = vshrl.u32 %v2880, 7
    %v2882 = vsub.s32 0, %v2881
    %v2883 = vrot.slane %v2878, %v2882
    %v2884 = vlaneseq
    %v2885 = vshrl.u32 %v2884, 7
    %v2886 = vsub.s32 1, %v2885
    %v2887 = vrot.slane %v2878, %v2886
    %v2888 = vlaneseq
    %v2889 = vshrl.u32 %v2888, 7
    %v2890 = vsub.s32 2, %v2889
    %v2891 = vrot.slane %v2878, %v2890
    %v2892 = vlaneseq
    %v2893 = vshrl.u32 %v2892, 7
    %v2894 = vsub.s32 3, %v2893
    %v2895 = vrot.slane %v2878, %v2894
    %v2932 = vunpack.c.l.b16 %v2846
    %v2933 = vunpack.c.h.b16 %v2846
    %v2934 = vunpack.c.l.b16 %v2847
    %v2935 = vunpack.c.h.b16 %v2847
    %v2936 = vunpack.c.l.b16 %v2848
    %v2937 = vunpack.c.h.b16 %v2848
    %v2938 = vunpack.c.l.b16 %v2849
    %v2939 = vunpack.c.h.b16 %v2849
    %v2940 = vunpack.c.l.b16 %v2850
    %v2941 = vunpack.c.h.b16 %v2850
    %v2942 = vunpack.c.l.b16 %v2851
    %v2943 = vunpack.c.h.b16 %v2851
    %v2944 = vunpack.c.l.b16 %v2852
    %v2945 = vunpack.c.h.b16 %v2852
    %v2946 = vunpack.c.l.b16 %v2853
    %v2947 = vunpack.c.h.b16 %v2853
    %v2948 = vunpack.c.l.b16 %v2854
    %v2949 = vunpack.c.h.b16 %v2854
    %v2950 = vunpack.c.l.b16 %v2855
    %v2951 = vunpack.c.h.b16 %v2855
    %v2952 = vunpack.c.l.b16 %v2856
    %v2953 = vunpack.c.h.b16 %v2856
    %v2954 = vunpack.c.l.b16 %v2857
    %v2955 = vunpack.c.h.b16 %v2857
    %v2956 = vunpack.c.l.b16 %v2858
    %v2957 = vunpack.c.h.b16 %v2858
    %v2958 = vunpack.c.l.b16 %v2859
    %v2959 = vunpack.c.h.b16 %v2859
    %v2960 = vunpack.c.l.b16 %v2860
    %v2961 = vunpack.c.h.b16 %v2860
    %v2962 = vunpack.c.l.b16 %v2861
    %v2963 = vunpack.c.h.b16 %v2861
    %v2964 = vunpack.c.l.b16 %v2862
    %v2965 = vunpack.c.h.b16 %v2862
    %v2966 = vunpack.c.l.b16 %v2863
    %v2967 = vunpack.c.h.b16 %v2863
    %v2968 = vunpack.c.l.b16 %v2864
    %v2969 = vunpack.c.h.b16 %v2864
    %v2970 = vunpack.c.l.b16 %v2865
    %v2971 = vunpack.c.h.b16 %v2865
    %v2972 = vunpack.c.l.b16 %v2866
    %v2973 = vunpack.c.h.b16 %v2866
    %v2974 = vunpack.c.l.b16 %v2867
    %v2975 = vunpack.c.h.b16 %v2867
    %v2976 = vunpack.c.l.b16 %v2868
    %v2977 = vunpack.c.h.b16 %v2868
    %v2978 = vunpack.c.l.b16 %v2869
    %v2979 = vunpack.c.h.b16 %v2869
    %v2980 = vunpack.c.l.b16 %v2870
    %v2981 = vunpack.c.h.b16 %v2870
    %v2982 = vunpack.c.l.b16 %v2871
    %v2983 = vunpack.c.h.b16 %v2871
    %v2984 = vunpack.c.l.b16 %v2872
    %v2985 = vunpack.c.h.b16 %v2872
    %v2986 = vunpack.c.l.b16 %v2873
    %v2987 = vunpack.c.h.b16 %v2873
    %v2988 = vunpack.c.l.b16 %v2874
    %v2989 = vunpack.c.h.b16 %v2874
    %v2990 = vunpack.c.l.b16 %v2875
    %v2991 = vunpack.c.h.b16 %v2875
    %v2992 = vunpack.c.l.b16 %v2876
    %v2993 = vunpack.c.h.b16 %v2876
    %v2994 = vunpack.c.l.b16 %v2877
    %v2995 = vunpack.c.h.b16 %v2877
    %v2996 = vpack.c.b16 %v2936, %v2932
    %v2997 = vpack.c.b16 %v2937, %v2933
    %v2998 = vpack.c.b16 %v2938, %v2934
    %v2999 = vpack.c.b16 %v2939, %v2935
    %v3000 = vpack.c.b16 %v2944, %v2940
    %v3001 = vpack.c.b16 %v2945, %v2941
    %v3002 = vpack.c.b16 %v2946, %v2942
    %v3003 = vpack.c.b16 %v2947, %v2943
    %v3004 = vpack.c.b16 %v2952, %v2948
    %v3005 = vpack.c.b16 %v2953, %v2949
    %v3006 = vpack.c.b16 %v2954, %v2950
    %v3007 = vpack.c.b16 %v2955, %v2951
    %v3008 = vpack.c.b16 %v2960, %v2956
    %v3009 = vpack.c.b16 %v2961, %v2957
    %v3010 = vpack.c.b16 %v2962, %v2958
    %v3011 = vpack.c.b16 %v2963, %v2959
    %v3012 = vpack.c.b16 %v2968, %v2964
    %v3013 = vpack.c.b16 %v2969, %v2965
    %v3014 = vpack.c.b16 %v2970, %v2966
    %v3015 = vpack.c.b16 %v2971, %v2967
    %v3016 = vpack.c.b16 %v2976, %v2972
    %v3017 = vpack.c.b16 %v2977, %v2973
    %v3018 = vpack.c.b16 %v2978, %v2974
    %v3019 = vpack.c.b16 %v2979, %v2975
    %v3020 = vpack.c.b16 %v2984, %v2980
    %v3021 = vpack.c.b16 %v2985, %v2981
    %v3022 = vpack.c.b16 %v2986, %v2982
    %v3023 = vpack.c.b16 %v2987, %v2983
    %v3024 = vpack.c.b16 %v2992, %v2988
    %v3025 = vpack.c.b16 %v2993, %v2989
    %v3026 = vpack.c.b16 %v2994, %v2990
    %v3027 = vpack.c.b16 %v2995, %v2991
    %3060 = vmatprep.subr.bf16.mxu0 %v3025
    %3061 = vmatpush1.bf16.msra.mxu0 %v3024
    %3062 = vmatprep.subr.bf16.mxu0 %v3021
    %3063 = vmatpush1.bf16.msra.mxu0 %v3020
    %3064 = vmatprep.subr.bf16.mxu0 %v3017
    %3065 = vmatpush1.bf16.msra.mxu0 %v3016
    %3066 = vmatprep.subr.bf16.mxu0 %v3013
    %3067 = vmatpush1.bf16.msra.mxu0 %v3012
    %3068 = vmatprep.subr.bf16.mxu0 %v3009
    %3069 = vmatpush1.bf16.msra.mxu0 %v3008
    %3070 = vmatprep.subr.bf16.mxu0 %v3005
    %3071 = vmatpush1.bf16.msra.mxu0 %v3004
    %3072 = vmatprep.subr.bf16.mxu0 %v3001
    %3073 = vmatpush1.bf16.msra.mxu0 %v3000
    %3074 = vmatprep.subr.bf16.mxu0 %v2997
    %3075 = vmatpush1.bf16.msra.mxu0 %v2996
    %3076 = vmatprep.subr.bf16.mxu0 0
    %3077 = vmatpush2.bf16.msra.mxu0 0
    %3078 = vmatprep.subr.bf16.mxu0 0
    %3079 = vmatpush2.bf16.msra.mxu0 0
    %3080 = vmatprep.subr.bf16.mxu0 0
    %3081 = vmatpush2.bf16.msra.mxu0 0
    %3082 = vmatprep.subr.bf16.mxu0 0
    %3083 = vmatpush2.bf16.msra.mxu0 0
    %3084 = vmatprep.subr.bf16.mxu0 0
    %3085 = vmatpush2.bf16.msra.mxu0 0
    %3086 = vmatprep.subr.bf16.mxu0 0
    %3087 = vmatpush2.bf16.msra.mxu0 0
    %3088 = vmatprep.subr.bf16.mxu0 0
    %3089 = vmatpush2.bf16.msra.mxu0 0
    %3090 = vmatprep.subr.bf16.mxu0 0
    %3091 = vmatpush2.bf16.msra.mxu0 0
    %3092 = vmatprep.mubr.bf16.mxu0 0
    %3093 = vmatmul.mubr.bf16.gmra.mxu0 %v2842
    %v3094 = vpop.f32.mrf.mxu0
    %v3095 = vadd.f32 %v2883, %v3094
    %v3096 = vpop.f32.mrf.mxu0
    %v3097 = vadd.f32 %v2887, %v3096
    %v3098 = vpop.f32.mrf.mxu0
    %v3099 = vadd.f32 %v2883, %v3098
    %v3100 = vpop.f32.mrf.mxu0
    %v3101 = vadd.f32 %v2887, %v3100
    %3102 = vmatprep.mubr.bf16.mxu0 0
    %3103 = vmatmul.mubr.bf16.gmra.mxu0 %v2843
    %v3104 = vpop.f32.mrf.mxu0
    %v3105 = vadd.f32 %v2883, %v3104
    %v3106 = vpop.f32.mrf.mxu0
    %v3107 = vadd.f32 %v2887, %v3106
    %v3108 = vpop.f32.mrf.mxu0
    %v3109 = vadd.f32 %v2883, %v3108
    %v3110 = vpop.f32.mrf.mxu0
    %v3111 = vadd.f32 %v2887, %v3110
    %3112 = vmatprep.mubr.bf16.mxu0 0
    %3113 = vmatmul.mubr.bf16.gmra.mxu0 %v2844
    %v3114 = vpop.f32.mrf.mxu0
    %v3115 = vadd.f32 %v2883, %v3114
    %v3116 = vpop.f32.mrf.mxu0
    %v3117 = vadd.f32 %v2887, %v3116
    %v3118 = vpop.f32.mrf.mxu0
    %v3119 = vadd.f32 %v2883, %v3118
    %v3120 = vpop.f32.mrf.mxu0
    %v3121 = vadd.f32 %v2887, %v3120
    %3122 = vmatprep.mubr.bf16.mxu0 0
    %3123 = vmatmul.mubr.bf16.gmra.mxu0 %v2845
    %v3124 = vpop.f32.mrf.mxu0
    %v3125 = vadd.f32 %v2883, %v3124
    %v3126 = vpop.f32.mrf.mxu0
    %v3127 = vadd.f32 %v2887, %v3126
    %v3128 = vpop.f32.mrf.mxu0
    %v3129 = vadd.f32 %v2883, %v3128
    %v3130 = vpop.f32.mrf.mxu0
    %v3131 = vadd.f32 %v2887, %v3130
    %3132 = vdwg.mxu0
    %3133 = vmatprep.subr.bf16.mxu0 %v3027
    %3134 = vmatpush1.bf16.msra.mxu0 %v3026
    %3135 = vmatprep.subr.bf16.mxu0 %v3023
    %3136 = vmatpush1.bf16.msra.mxu0 %v3022
    %3137 = vmatprep.subr.bf16.mxu0 %v3019
    %3138 = vmatpush1.bf16.msra.mxu0 %v3018
    %3139 = vmatprep.subr.bf16.mxu0 %v3015
    %3140 = vmatpush1.bf16.msra.mxu0 %v3014
    %3141 = vmatprep.subr.bf16.mxu0 %v3011
    %3142 = vmatpush1.bf16.msra.mxu0 %v3010
    %3143 = vmatprep.subr.bf16.mxu0 %v3007
    %3144 = vmatpush1.bf16.msra.mxu0 %v3006
    %3145 = vmatprep.subr.bf16.mxu0 %v3003
    %3146 = vmatpush1.bf16.msra.mxu0 %v3002
    %3147 = vmatprep.subr.bf16.mxu0 %v2999
    %3148 = vmatpush1.bf16.msra.mxu0 %v2998
    %3149 = vmatprep.subr.bf16.mxu0 0
    %3150 = vmatpush2.bf16.msra.mxu0 0
    %3151 = vmatprep.subr.bf16.mxu0 0
    %3152 = vmatpush2.bf16.msra.mxu0 0
    %3153 = vmatprep.subr.bf16.mxu0 0
    %3154 = vmatpush2.bf16.msra.mxu0 0
    %3155 = vmatprep.subr.bf16.mxu0 0
    %3156 = vmatpush2.bf16.msra.mxu0 0
    %3157 = vmatprep.subr.bf16.mxu0 0
    %3158 = vmatpush2.bf16.msra.mxu0 0
    %3159 = vmatprep.subr.bf16.mxu0 0
    %3160 = vmatpush2.bf16.msra.mxu0 0
    %3161 = vmatprep.subr.bf16.mxu0 0
    %3162 = vmatpush2.bf16.msra.mxu0 0
    %3163 = vmatprep.subr.bf16.mxu0 0
    %3164 = vmatpush2.bf16.msra.mxu0 0
    %3165 = vmatprep.mubr.bf16.mxu0 0
    %3166 = vmatmul.mubr.bf16.gmra.mxu0 %v2842
    %v3167 = vpop.f32.mrf.mxu0
    %v3168 = vadd.f32 %v2891, %v3167
    %v3169 = vpop.f32.mrf.mxu0
    %v3170 = vadd.f32 %v2895, %v3169
    %v3171 = vpop.f32.mrf.mxu0
    %v3172 = vadd.f32 %v2891, %v3171
    %v3173 = vpop.f32.mrf.mxu0
    %v3174 = vadd.f32 %v2895, %v3173
    %3175 = vmatprep.mubr.bf16.mxu0 0
    %3176 = vmatmul.mubr.bf16.gmra.mxu0 %v2843
    %v3177 = vpop.f32.mrf.mxu0
    %v3178 = vadd.f32 %v2891, %v3177
    %v3179 = vpop.f32.mrf.mxu0
    %v3180 = vadd.f32 %v2895, %v3179
    %v3181 = vpop.f32.mrf.mxu0
    %v3182 = vadd.f32 %v2891, %v3181
    %v3183 = vpop.f32.mrf.mxu0
    %v3184 = vadd.f32 %v2895, %v3183
    %3185 = vmatprep.mubr.bf16.mxu0 0
    %3186 = vmatmul.mubr.bf16.gmra.mxu0 %v2844
    %v3187 = vpop.f32.mrf.mxu0
    %v3188 = vadd.f32 %v2891, %v3187
    %v3189 = vpop.f32.mrf.mxu0
    %v3190 = vadd.f32 %v2895, %v3189
    %v3191 = vpop.f32.mrf.mxu0
    %v3192 = vadd.f32 %v2891, %v3191
    %v3193 = vpop.f32.mrf.mxu0
    %v3194 = vadd.f32 %v2895, %v3193
    %3195 = vmatprep.mubr.bf16.mxu0 0
    %3196 = vmatmul.mubr.bf16.gmra.mxu0 %v2845
    %v3197 = vpop.f32.mrf.mxu0
    %v3198 = vadd.f32 %v2891, %v3197
    %v3199 = vpop.f32.mrf.mxu0
    %v3200 = vadd.f32 %v2895, %v3199
    %v3201 = vpop.f32.mrf.mxu0
    %v3202 = vadd.f32 %v2891, %v3201
    %v3203 = vpop.f32.mrf.mxu0
    %v3204 = vadd.f32 %v2895, %v3203
    %3205 = vdwg.mxu0
    %3206 = vst [vmem:[#allocation2] sm:$0xff] %v3095
    %3207 = vst [vmem:[#allocation2 + $0x8] sm:$0xff] %v3097
    %3208 = vst [vmem:[#allocation2 + $0x10] sm:$0xff] %v3168
    %3209 = vst [vmem:[#allocation2 + $0x18] sm:$0xff] %v3170
    %3210 = vst [vmem:[#allocation2 + $0x20] sm:$0xff] %v3099
    %3211 = vst [vmem:[#allocation2 + $0x28] sm:$0xff] %v3101
    %3212 = vst [vmem:[#allocation2 + $0x30] sm:$0xff] %v3172
    %3213 = vst [vmem:[#allocation2 + $0x38] sm:$0xff] %v3174
    %3214 = vst [vmem:[#allocation2 + $0x40] sm:$0xff] %v3105
    %3215 = vst [vmem:[#allocation2 + $0x48] sm:$0xff] %v3107
    %3216 = vst [vmem:[#allocation2 + $0x50] sm:$0xff] %v3178
    %3217 = vst [vmem:[#allocation2 + $0x58] sm:$0xff] %v3180
    %3218 = vst [vmem:[#allocation2 + $0x60] sm:$0xff] %v3109
    %3219 = vst [vmem:[#allocation2 + $0x68] sm:$0xff] %v3111
    %3220 = vst [vmem:[#allocation2 + $0x70] sm:$0xff] %v3182
    %3221 = vst [vmem:[#allocation2 + $0x78] sm:$0xff] %v3184
    %3222 = vst [vmem:[#allocation2 + $0x80] sm:$0xff] %v3115
    %3223 = vst [vmem:[#allocation2 + $0x88] sm:$0xff] %v3117
    %3224 = vst [vmem:[#allocation2 + $0x90] sm:$0xff] %v3188
    %3225 = vst [vmem:[#allocation2 + $0x98] sm:$0xff] %v3190
    %3226 = vst [vmem:[#allocation2 + $0xa0] sm:$0xff] %v3119
    %3227 = vst [vmem:[#allocation2 + $0xa8] sm:$0xff] %v3121
    %3228 = vst [vmem:[#allocation2 + $0xb0] sm:$0xff] %v3192
    %3229 = vst [vmem:[#allocation2 + $0xb8] sm:$0xff] %v3194
    %3230 = vst [vmem:[#allocation2 + $0xc0] sm:$0xff] %v3125
    %3231 = vst [vmem:[#allocation2 + $0xc8] sm:$0xff] %v3127
    %3232 = vst [vmem:[#allocation2 + $0xd0] sm:$0xff] %v3198
    %3233 = vst [vmem:[#allocation2 + $0xd8] sm:$0xff] %v3200
    %3234 = vst [vmem:[#allocation2 + $0xe0] sm:$0xff] %v3129
    %3235 = vst [vmem:[#allocation2 + $0xe8] sm:$0xff] %v3131
    %3236 = vst [vmem:[#allocation2 + $0xf0] sm:$0xff] %v3202
    %3237 = vst [vmem:[#allocation2 + $0xf8] sm:$0xff] %v3204
    %v3238 = vld [vmem:[%s342] sm:$0xff]
    %v3239 = vld [vmem:[%s342 + $0x8] sm:$0xff]
    %v3240 = vld [vmem:[%s342 + $0x10] sm:$0xff]
    %v3241 = vld [vmem:[%s342 + $0x18] sm:$0xff]
    %v3242 = vld [vmem:[#allocation8] sm:$0xff]
    %v3243 = vld [vmem:[#allocation8 + $0x8] sm:$0xff]
    %v3244 = vld [vmem:[#allocation8 + $0x10] sm:$0xff]
    %v3245 = vld [vmem:[#allocation8 + $0x18] sm:$0xff]
    %v3246 = vld [vmem:[#allocation8 + $0x20] sm:$0xff]
    %v3247 = vld [vmem:[#allocation8 + $0x28] sm:$0xff]
    %v3248 = vld [vmem:[#allocation8 + $0x30] sm:$0xff]
    %v3249 = vld [vmem:[#allocation8 + $0x38] sm:$0xff]
    %v3250 = vld [vmem:[#allocation8 + $0x40] sm:$0xff]
    %v3251 = vld [vmem:[#allocation8 + $0x48] sm:$0xff]
    %v3252 = vld [vmem:[#allocation8 + $0x50] sm:$0xff]
    %v3253 = vld [vmem:[#allocation8 + $0x58] sm:$0xff]
    %v3254 = vld [vmem:[#allocation8 + $0x60] sm:$0xff]
    %v3255 = vld [vmem:[#allocation8 + $0x68] sm:$0xff]
    %v3256 = vld [vmem:[#allocation8 + $0x70] sm:$0xff]
    %v3257 = vld [vmem:[#allocation8 + $0x78] sm:$0xff]
    %v3258 = vld [vmem:[#allocation8 + $0x80] sm:$0xff]
    %v3259 = vld [vmem:[#allocation8 + $0x88] sm:$0xff]
    %v3260 = vld [vmem:[#allocation8 + $0x90] sm:$0xff]
    %v3261 = vld [vmem:[#allocation8 + $0x98] sm:$0xff]
    %v3262 = vld [vmem:[#allocation8 + $0xa0] sm:$0xff]
    %v3263 = vld [vmem:[#allocation8 + $0xa8] sm:$0xff]
    %v3264 = vld [vmem:[#allocation8 + $0xb0] sm:$0xff]
    %v3265 = vld [vmem:[#allocation8 + $0xb8] sm:$0xff]
    %v3266 = vld [vmem:[#allocation8 + $0xc0] sm:$0xff]
    %v3267 = vld [vmem:[#allocation8 + $0xc8] sm:$0xff]
    %v3268 = vld [vmem:[#allocation8 + $0xd0] sm:$0xff]
    %v3269 = vld [vmem:[#allocation8 + $0xd8] sm:$0xff]
    %v3270 = vld [vmem:[#allocation8 + $0xe0] sm:$0xff]
    %v3271 = vld [vmem:[#allocation8 + $0xe8] sm:$0xff]
    %v3272 = vld [vmem:[#allocation8 + $0xf0] sm:$0xff]
    %v3273 = vld [vmem:[#allocation8 + $0xf8] sm:$0xff]
    %v3306 = vunpack.c.l.b16 %v3242
    %v3307 = vunpack.c.h.b16 %v3242
    %v3308 = vunpack.c.l.b16 %v3243
    %v3309 = vunpack.c.h.b16 %v3243
    %v3310 = vunpack.c.l.b16 %v3244
    %v3311 = vunpack.c.h.b16 %v3244
    %v3312 = vunpack.c.l.b16 %v3245
    %v3313 = vunpack.c.h.b16 %v3245
    %v3314 = vunpack.c.l.b16 %v3246
    %v3315 = vunpack.c.h.b16 %v3246
    %v3316 = vunpack.c.l.b16 %v3247
    %v3317 = vunpack.c.h.b16 %v3247
    %v3318 = vunpack.c.l.b16 %v3248
    %v3319 = vunpack.c.h.b16 %v3248
    %v3320 = vunpack.c.l.b16 %v3249
    %v3321 = vunpack.c.h.b16 %v3249
    %v3322 = vunpack.c.l.b16 %v3250
    %v3323 = vunpack.c.h.b16 %v3250
    %v3324 = vunpack.c.l.b16 %v3251
    %v3325 = vunpack.c.h.b16 %v3251
    %v3326 = vunpack.c.l.b16 %v3252
    %v3327 = vunpack.c.h.b16 %v3252
    %v3328 = vunpack.c.l.b16 %v3253
    %v3329 = vunpack.c.h.b16 %v3253
    %v3330 = vunpack.c.l.b16 %v3254
    %v3331 = vunpack.c.h.b16 %v3254
    %v3332 = vunpack.c.l.b16 %v3255
    %v3333 = vunpack.c.h.b16 %v3255
    %v3334 = vunpack.c.l.b16 %v3256
    %v3335 = vunpack.c.h.b16 %v3256
    %v3336 = vunpack.c.l.b16 %v3257
    %v3337 = vunpack.c.h.b16 %v3257
    %v3338 = vunpack.c.l.b16 %v3258
    %v3339 = vunpack.c.h.b16 %v3258
    %v3340 = vunpack.c.l.b16 %v3259
    %v3341 = vunpack.c.h.b16 %v3259
    %v3342 = vunpack.c.l.b16 %v3260
    %v3343 = vunpack.c.h.b16 %v3260
    %v3344 = vunpack.c.l.b16 %v3261
    %v3345 = vunpack.c.h.b16 %v3261
    %v3346 = vunpack.c.l.b16 %v3262
    %v3347 = vunpack.c.h.b16 %v3262
    %v3348 = vunpack.c.l.b16 %v3263
    %v3349 = vunpack.c.h.b16 %v3263
    %v3350 = vunpack.c.l.b16 %v3264
    %v3351 = vunpack.c.h.b16 %v3264
    %v3352 = vunpack.c.l.b16 %v3265
    %v3353 = vunpack.c.h.b16 %v3265
    %v3354 = vunpack.c.l.b16 %v3266
    %v3355 = vunpack.c.h.b16 %v3266
    %v3356 = vunpack.c.l.b16 %v3267
    %v3357 = vunpack.c.h.b16 %v3267
    %v3358 = vunpack.c.l.b16 %v3268
    %v3359 = vunpack.c.h.b16 %v3268
    %v3360 = vunpack.c.l.b16 %v3269
    %v3361 = vunpack.c.h.b16 %v3269
    %v3362 = vunpack.c.l.b16 %v3270
    %v3363 = vunpack.c.h.b16 %v3270
    %v3364 = vunpack.c.l.b16 %v3271
    %v3365 = vunpack.c.h.b16 %v3271
    %v3366 = vunpack.c.l.b16 %v3272
    %v3367 = vunpack.c.h.b16 %v3272
    %v3368 = vunpack.c.l.b16 %v3273
    %v3369 = vunpack.c.h.b16 %v3273
    %v3370 = vpack.c.b16 %v3310, %v3306
    %v3371 = vpack.c.b16 %v3311, %v3307
    %v3372 = vpack.c.b16 %v3312, %v3308
    %v3373 = vpack.c.b16 %v3313, %v3309
    %v3374 = vpack.c.b16 %v3318, %v3314
    %v3375 = vpack.c.b16 %v3319, %v3315
    %v3376 = vpack.c.b16 %v3320, %v3316
    %v3377 = vpack.c.b16 %v3321, %v3317
    %v3378 = vpack.c.b16 %v3326, %v3322
    %v3379 = vpack.c.b16 %v3327, %v3323
    %v3380 = vpack.c.b16 %v3328, %v3324
    %v3381 = vpack.c.b16 %v3329, %v3325
    %v3382 = vpack.c.b16 %v3334, %v3330
    %v3383 = vpack.c.b16 %v3335, %v3331
    %v3384 = vpack.c.b16 %v3336, %v3332
    %v3385 = vpack.c.b16 %v3337, %v3333
    %v3386 = vpack.c.b16 %v3342, %v3338
    %v3387 = vpack.c.b16 %v3343, %v3339
    %v3388 = vpack.c.b16 %v3344, %v3340
    %v3389 = vpack.c.b16 %v3345, %v3341
    %v3390 = vpack.c.b16 %v3350, %v3346
    %v3391 = vpack.c.b16 %v3351, %v3347
    %v3392 = vpack.c.b16 %v3352, %v3348
    %v3393 = vpack.c.b16 %v3353, %v3349
    %v3394 = vpack.c.b16 %v3358, %v3354
    %v3395 = vpack.c.b16 %v3359, %v3355
    %v3396 = vpack.c.b16 %v3360, %v3356
    %v3397 = vpack.c.b16 %v3361, %v3357
    %v3398 = vpack.c.b16 %v3366, %v3362
    %v3399 = vpack.c.b16 %v3367, %v3363
    %v3400 = vpack.c.b16 %v3368, %v3364
    %v3401 = vpack.c.b16 %v3369, %v3365
    %3434 = vmatprep.subr.bf16.mxu0 %v3399
    %3435 = vmatpush1.bf16.msra.mxu0 %v3398
    %3436 = vmatprep.subr.bf16.mxu0 %v3395
    %3437 = vmatpush1.bf16.msra.mxu0 %v3394
    %3438 = vmatprep.subr.bf16.mxu0 %v3391
    %3439 = vmatpush1.bf16.msra.mxu0 %v3390
    %3440 = vmatprep.subr.bf16.mxu0 %v3387
    %3441 = vmatpush1.bf16.msra.mxu0 %v3386
    %3442 = vmatprep.subr.bf16.mxu0 %v3383
    %3443 = vmatpush1.bf16.msra.mxu0 %v3382
    %3444 = vmatprep.subr.bf16.mxu0 %v3379
    %3445 = vmatpush1.bf16.msra.mxu0 %v3378
    %3446 = vmatprep.subr.bf16.mxu0 %v3375
    %3447 = vmatpush1.bf16.msra.mxu0 %v3374
    %3448 = vmatprep.subr.bf16.mxu0 %v3371
    %3449 = vmatpush1.bf16.msra.mxu0 %v3370
    %3450 = vmatprep.subr.bf16.mxu0 0
    %3451 = vmatpush2.bf16.msra.mxu0 0
    %3452 = vmatprep.subr.bf16.mxu0 0
    %3453 = vmatpush2.bf16.msra.mxu0 0
    %3454 = vmatprep.subr.bf16.mxu0 0
    %3455 = vmatpush2.bf16.msra.mxu0 0
    %3456 = vmatprep.subr.bf16.mxu0 0
    %3457 = vmatpush2.bf16.msra.mxu0 0
    %3458 = vmatprep.subr.bf16.mxu0 0
    %3459 = vmatpush2.bf16.msra.mxu0 0
    %3460 = vmatprep.subr.bf16.mxu0 0
    %3461 = vmatpush2.bf16.msra.mxu0 0
    %3462 = vmatprep.subr.bf16.mxu0 0
    %3463 = vmatpush2.bf16.msra.mxu0 0
    %3464 = vmatprep.subr.bf16.mxu0 0
    %3465 = vmatpush2.bf16.msra.mxu0 0
    %3466 = vmatprep.mubr.bf16.mxu0 0
    %3467 = vmatmul.mubr.bf16.gmra.mxu0 0
    %v3468 = vpop.f32.mrf.mxu0
    %v3469 = vadd.f32 0.0, %v3468
    %v3470 = vpop.f32.mrf.mxu0
    %v3471 = vadd.f32 0.0, %v3470
    %v3472 = vpop.f32.mrf.mxu0
    %v3473 = vpop.f32.mrf.mxu0
    %3474 = vdwg.mxu0
    %3475 = vmatprep.subr.bf16.mxu0 %v3401
    %3476 = vmatpush1.bf16.msra.mxu0 %v3400
    %3477 = vmatprep.subr.bf16.mxu0 %v3397
    %3478 = vmatpush1.bf16.msra.mxu0 %v3396
    %3479 = vmatprep.subr.bf16.mxu0 %v3393
    %3480 = vmatpush1.bf16.msra.mxu0 %v3392
    %3481 = vmatprep.subr.bf16.mxu0 %v3389
    %3482 = vmatpush1.bf16.msra.mxu0 %v3388
    %3483 = vmatprep.subr.bf16.mxu0 %v3385
    %3484 = vmatpush1.bf16.msra.mxu0 %v3384
    %3485 = vmatprep.subr.bf16.mxu0 %v3381
    %3486 = vmatpush1.bf16.msra.mxu0 %v3380
    %3487 = vmatprep.subr.bf16.mxu0 %v3377
    %3488 = vmatpush1.bf16.msra.mxu0 %v3376
    %3489 = vmatprep.subr.bf16.mxu0 %v3373
    %3490 = vmatpush1.bf16.msra.mxu0 %v3372
    %3491 = vmatprep.subr.bf16.mxu0 0
    %3492 = vmatpush2.bf16.msra.mxu0 0
    %3493 = vmatprep.subr.bf16.mxu0 0
    %3494 = vmatpush2.bf16.msra.mxu0 0
    %3495 = vmatprep.subr.bf16.mxu0 0
    %3496 = vmatpush2.bf16.msra.mxu0 0
    %3497 = vmatprep.subr.bf16.mxu0 0
    %3498 = vmatpush2.bf16.msra.mxu0 0
    %3499 = vmatprep.subr.bf16.mxu0 0
    %3500 = vmatpush2.bf16.msra.mxu0 0
    %3501 = vmatprep.subr.bf16.mxu0 0
    %3502 = vmatpush2.bf16.msra.mxu0 0
    %3503 = vmatprep.subr.bf16.mxu0 0
    %3504 = vmatpush2.bf16.msra.mxu0 0
    %3505 = vmatprep.subr.bf16.mxu0 0
    %3506 = vmatpush2.bf16.msra.mxu0 0
    %3507 = vmatprep.mubr.bf16.mxu0 0
    %3508 = vmatmul.mubr.bf16.gmra.mxu0 0
    %v3509 = vpop.f32.mrf.mxu0
    %v3510 = vadd.f32 0.0, %v3509
    %v3511 = vpop.f32.mrf.mxu0
    %v3512 = vadd.f32 0.0, %v3511
    %v3513 = vpop.f32.mrf.mxu0
    %v3514 = vpop.f32.mrf.mxu0
    %3515 = vdwg.mxu0
    %v3516 = vadd.f32 %v3238, %v3469
    %v3517 = vadd.f32 %v3239, %v3471
    %v3518 = vadd.f32 %v3240, %v3510
    %v3519 = vadd.f32 %v3241, %v3512
    %v3520 = vxor.u32 %v3516, 2147483648
    %v3521 = vmul.f32 %v3520, 1.442695
    %v3522 = vpow.pop %v3521
    %v3523 = vadd.f32 %v3522, 1.0
    %v3524 = vrcp.pop %v3523
    %v3525 = vmul.f32 1.0, %v3524
    %v3526 = vxor.u32 %v3517, 2147483648
    %v3527 = vmul.f32 %v3526, 1.442695
    %v3528 = vpow.pop %v3527
    %v3529 = vadd.f32 %v3528, 1.0
    %v3530 = vrcp.pop %v3529
    %v3531 = vmul.f32 1.0, %v3530
    %v3532 = vtanh.pop %v3518
    %v3533 = vxor.u32 %v3519, 2147483648
    %v3534 = vmul.f32 %v3533, 1.442695
    %v3535 = vpow.pop %v3534
    %v3536 = vadd.f32 %v3535, 1.0
    %v3537 = vrcp.pop %v3536
    %v3538 = vmul.f32 1.0, %v3537
    %v3539 = vmul.f32 %v3531, 0.0
    %v3540 = vmul.f32 %v3525, %v3532
    %v3541 = vadd.f32 %v3539, %v3540
    %v3542 = vtanh.pop %v3541
    %v3543 = vmul.f32 %v3538, %v3542
    %v3544 = vld [vmem:[%s652] sm:$0xff]
    %v3545 = vld [vmem:[%s652 + $0x8] sm:$0xff]
    %v3546 = vld [vmem:[%s652 + $0x10] sm:$0xff]
    %v3547 = vld [vmem:[%s652 + $0x18] sm:$0xff]
    %v3548 = vpack.c.bf16 %v3543, %v3543
    %3549 = vmatprep.subr.bf16.mxu0 %v3399
    %3550 = vmatpush1.bf16.msra.mxu0 %v3398
    %3551 = vmatprep.subr.bf16.mxu0 %v3395
    %3552 = vmatpush1.bf16.msra.mxu0 %v3394
    %3553 = vmatprep.subr.bf16.mxu0 %v3391
    %3554 = vmatpush1.bf16.msra.mxu0 %v3390
    %3555 = vmatprep.subr.bf16.mxu0 %v3387
    %3556 = vmatpush1.bf16.msra.mxu0 %v3386
    %3557 = vmatprep.subr.bf16.mxu0 %v3383
    %3558 = vmatpush1.bf16.msra.mxu0 %v3382
    %3559 = vmatprep.subr.bf16.mxu0 %v3379
    %3560 = vmatpush1.bf16.msra.mxu0 %v3378
    %3561 = vmatprep.subr.bf16.mxu0 %v3375
    %3562 = vmatpush1.bf16.msra.mxu0 %v3374
    %3563 = vmatprep.subr.bf16.mxu0 %v3371
    %3564 = vmatpush1.bf16.msra.mxu0 %v3370
    %3565 = vmatprep.subr.bf16.mxu0 0
    %3566 = vmatpush2.bf16.msra.mxu0 0
    %3567 = vmatprep.subr.bf16.mxu0 0
    %3568 = vmatpush2.bf16.msra.mxu0 0
    %3569 = vmatprep.subr.bf16.mxu0 0
    %3570 = vmatpush2.bf16.msra.mxu0 0
    %3571 = vmatprep.subr.bf16.mxu0 0
    %3572 = vmatpush2.bf16.msra.mxu0 0
    %3573 = vmatprep.subr.bf16.mxu0 0
    %3574 = vmatpush2.bf16.msra.mxu0 0
    %3575 = vmatprep.subr.bf16.mxu0 0
    %3576 = vmatpush2.bf16.msra.mxu0 0
    %3577 = vmatprep.subr.bf16.mxu0 0
    %3578 = vmatpush2.bf16.msra.mxu0 0
    %3579 = vmatprep.subr.bf16.mxu0 0
    %3580 = vmatpush2.bf16.msra.mxu0 0
    %3581 = vmatprep.mubr.bf16.mxu0 0
    %3582 = vmatmul.mubr.bf16.gmra.mxu0 %v3548
    %v3583 = vpop.f32.mrf.mxu0
    %v3584 = vadd.f32 0.0, %v3583
    %v3585 = vpop.f32.mrf.mxu0
    %v3586 = vadd.f32 0.0, %v3585
    %v3587 = vpop.f32.mrf.mxu0
    %v3588 = vpop.f32.mrf.mxu0
    %3589 = vdwg.mxu0
    %3590 = vmatprep.subr.bf16.mxu0 %v3401
    %3591 = vmatpush1.bf16.msra.mxu0 %v3400
    %3592 = vmatprep.subr.bf16.mxu0 %v3397
    %3593 = vmatpush1.bf16.msra.mxu0 %v3396
    %3594 = vmatprep.subr.bf16.mxu0 %v3393
    %3595 = vmatpush1.bf16.msra.mxu0 %v3392
    %3596 = vmatprep.subr.bf16.mxu0 %v3389
    %3597 = vmatpush1.bf16.msra.mxu0 %v3388
    %3598 = vmatprep.subr.bf16.mxu0 %v3385
    %3599 = vmatpush1.bf16.msra.mxu0 %v3384
    %3600 = vmatprep.subr.bf16.mxu0 %v3381
    %3601 = vmatpush1.bf16.msra.mxu0 %v3380
    %3602 = vmatprep.subr.bf16.mxu0 %v3377
    %3603 = vmatpush1.bf16.msra.mxu0 %v3376
    %3604 = vmatprep.subr.bf16.mxu0 %v3373
    %3605 = vmatpush1.bf16.msra.mxu0 %v3372
    %3606 = vmatprep.subr.bf16.mxu0 0
    %3607 = vmatpush2.bf16.msra.mxu0 0
    %3608 = vmatprep.subr.bf16.mxu0 0
    %3609 = vmatpush2.bf16.msra.mxu0 0
    %3610 = vmatprep.subr.bf16.mxu0 0
    %3611 = vmatpush2.bf16.msra.mxu0 0
    %3612 = vmatprep.subr.bf16.mxu0 0
    %3613 = vmatpush2.bf16.msra.mxu0 0
    %3614 = vmatprep.subr.bf16.mxu0 0
    %3615 = vmatpush2.bf16.msra.mxu0 0
    %3616 = vmatprep.subr.bf16.mxu0 0
    %3617 = vmatpush2.bf16.msra.mxu0 0
    %3618 = vmatprep.subr.bf16.mxu0 0
    %3619 = vmatpush2.bf16.msra.mxu0 0
    %3620 = vmatprep.subr.bf16.mxu0 0
    %3621 = vmatpush2.bf16.msra.mxu0 0
    %3622 = vmatprep.mubr.bf16.mxu0 0
    %3623 = vmatmul.mubr.bf16.gmra.mxu0 %v3548
    %v3624 = vpop.f32.mrf.mxu0
    %v3625 = vadd.f32 0.0, %v3624
    %v3626 = vpop.f32.mrf.mxu0
    %v3627 = vadd.f32 0.0, %v3626
    %v3628 = vpop.f32.mrf.mxu0
    %v3629 = vpop.f32.mrf.mxu0
    %3630 = vdwg.mxu0
    %v3631 = vadd.f32 %v3544, %v3584
    %v3632 = vadd.f32 %v3545, %v3586
    %v3633 = vadd.f32 %v3546, %v3625
    %v3634 = vadd.f32 %v3547, %v3627
    %v3635 = vxor.u32 %v3631, 2147483648
    %v3636 = vmul.f32 %v3635, 1.442695
    %v3637 = vpow.pop %v3636
    %v3638 = vadd.f32 %v3637, 1.0
    %v3639 = vrcp.pop %v3638
    %v3640 = vmul.f32 1.0, %v3639
    %v3641 = vxor.u32 %v3632, 2147483648
    %v3642 = vmul.f32 %v3641, 1.442695
    %v3643 = vpow.pop %v3642
    %v3644 = vadd.f32 %v3643, 1.0
    %v3645 = vrcp.pop %v3644
    %v3646 = vmul.f32 1.0, %v3645
    %v3647 = vtanh.pop %v3633
    %v3648 = vxor.u32 %v3634, 2147483648
    %v3649 = vmul.f32 %v3648, 1.442695
    %v3650 = vpow.pop %v3649
    %v3651 = vadd.f32 %v3650, 1.0
    %v3652 = vrcp.pop %v3651
    %v3653 = vmul.f32 1.0, %v3652
    %v3654 = vmul.f32 %v3646, %v3541
    %v3655 = vmul.f32 %v3640, %v3647
    %v3656 = vadd.f32 %v3654, %v3655
    %v3657 = vtanh.pop %v3656
    %v3658 = vmul.f32 %v3653, %v3657
    %v3659 = vld [vmem:[%s964] sm:$0xff]
    %v3660 = vld [vmem:[%s964 + $0x8] sm:$0xff]
    %v3661 = vld [vmem:[%s964 + $0x10] sm:$0xff]
    %v3662 = vld [vmem:[%s964 + $0x18] sm:$0xff]
    %v3663 = vpack.c.bf16 %v3658, %v3658
    %3664 = vmatprep.subr.bf16.mxu0 %v3399
    %3665 = vmatpush1.bf16.msra.mxu0 %v3398
    %3666 = vmatprep.subr.bf16.mxu0 %v3395
    %3667 = vmatpush1.bf16.msra.mxu0 %v3394
    %3668 = vmatprep.subr.bf16.mxu0 %v3391
    %3669 = vmatpush1.bf16.msra.mxu0 %v3390
    %3670 = vmatprep.subr.bf16.mxu0 %v3387
    %3671 = vmatpush1.bf16.msra.mxu0 %v3386
    %3672 = vmatprep.subr.bf16.mxu0 %v3383
    %3673 = vmatpush1.bf16.msra.mxu0 %v3382
    %3674 = vmatprep.subr.bf16.mxu0 %v3379
    %3675 = vmatpush1.bf16.msra.mxu0 %v3378
    %3676 = vmatprep.subr.bf16.mxu0 %v3375
    %3677 = vmatpush1.bf16.msra.mxu0 %v3374
    %3678 = vmatprep.subr.bf16.mxu0 %v3371
    %3679 = vmatpush1.bf16.msra.mxu0 %v3370
    %3680 = vmatprep.subr.bf16.mxu0 0
    %3681 = vmatpush2.bf16.msra.mxu0 0
    %3682 = vmatprep.subr.bf16.mxu0 0
    %3683 = vmatpush2.bf16.msra.mxu0 0
    %3684 = vmatprep.subr.bf16.mxu0 0
    %3685 = vmatpush2.bf16.msra.mxu0 0
    %3686 = vmatprep.subr.bf16.mxu0 0
    %3687 = vmatpush2.bf16.msra.mxu0 0
    %3688 = vmatprep.subr.bf16.mxu0 0
    %3689 = vmatpush2.bf16.msra.mxu0 0
    %3690 = vmatprep.subr.bf16.mxu0 0
    %3691 = vmatpush2.bf16.msra.mxu0 0
    %3692 = vmatprep.subr.bf16.mxu0 0
    %3693 = vmatpush2.bf16.msra.mxu0 0
    %3694 = vmatprep.subr.bf16.mxu0 0
    %3695 = vmatpush2.bf16.msra.mxu0 0
    %3696 = vmatprep.mubr.bf16.mxu0 0
    %3697 = vmatmul.mubr.bf16.gmra.mxu0 %v3663
    %v3698 = vpop.f32.mrf.mxu0
    %v3699 = vadd.f32 0.0, %v3698
    %v3700 = vpop.f32.mrf.mxu0
    %v3701 = vadd.f32 0.0, %v3700
    %v3702 = vpop.f32.mrf.mxu0
    %v3703 = vpop.f32.mrf.mxu0
    %3704 = vdwg.mxu0
    %3705 = vmatprep.subr.bf16.mxu0 %v3401
    %3706 = vmatpush1.bf16.msra.mxu0 %v3400
    %3707 = vmatprep.subr.bf16.mxu0 %v3397
    %3708 = vmatpush1.bf16.msra.mxu0 %v3396
    %3709 = vmatprep.subr.bf16.mxu0 %v3393
    %3710 = vmatpush1.bf16.msra.mxu0 %v3392
    %3711 = vmatprep.subr.bf16.mxu0 %v3389
    %3712 = vmatpush1.bf16.msra.mxu0 %v3388
    %3713 = vmatprep.subr.bf16.mxu0 %v3385
    %3714 = vmatpush1.bf16.msra.mxu0 %v3384
    %3715 = vmatprep.subr.bf16.mxu0 %v3381
    %3716 = vmatpush1.bf16.msra.mxu0 %v3380
    %3717 = vmatprep.subr.bf16.mxu0 %v3377
    %3718 = vmatpush1.bf16.msra.mxu0 %v3376
    %3719 = vmatprep.subr.bf16.mxu0 %v3373
    %3720 = vmatpush1.bf16.msra.mxu0 %v3372
    %3721 = vmatprep.subr.bf16.mxu0 0
    %3722 = vmatpush2.bf16.msra.mxu0 0
    %3723 = vmatprep.subr.bf16.mxu0 0
    %3724 = vmatpush2.bf16.msra.mxu0 0
    %3725 = vmatprep.subr.bf16.mxu0 0
    %3726 = vmatpush2.bf16.msra.mxu0 0
    %3727 = vmatprep.subr.bf16.mxu0 0
    %3728 = vmatpush2.bf16.msra.mxu0 0
    %3729 = vmatprep.subr.bf16.mxu0 0
    %3730 = vmatpush2.bf16.msra.mxu0 0
    %3731 = vmatprep.subr.bf16.mxu0 0
    %3732 = vmatpush2.bf16.msra.mxu0 0
    %3733 = vmatprep.subr.bf16.mxu0 0
    %3734 = vmatpush2.bf16.msra.mxu0 0
    %3735 = vmatprep.subr.bf16.mxu0 0
    %3736 = vmatpush2.bf16.msra.mxu0 0
    %3737 = vmatprep.mubr.bf16.mxu0 0
    %3738 = vmatmul.mubr.bf16.gmra.mxu0 %v3663
    %v3739 = vpop.f32.mrf.mxu0
    %v3740 = vadd.f32 0.0, %v3739
    %v3741 = vpop.f32.mrf.mxu0
    %v3742 = vadd.f32 0.0, %v3741
    %v3743 = vpop.f32.mrf.mxu0
    %v3744 = vpop.f32.mrf.mxu0
    %3745 = vdwg.mxu0
    %v3746 = vadd.f32 %v3659, %v3699
    %v3747 = vadd.f32 %v3660, %v3701
    %v3748 = vadd.f32 %v3661, %v3740
    %v3749 = vadd.f32 %v3662, %v3742
    %v3750 = vxor.u32 %v3746, 2147483648
    %v3751 = vmul.f32 %v3750, 1.442695
    %v3752 = vpow.pop %v3751
    %v3753 = vadd.f32 %v3752, 1.0
    %v3754 = vrcp.pop %v3753
    %v3755 = vmul.f32 1.0, %v3754
    %v3756 = vxor.u32 %v3747, 2147483648
    %v3757 = vmul.f32 %v3756, 1.442695
    %v3758 = vpow.pop %v3757
    %v3759 = vadd.f32 %v3758, 1.0
    %v3760 = vrcp.pop %v3759
    %v3761 = vmul.f32 1.0, %v3760
    %v3762 = vtanh.pop %v3748
    %v3763 = vxor.u32 %v3749, 2147483648
    %v3764 = vmul.f32 %v3763, 1.442695
    %v3765 = vpow.pop %v3764
    %v3766 = vadd.f32 %v3765, 1.0
    %v3767 = vrcp.pop %v3766
    %v3768 = vmul.f32 1.0, %v3767
    %v3769 = vmul.f32 %v3761, %v3656
    %v3770 = vmul.f32 %v3755, %v3762
    %v3771 = vadd.f32 %v3769, %v3770
    %v3772 = vtanh.pop %v3771
    %v3773 = vmul.f32 %v3768, %v3772
    %v3774 = vld [vmem:[%s1276] sm:$0xff]
    %v3775 = vld [vmem:[%s1276 + $0x8] sm:$0xff]
    %v3776 = vld [vmem:[%s1276 + $0x10] sm:$0xff]
    %v3777 = vld [vmem:[%s1276 + $0x18] sm:$0xff]
    %v3778 = vpack.c.bf16 %v3773, %v3773
    %3779 = vmatprep.subr.bf16.mxu0 %v3399
    %3780 = vmatpush1.bf16.msra.mxu0 %v3398
    %3781 = vmatprep.subr.bf16.mxu0 %v3395
    %3782 = vmatpush1.bf16.msra.mxu0 %v3394
    %3783 = vmatprep.subr.bf16.mxu0 %v3391
    %3784 = vmatpush1.bf16.msra.mxu0 %v3390
    %3785 = vmatprep.subr.bf16.mxu0 %v3387
    %3786 = vmatpush1.bf16.msra.mxu0 %v3386
    %3787 = vmatprep.subr.bf16.mxu0 %v3383
    %3788 = vmatpush1.bf16.msra.mxu0 %v3382
    %3789 = vmatprep.subr.bf16.mxu0 %v3379
    %3790 = vmatpush1.bf16.msra.mxu0 %v3378
    %3791 = vmatprep.subr.bf16.mxu0 %v3375
    %3792 = vmatpush1.bf16.msra.mxu0 %v3374
    %3793 = vmatprep.subr.bf16.mxu0 %v3371
    %3794 = vmatpush1.bf16.msra.mxu0 %v3370
    %3795 = vmatprep.subr.bf16.mxu0 0
    %3796 = vmatpush2.bf16.msra.mxu0 0
    %3797 = vmatprep.subr.bf16.mxu0 0
    %3798 = vmatpush2.bf16.msra.mxu0 0
    %3799 = vmatprep.subr.bf16.mxu0 0
    %3800 = vmatpush2.bf16.msra.mxu0 0
    %3801 = vmatprep.subr.bf16.mxu0 0
    %3802 = vmatpush2.bf16.msra.mxu0 0
    %3803 = vmatprep.subr.bf16.mxu0 0
    %3804 = vmatpush2.bf16.msra.mxu0 0
    %3805 = vmatprep.subr.bf16.mxu0 0
    %3806 = vmatpush2.bf16.msra.mxu0 0
    %3807 = vmatprep.subr.bf16.mxu0 0
    %3808 = vmatpush2.bf16.msra.mxu0 0
    %3809 = vmatprep.subr.bf16.mxu0 0
    %3810 = vmatpush2.bf16.msra.mxu0 0
    %3811 = vmatprep.mubr.bf16.mxu0 0
    %3812 = vmatmul.mubr.bf16.gmra.mxu0 %v3778
    %v3813 = vpop.f32.mrf.mxu0
    %v3814 = vadd.f32 0.0, %v3813
    %v3815 = vpop.f32.mrf.mxu0
    %v3816 = vadd.f32 0.0, %v3815
    %v3817 = vpop.f32.mrf.mxu0
    %v3818 = vpop.f32.mrf.mxu0
    %3819 = vdwg.mxu0
    %3820 = vmatprep.subr.bf16.mxu0 %v3401
    %3821 = vmatpush1.bf16.msra.mxu0 %v3400
    %3822 = vmatprep.subr.bf16.mxu0 %v3397
    %3823 = vmatpush1.bf16.msra.mxu0 %v3396
    %3824 = vmatprep.subr.bf16.mxu0 %v3393
    %3825 = vmatpush1.bf16.msra.mxu0 %v3392
    %3826 = vmatprep.subr.bf16.mxu0 %v3389
    %3827 = vmatpush1.bf16.msra.mxu0 %v3388
    %3828 = vmatprep.subr.bf16.mxu0 %v3385
    %3829 = vmatpush1.bf16.msra.mxu0 %v3384
    %3830 = vmatprep.subr.bf16.mxu0 %v3381
    %3831 = vmatpush1.bf16.msra.mxu0 %v3380
    %3832 = vmatprep.subr.bf16.mxu0 %v3377
    %3833 = vmatpush1.bf16.msra.mxu0 %v3376
    %3834 = vmatprep.subr.bf16.mxu0 %v3373
    %3835 = vmatpush1.bf16.msra.mxu0 %v3372
    %3836 = vmatprep.subr.bf16.mxu0 0
    %3837 = vmatpush2.bf16.msra.mxu0 0
    %3838 = vmatprep.subr.bf16.mxu0 0
    %3839 = vmatpush2.bf16.msra.mxu0 0
    %3840 = vmatprep.subr.bf16.mxu0 0
    %3841 = vmatpush2.bf16.msra.mxu0 0
    %3842 = vmatprep.subr.bf16.mxu0 0
    %3843 = vmatpush2.bf16.msra.mxu0 0
    %3844 = vmatprep.subr.bf16.mxu0 0
    %3845 = vmatpush2.bf16.msra.mxu0 0
    %3846 = vmatprep.subr.bf16.mxu0 0
    %3847 = vmatpush2.bf16.msra.mxu0 0
    %3848 = vmatprep.subr.bf16.mxu0 0
    %3849 = vmatpush2.bf16.msra.mxu0 0
    %3850 = vmatprep.subr.bf16.mxu0 0
    %3851 = vmatpush2.bf16.msra.mxu0 0
    %3852 = vmatprep.mubr.bf16.mxu0 0
    %3853 = vmatmul.mubr.bf16.gmra.mxu0 %v3778
    %v3854 = vpop.f32.mrf.mxu0
    %v3855 = vadd.f32 0.0, %v3854
    %v3856 = vpop.f32.mrf.mxu0
    %v3857 = vadd.f32 0.0, %v3856
    %v3858 = vpop.f32.mrf.mxu0
    %v3859 = vpop.f32.mrf.mxu0
    %3860 = vdwg.mxu0
    %v3861 = vadd.f32 %v3774, %v3814
    %v3862 = vadd.f32 %v3775, %v3816
    %v3863 = vadd.f32 %v3776, %v3855
    %v3864 = vadd.f32 %v3777, %v3857
    %v3865 = vxor.u32 %v3861, 2147483648
    %v3866 = vmul.f32 %v3865, 1.442695
    %v3867 = vpow.pop %v3866
    %v3868 = vadd.f32 %v3867, 1.0
    %v3869 = vrcp.pop %v3868
    %v3870 = vmul.f32 1.0, %v3869
    %v3871 = vxor.u32 %v3862, 2147483648
    %v3872 = vmul.f32 %v3871, 1.442695
    %v3873 = vpow.pop %v3872
    %v3874 = vadd.f32 %v3873, 1.0
    %v3875 = vrcp.pop %v3874
    %v3876 = vmul.f32 1.0, %v3875
    %v3877 = vtanh.pop %v3863
    %v3878 = vxor.u32 %v3864, 2147483648
    %v3879 = vmul.f32 %v3878, 1.442695
    %v3880 = vpow.pop %v3879
    %v3881 = vadd.f32 %v3880, 1.0
    %v3882 = vrcp.pop %v3881
    %v3883 = vmul.f32 1.0, %v3882
    %v3884 = vmul.f32 %v3876, %v3771
    %v3885 = vmul.f32 %v3870, %v3877
    %v3886 = vadd.f32 %v3884, %v3885
    %v3887 = vtanh.pop %v3886
    %v3888 = vmul.f32 %v3883, %v3887
    %v3889 = vld [vmem:[%s1588] sm:$0xff]
    %v3890 = vld [vmem:[%s1588 + $0x8] sm:$0xff]
    %v3891 = vld [vmem:[%s1588 + $0x10] sm:$0xff]
    %v3892 = vld [vmem:[%s1588 + $0x18] sm:$0xff]
    %v3893 = vpack.c.bf16 %v3888, %v3888
    %3894 = vmatprep.subr.bf16.mxu0 %v3399
    %3895 = vmatpush1.bf16.msra.mxu0 %v3398
    %3896 = vmatprep.subr.bf16.mxu0 %v3395
    %3897 = vmatpush1.bf16.msra.mxu0 %v3394
    %3898 = vmatprep.subr.bf16.mxu0 %v3391
    %3899 = vmatpush1.bf16.msra.mxu0 %v3390
    %3900 = vmatprep.subr.bf16.mxu0 %v3387
    %3901 = vmatpush1.bf16.msra.mxu0 %v3386
    %3902 = vmatprep.subr.bf16.mxu0 %v3383
    %3903 = vmatpush1.bf16.msra.mxu0 %v3382
    %3904 = vmatprep.subr.bf16.mxu0 %v3379
    %3905 = vmatpush1.bf16.msra.mxu0 %v3378
    %3906 = vmatprep.subr.bf16.mxu0 %v3375
    %3907 = vmatpush1.bf16.msra.mxu0 %v3374
    %3908 = vmatprep.subr.bf16.mxu0 %v3371
    %3909 = vmatpush1.bf16.msra.mxu0 %v3370
    %3910 = vmatprep.subr.bf16.mxu0 0
    %3911 = vmatpush2.bf16.msra.mxu0 0
    %3912 = vmatprep.subr.bf16.mxu0 0
    %3913 = vmatpush2.bf16.msra.mxu0 0
    %3914 = vmatprep.subr.bf16.mxu0 0
    %3915 = vmatpush2.bf16.msra.mxu0 0
    %3916 = vmatprep.subr.bf16.mxu0 0
    %3917 = vmatpush2.bf16.msra.mxu0 0
    %3918 = vmatprep.subr.bf16.mxu0 0
    %3919 = vmatpush2.bf16.msra.mxu0 0
    %3920 = vmatprep.subr.bf16.mxu0 0
    %3921 = vmatpush2.bf16.msra.mxu0 0
    %3922 = vmatprep.subr.bf16.mxu0 0
    %3923 = vmatpush2.bf16.msra.mxu0 0
    %3924 = vmatprep.subr.bf16.mxu0 0
    %3925 = vmatpush2.bf16.msra.mxu0 0
    %3926 = vmatprep.mubr.bf16.mxu0 0
    %3927 = vmatmul.mubr.bf16.gmra.mxu0 %v3893
    %v3928 = vpop.f32.mrf.mxu0
    %v3929 = vadd.f32 0.0, %v3928
    %v3930 = vpop.f32.mrf.mxu0
    %v3931 = vadd.f32 0.0, %v3930
    %v3932 = vpop.f32.mrf.mxu0
    %v3933 = vpop.f32.mrf.mxu0
    %3934 = vdwg.mxu0
    %3935 = vmatprep.subr.bf16.mxu0 %v3401
    %3936 = vmatpush1.bf16.msra.mxu0 %v3400
    %3937 = vmatprep.subr.bf16.mxu0 %v3397
    %3938 = vmatpush1.bf16.msra.mxu0 %v3396
    %3939 = vmatprep.subr.bf16.mxu0 %v3393
    %3940 = vmatpush1.bf16.msra.mxu0 %v3392
    %3941 = vmatprep.subr.bf16.mxu0 %v3389
    %3942 = vmatpush1.bf16.msra.mxu0 %v3388
    %3943 = vmatprep.subr.bf16.mxu0 %v3385
    %3944 = vmatpush1.bf16.msra.mxu0 %v3384
    %3945 = vmatprep.subr.bf16.mxu0 %v3381
    %3946 = vmatpush1.bf16.msra.mxu0 %v3380
    %3947 = vmatprep.subr.bf16.mxu0 %v3377
    %3948 = vmatpush1.bf16.msra.mxu0 %v3376
    %3949 = vmatprep.subr.bf16.mxu0 %v3373
    %3950 = vmatpush1.bf16.msra.mxu0 %v3372
    %3951 = vmatprep.subr.bf16.mxu0 0
    %3952 = vmatpush2.bf16.msra.mxu0 0
    %3953 = vmatprep.subr.bf16.mxu0 0
    %3954 = vmatpush2.bf16.msra.mxu0 0
    %3955 = vmatprep.subr.bf16.mxu0 0
    %3956 = vmatpush2.bf16.msra.mxu0 0
    %3957 = vmatprep.subr.bf16.mxu0 0
    %3958 = vmatpush2.bf16.msra.mxu0 0
    %3959 = vmatprep.subr.bf16.mxu0 0
    %3960 = vmatpush2.bf16.msra.mxu0 0
    %3961 = vmatprep.subr.bf16.mxu0 0
    %3962 = vmatpush2.bf16.msra.mxu0 0
    %3963 = vmatprep.subr.bf16.mxu0 0
    %3964 = vmatpush2.bf16.msra.mxu0 0
    %3965 = vmatprep.subr.bf16.mxu0 0
    %3966 = vmatpush2.bf16.msra.mxu0 0
    %3967 = vmatprep.mubr.bf16.mxu0 0
    %3968 = vmatmul.mubr.bf16.gmra.mxu0 %v3893
    %v3969 = vpop.f32.mrf.mxu0
    %v3970 = vadd.f32 0.0, %v3969
    %v3971 = vpop.f32.mrf.mxu0
    %v3972 = vadd.f32 0.0, %v3971
    %v3973 = vpop.f32.mrf.mxu0
    %v3974 = vpop.f32.mrf.mxu0
    %3975 = vdwg.mxu0
    %v3976 = vadd.f32 %v3889, %v3929
    %v3977 = vadd.f32 %v3890, %v3931
    %v3978 = vadd.f32 %v3891, %v3970
    %v3979 = vadd.f32 %v3892, %v3972
    %v3980 = vxor.u32 %v3976, 2147483648
    %v3981 = vmul.f32 %v3980, 1.442695
    %v3982 = vpow.pop %v3981
    %v3983 = vadd.f32 %v3982, 1.0
    %v3984 = vrcp.pop %v3983
    %v3985 = vmul.f32 1.0, %v3984
    %v3986 = vxor.u32 %v3977, 2147483648
    %v3987 = vmul.f32 %v3986, 1.442695
    %v3988 = vpow.pop %v3987
    %v3989 = vadd.f32 %v3988, 1.0
    %v3990 = vrcp.pop %v3989
    %v3991 = vmul.f32 1.0, %v3990
    %v3992 = vtanh.pop %v3978
    %v3993 = vxor.u32 %v3979, 2147483648
    %v3994 = vmul.f32 %v3993, 1.442695
    %v3995 = vpow.pop %v3994
    %v3996 = vadd.f32 %v3995, 1.0
    %v3997 = vrcp.pop %v3996
    %v3998 = vmul.f32 1.0, %v3997
    %v3999 = vmul.f32 %v3991, %v3886
    %v4000 = vmul.f32 %v3985, %v3992
    %v4001 = vadd.f32 %v3999, %v4000
    %v4002 = vtanh.pop %v4001
    %v4003 = vmul.f32 %v3998, %v4002
    %v4004 = vld [vmem:[%s1900] sm:$0xff]
    %v4005 = vld [vmem:[%s1900 + $0x8] sm:$0xff]
    %v4006 = vld [vmem:[%s1900 + $0x10] sm:$0xff]
    %v4007 = vld [vmem:[%s1900 + $0x18] sm:$0xff]
    %v4008 = vpack.c.bf16 %v4003, %v4003
    %4009 = vmatprep.subr.bf16.mxu0 %v3399
    %4010 = vmatpush1.bf16.msra.mxu0 %v3398
    %4011 = vmatprep.subr.bf16.mxu0 %v3395
    %4012 = vmatpush1.bf16.msra.mxu0 %v3394
    %4013 = vmatprep.subr.bf16.mxu0 %v3391
    %4014 = vmatpush1.bf16.msra.mxu0 %v3390
    %4015 = vmatprep.subr.bf16.mxu0 %v3387
    %4016 = vmatpush1.bf16.msra.mxu0 %v3386
    %4017 = vmatprep.subr.bf16.mxu0 %v3383
    %4018 = vmatpush1.bf16.msra.mxu0 %v3382
    %4019 = vmatprep.subr.bf16.mxu0 %v3379
    %4020 = vmatpush1.bf16.msra.mxu0 %v3378
    %4021 = vmatprep.subr.bf16.mxu0 %v3375
    %4022 = vmatpush1.bf16.msra.mxu0 %v3374
    %4023 = vmatprep.subr.bf16.mxu0 %v3371
    %4024 = vmatpush1.bf16.msra.mxu0 %v3370
    %4025 = vmatprep.subr.bf16.mxu0 0
    %4026 = vmatpush2.bf16.msra.mxu0 0
    %4027 = vmatprep.subr.bf16.mxu0 0
    %4028 = vmatpush2.bf16.msra.mxu0 0
    %4029 = vmatprep.subr.bf16.mxu0 0
    %4030 = vmatpush2.bf16.msra.mxu0 0
    %4031 = vmatprep.subr.bf16.mxu0 0
    %4032 = vmatpush2.bf16.msra.mxu0 0
    %4033 = vmatprep.subr.bf16.mxu0 0
    %4034 = vmatpush2.bf16.msra.mxu0 0
    %4035 = vmatprep.subr.bf16.mxu0 0
    %4036 = vmatpush2.bf16.msra.mxu0 0
    %4037 = vmatprep.subr.bf16.mxu0 0
    %4038 = vmatpush2.bf16.msra.mxu0 0
    %4039 = vmatprep.subr.bf16.mxu0 0
    %4040 = vmatpush2.bf16.msra.mxu0 0
    %4041 = vmatprep.mubr.bf16.mxu0 0
    %4042 = vmatmul.mubr.bf16.gmra.mxu0 %v4008
    %v4043 = vpop.f32.mrf.mxu0
    %v4044 = vadd.f32 0.0, %v4043
    %v4045 = vpop.f32.mrf.mxu0
    %v4046 = vadd.f32 0.0, %v4045
    %v4047 = vpop.f32.mrf.mxu0
    %v4048 = vpop.f32.mrf.mxu0
    %4049 = vdwg.mxu0
    %4050 = vmatprep.subr.bf16.mxu0 %v3401
    %4051 = vmatpush1.bf16.msra.mxu0 %v3400
    %4052 = vmatprep.subr.bf16.mxu0 %v3397
    %4053 = vmatpush1.bf16.msra.mxu0 %v3396
    %4054 = vmatprep.subr.bf16.mxu0 %v3393
    %4055 = vmatpush1.bf16.msra.mxu0 %v3392
    %4056 = vmatprep.subr.bf16.mxu0 %v3389
    %4057 = vmatpush1.bf16.msra.mxu0 %v3388
    %4058 = vmatprep.subr.bf16.mxu0 %v3385
    %4059 = vmatpush1.bf16.msra.mxu0 %v3384
    %4060 = vmatprep.subr.bf16.mxu0 %v3381
    %4061 = vmatpush1.bf16.msra.mxu0 %v3380
    %4062 = vmatprep.subr.bf16.mxu0 %v3377
    %4063 = vmatpush1.bf16.msra.mxu0 %v3376
    %4064 = vmatprep.subr.bf16.mxu0 %v3373
    %4065 = vmatpush1.bf16.msra.mxu0 %v3372
    %4066 = vmatprep.subr.bf16.mxu0 0
    %4067 = vmatpush2.bf16.msra.mxu0 0
    %4068 = vmatprep.subr.bf16.mxu0 0
    %4069 = vmatpush2.bf16.msra.mxu0 0
    %4070 = vmatprep.subr.bf16.mxu0 0
    %4071 = vmatpush2.bf16.msra.mxu0 0
    %4072 = vmatprep.subr.bf16.mxu0 0
    %4073 = vmatpush2.bf16.msra.mxu0 0
    %4074 = vmatprep.subr.bf16.mxu0 0
    %4075 = vmatpush2.bf16.msra.mxu0 0
    %4076 = vmatprep.subr.bf16.mxu0 0
    %4077 = vmatpush2.bf16.msra.mxu0 0
    %4078 = vmatprep.subr.bf16.mxu0 0
    %4079 = vmatpush2.bf16.msra.mxu0 0
    %4080 = vmatprep.subr.bf16.mxu0 0
    %4081 = vmatpush2.bf16.msra.mxu0 0
    %4082 = vmatprep.mubr.bf16.mxu0 0
    %4083 = vmatmul.mubr.bf16.gmra.mxu0 %v4008
    %v4084 = vpop.f32.mrf.mxu0
    %v4085 = vadd.f32 0.0, %v4084
    %v4086 = vpop.f32.mrf.mxu0
    %v4087 = vadd.f32 0.0, %v4086
    %v4088 = vpop.f32.mrf.mxu0
    %v4089 = vpop.f32.mrf.mxu0
    %4090 = vdwg.mxu0
    %v4091 = vadd.f32 %v4004, %v4044
    %v4092 = vadd.f32 %v4005, %v4046
    %v4093 = vadd.f32 %v4006, %v4085
    %v4094 = vadd.f32 %v4007, %v4087
    %v4095 = vxor.u32 %v4091, 2147483648
    %v4096 = vmul.f32 %v4095, 1.442695
    %v4097 = vpow.pop %v4096
    %v4098 = vadd.f32 %v4097, 1.0
    %v4099 = vrcp.pop %v4098
    %v4100 = vmul.f32 1.0, %v4099
    %v4101 = vxor.u32 %v4092, 2147483648
    %v4102 = vmul.f32 %v4101, 1.442695
    %v4103 = vpow.pop %v4102
    %v4104 = vadd.f32 %v4103, 1.0
    %v4105 = vrcp.pop %v4104
    %v4106 = vmul.f32 1.0, %v4105
    %v4107 = vtanh.pop %v4093
    %v4108 = vxor.u32 %v4094, 2147483648
    %v4109 = vmul.f32 %v4108, 1.442695
    %v4110 = vpow.pop %v4109
    %v4111 = vadd.f32 %v4110, 1.0
    %v4112 = vrcp.pop %v4111
    %v4113 = vmul.f32 1.0, %v4112
    %v4114 = vmul.f32 %v4106, %v4001
    %v4115 = vmul.f32 %v4100, %v4107
    %v4116 = vadd.f32 %v4114, %v4115
    %v4117 = vtanh.pop %v4116
    %v4118 = vmul.f32 %v4113, %v4117
    %v4119 = vld [vmem:[%s2212] sm:$0xff]
    %v4120 = vld [vmem:[%s2212 + $0x8] sm:$0xff]
    %v4121 = vld [vmem:[%s2212 + $0x10] sm:$0xff]
    %v4122 = vld [vmem:[%s2212 + $0x18] sm:$0xff]
    %v4123 = vpack.c.bf16 %v4118, %v4118
    %4124 = vmatprep.subr.bf16.mxu0 %v3399
    %4125 = vmatpush1.bf16.msra.mxu0 %v3398
    %4126 = vmatprep.subr.bf16.mxu0 %v3395
    %4127 = vmatpush1.bf16.msra.mxu0 %v3394
    %4128 = vmatprep.subr.bf16.mxu0 %v3391
    %4129 = vmatpush1.bf16.msra.mxu0 %v3390
    %4130 = vmatprep.subr.bf16.mxu0 %v3387
    %4131 = vmatpush1.bf16.msra.mxu0 %v3386
    %4132 = vmatprep.subr.bf16.mxu0 %v3383
    %4133 = vmatpush1.bf16.msra.mxu0 %v3382
    %4134 = vmatprep.subr.bf16.mxu0 %v3379
    %4135 = vmatpush1.bf16.msra.mxu0 %v3378
    %4136 = vmatprep.subr.bf16.mxu0 %v3375
    %4137 = vmatpush1.bf16.msra.mxu0 %v3374
    %4138 = vmatprep.subr.bf16.mxu0 %v3371
    %4139 = vmatpush1.bf16.msra.mxu0 %v3370
    %4140 = vmatprep.subr.bf16.mxu0 0
    %4141 = vmatpush2.bf16.msra.mxu0 0
    %4142 = vmatprep.subr.bf16.mxu0 0
    %4143 = vmatpush2.bf16.msra.mxu0 0
    %4144 = vmatprep.subr.bf16.mxu0 0
    %4145 = vmatpush2.bf16.msra.mxu0 0
    %4146 = vmatprep.subr.bf16.mxu0 0
    %4147 = vmatpush2.bf16.msra.mxu0 0
    %4148 = vmatprep.subr.bf16.mxu0 0
    %4149 = vmatpush2.bf16.msra.mxu0 0
    %4150 = vmatprep.subr.bf16.mxu0 0
    %4151 = vmatpush2.bf16.msra.mxu0 0
    %4152 = vmatprep.subr.bf16.mxu0 0
    %4153 = vmatpush2.bf16.msra.mxu0 0
    %4154 = vmatprep.subr.bf16.mxu0 0
    %4155 = vmatpush2.bf16.msra.mxu0 0
    %4156 = vmatprep.mubr.bf16.mxu0 0
    %4157 = vmatmul.mubr.bf16.gmra.mxu0 %v4123
    %v4158 = vpop.f32.mrf.mxu0
    %v4159 = vadd.f32 0.0, %v4158
    %v4160 = vpop.f32.mrf.mxu0
    %v4161 = vadd.f32 0.0, %v4160
    %v4162 = vpop.f32.mrf.mxu0
    %v4163 = vpop.f32.mrf.mxu0
    %4164 = vdwg.mxu0
    %4165 = vmatprep.subr.bf16.mxu0 %v3401
    %4166 = vmatpush1.bf16.msra.mxu0 %v3400
    %4167 = vmatprep.subr.bf16.mxu0 %v3397
    %4168 = vmatpush1.bf16.msra.mxu0 %v3396
    %4169 = vmatprep.subr.bf16.mxu0 %v3393
    %4170 = vmatpush1.bf16.msra.mxu0 %v3392
    %4171 = vmatprep.subr.bf16.mxu0 %v3389
    %4172 = vmatpush1.bf16.msra.mxu0 %v3388
    %4173 = vmatprep.subr.bf16.mxu0 %v3385
    %4174 = vmatpush1.bf16.msra.mxu0 %v3384
    %4175 = vmatprep.subr.bf16.mxu0 %v3381
    %4176 = vmatpush1.bf16.msra.mxu0 %v3380
    %4177 = vmatprep.subr.bf16.mxu0 %v3377
    %4178 = vmatpush1.bf16.msra.mxu0 %v3376
    %4179 = vmatprep.subr.bf16.mxu0 %v3373
    %4180 = vmatpush1.bf16.msra.mxu0 %v3372
    %4181 = vmatprep.subr.bf16.mxu0 0
    %4182 = vmatpush2.bf16.msra.mxu0 0
    %4183 = vmatprep.subr.bf16.mxu0 0
    %4184 = vmatpush2.bf16.msra.mxu0 0
    %4185 = vmatprep.subr.bf16.mxu0 0
    %4186 = vmatpush2.bf16.msra.mxu0 0
    %4187 = vmatprep.subr.bf16.mxu0 0
    %4188 = vmatpush2.bf16.msra.mxu0 0
    %4189 = vmatprep.subr.bf16.mxu0 0
    %4190 = vmatpush2.bf16.msra.mxu0 0
    %4191 = vmatprep.subr.bf16.mxu0 0
    %4192 = vmatpush2.bf16.msra.mxu0 0
    %4193 = vmatprep.subr.bf16.mxu0 0
    %4194 = vmatpush2.bf16.msra.mxu0 0
    %4195 = vmatprep.subr.bf16.mxu0 0
    %4196 = vmatpush2.bf16.msra.mxu0 0
    %4197 = vmatprep.mubr.bf16.mxu0 0
    %4198 = vmatmul.mubr.bf16.gmra.mxu0 %v4123
    %v4199 = vpop.f32.mrf.mxu0
    %v4200 = vadd.f32 0.0, %v4199
    %v4201 = vpop.f32.mrf.mxu0
    %v4202 = vadd.f32 0.0, %v4201
    %v4203 = vpop.f32.mrf.mxu0
    %v4204 = vpop.f32.mrf.mxu0
    %4205 = vdwg.mxu0
    %v4206 = vadd.f32 %v4119, %v4159
    %v4207 = vadd.f32 %v4120, %v4161
    %v4208 = vadd.f32 %v4121, %v4200
    %v4209 = vadd.f32 %v4122, %v4202
    %v4210 = vxor.u32 %v4206, 2147483648
    %v4211 = vmul.f32 %v4210, 1.442695
    %v4212 = vpow.pop %v4211
    %v4213 = vadd.f32 %v4212, 1.0
    %v4214 = vrcp.pop %v4213
    %v4215 = vmul.f32 1.0, %v4214
    %v4216 = vxor.u32 %v4207, 2147483648
    %v4217 = vmul.f32 %v4216, 1.442695
    %v4218 = vpow.pop %v4217
    %v4219 = vadd.f32 %v4218, 1.0
    %v4220 = vrcp.pop %v4219
    %v4221 = vmul.f32 1.0, %v4220
    %v4222 = vtanh.pop %v4208
    %v4223 = vxor.u32 %v4209, 2147483648
    %v4224 = vmul.f32 %v4223, 1.442695
    %v4225 = vpow.pop %v4224
    %v4226 = vadd.f32 %v4225, 1.0
    %v4227 = vrcp.pop %v4226
    %v4228 = vmul.f32 1.0, %v4227
    %v4229 = vmul.f32 %v4221, %v4116
    %v4230 = vmul.f32 %v4215, %v4222
    %v4231 = vadd.f32 %v4229, %v4230
    %v4232 = vtanh.pop %v4231
    %v4233 = vmul.f32 %v4228, %v4232
    %v4234 = vld [vmem:[%s2524] sm:$0xff]
    %v4235 = vld [vmem:[%s2524 + $0x8] sm:$0xff]
    %v4236 = vld [vmem:[%s2524 + $0x10] sm:$0xff]
    %v4237 = vld [vmem:[%s2524 + $0x18] sm:$0xff]
    %v4238 = vpack.c.bf16 %v4233, %v4233
    %4239 = vmatprep.subr.bf16.mxu0 %v3399
    %4240 = vmatpush1.bf16.msra.mxu0 %v3398
    %4241 = vmatprep.subr.bf16.mxu0 %v3395
    %4242 = vmatpush1.bf16.msra.mxu0 %v3394
    %4243 = vmatprep.subr.bf16.mxu0 %v3391
    %4244 = vmatpush1.bf16.msra.mxu0 %v3390
    %4245 = vmatprep.subr.bf16.mxu0 %v3387
    %4246 = vmatpush1.bf16.msra.mxu0 %v3386
    %4247 = vmatprep.subr.bf16.mxu0 %v3383
    %4248 = vmatpush1.bf16.msra.mxu0 %v3382
    %4249 = vmatprep.subr.bf16.mxu0 %v3379
    %4250 = vmatpush1.bf16.msra.mxu0 %v3378
    %4251 = vmatprep.subr.bf16.mxu0 %v3375
    %4252 = vmatpush1.bf16.msra.mxu0 %v3374
    %4253 = vmatprep.subr.bf16.mxu0 %v3371
    %4254 = vmatpush1.bf16.msra.mxu0 %v3370
    %4255 = vmatprep.subr.bf16.mxu0 0
    %4256 = vmatpush2.bf16.msra.mxu0 0
    %4257 = vmatprep.subr.bf16.mxu0 0
    %4258 = vmatpush2.bf16.msra.mxu0 0
    %4259 = vmatprep.subr.bf16.mxu0 0
    %4260 = vmatpush2.bf16.msra.mxu0 0
    %4261 = vmatprep.subr.bf16.mxu0 0
    %4262 = vmatpush2.bf16.msra.mxu0 0
    %4263 = vmatprep.subr.bf16.mxu0 0
    %4264 = vmatpush2.bf16.msra.mxu0 0
    %4265 = vmatprep.subr.bf16.mxu0 0
    %4266 = vmatpush2.bf16.msra.mxu0 0
    %4267 = vmatprep.subr.bf16.mxu0 0
    %4268 = vmatpush2.bf16.msra.mxu0 0
    %4269 = vmatprep.subr.bf16.mxu0 0
    %4270 = vmatpush2.bf16.msra.mxu0 0
    %4271 = vmatprep.mubr.bf16.mxu0 0
    %4272 = vmatmul.mubr.bf16.gmra.mxu0 %v4238
    %v4273 = vpop.f32.mrf.mxu0
    %v4274 = vadd.f32 0.0, %v4273
    %v4275 = vpop.f32.mrf.mxu0
    %v4276 = vadd.f32 0.0, %v4275
    %v4277 = vpop.f32.mrf.mxu0
    %v4278 = vpop.f32.mrf.mxu0
    %4279 = vdwg.mxu0
    %4280 = vmatprep.subr.bf16.mxu0 %v3401
    %4281 = vmatpush1.bf16.msra.mxu0 %v3400
    %4282 = vmatprep.subr.bf16.mxu0 %v3397
    %4283 = vmatpush1.bf16.msra.mxu0 %v3396
    %4284 = vmatprep.subr.bf16.mxu0 %v3393
    %4285 = vmatpush1.bf16.msra.mxu0 %v3392
    %4286 = vmatprep.subr.bf16.mxu0 %v3389
    %4287 = vmatpush1.bf16.msra.mxu0 %v3388
    %4288 = vmatprep.subr.bf16.mxu0 %v3385
    %4289 = vmatpush1.bf16.msra.mxu0 %v3384
    %4290 = vmatprep.subr.bf16.mxu0 %v3381
    %4291 = vmatpush1.bf16.msra.mxu0 %v3380
    %4292 = vmatprep.subr.bf16.mxu0 %v3377
    %4293 = vmatpush1.bf16.msra.mxu0 %v3376
    %4294 = vmatprep.subr.bf16.mxu0 %v3373
    %4295 = vmatpush1.bf16.msra.mxu0 %v3372
    %4296 = vmatprep.subr.bf16.mxu0 0
    %4297 = vmatpush2.bf16.msra.mxu0 0
    %4298 = vmatprep.subr.bf16.mxu0 0
    %4299 = vmatpush2.bf16.msra.mxu0 0
    %4300 = vmatprep.subr.bf16.mxu0 0
    %4301 = vmatpush2.bf16.msra.mxu0 0
    %4302 = vmatprep.subr.bf16.mxu0 0
    %4303 = vmatpush2.bf16.msra.mxu0 0
    %4304 = vmatprep.subr.bf16.mxu0 0
    %4305 = vmatpush2.bf16.msra.mxu0 0
    %4306 = vmatprep.subr.bf16.mxu0 0
    %4307 = vmatpush2.bf16.msra.mxu0 0
    %4308 = vmatprep.subr.bf16.mxu0 0
    %4309 = vmatpush2.bf16.msra.mxu0 0
    %4310 = vmatprep.subr.bf16.mxu0 0
    %4311 = vmatpush2.bf16.msra.mxu0 0
    %4312 = vmatprep.mubr.bf16.mxu0 0
    %4313 = vmatmul.mubr.bf16.gmra.mxu0 %v4238
    %v4314 = vpop.f32.mrf.mxu0
    %v4315 = vadd.f32 0.0, %v4314
    %v4316 = vpop.f32.mrf.mxu0
    %v4317 = vadd.f32 0.0, %v4316
    %v4318 = vpop.f32.mrf.mxu0
    %v4319 = vpop.f32.mrf.mxu0
    %4320 = vdwg.mxu0
    %v4321 = vadd.f32 %v4234, %v4274
    %v4322 = vadd.f32 %v4235, %v4276
    %v4323 = vadd.f32 %v4236, %v4315
    %v4324 = vadd.f32 %v4237, %v4317
    %v4325 = vxor.u32 %v4321, 2147483648
    %v4326 = vmul.f32 %v4325, 1.442695
    %v4327 = vpow.pop %v4326
    %v4328 = vadd.f32 %v4327, 1.0
    %v4329 = vrcp.pop %v4328
    %v4330 = vmul.f32 1.0, %v4329
    %v4331 = vxor.u32 %v4322, 2147483648
    %v4332 = vmul.f32 %v4331, 1.442695
    %v4333 = vpow.pop %v4332
    %v4334 = vadd.f32 %v4333, 1.0
    %v4335 = vrcp.pop %v4334
    %v4336 = vmul.f32 1.0, %v4335
    %v4337 = vtanh.pop %v4323
    %v4338 = vxor.u32 %v4324, 2147483648
    %v4339 = vmul.f32 %v4338, 1.442695
    %v4340 = vpow.pop %v4339
    %v4341 = vadd.f32 %v4340, 1.0
    %v4342 = vrcp.pop %v4341
    %v4343 = vmul.f32 1.0, %v4342
    %v4344 = vmul.f32 %v4336, %v4231
    %v4345 = vmul.f32 %v4330, %v4337
    %v4346 = vadd.f32 %v4344, %v4345
    %v4347 = vtanh.pop %v4346
    %v4348 = vmul.f32 %v4343, %v4347
    %v4349 = vpack.c.bf16 %v4348, %v4348
    %v4350 = vld [vmem:[%s7] sm:$0xf]
    %v4351 = vld [vmem:[%s7 + $0x4] sm:$0xf]
    %v4352 = vld [vmem:[%s7 + $0x8] sm:$0xf]
    %v4353 = vld [vmem:[%s7 + $0xc] sm:$0xf]
    %v4354 = vld [vmem:[%s7 + $0x10] sm:$0xf]
    %v4355 = vld [vmem:[%s7 + $0x14] sm:$0xf]
    %v4356 = vld [vmem:[%s7 + $0x18] sm:$0xf]
    %v4357 = vld [vmem:[%s7 + $0x1c] sm:$0xf]
    %v4358 = vld [vmem:[%s7 + $0x20] sm:$0xf]
    %v4359 = vld [vmem:[%s7 + $0x24] sm:$0xf]
    %v4360 = vld [vmem:[%s7 + $0x28] sm:$0xf]
    %v4361 = vld [vmem:[%s7 + $0x2c] sm:$0xf]
    %v4362 = vld [vmem:[%s7 + $0x30] sm:$0xf]
    %v4363 = vld [vmem:[%s7 + $0x34] sm:$0xf]
    %v4364 = vld [vmem:[%s7 + $0x38] sm:$0xf]
    %v4365 = vld [vmem:[%s7 + $0x3c] sm:$0xf]
    %v4366 = vld [vmem:[%s8] sm:$0x1]
    %v4368 = vlaneseq
    %v4369 = vshrl.u32 %v4368, 7
    %v4370 = vsub.s32 0, %v4369
    %v4371 = vrot.slane %v4366, %v4370
    %v4389 = vunpack.c.l.b16 %v4350
    %v4390 = vunpack.c.l.b16 %v4351
    %v4391 = vunpack.c.l.b16 %v4352
    %v4392 = vunpack.c.l.b16 %v4353
    %v4393 = vunpack.c.l.b16 %v4354
    %v4394 = vunpack.c.l.b16 %v4355
    %v4395 = vunpack.c.l.b16 %v4356
    %v4396 = vunpack.c.l.b16 %v4357
    %v4397 = vunpack.c.l.b16 %v4358
    %v4398 = vunpack.c.l.b16 %v4359
    %v4399 = vunpack.c.l.b16 %v4360
    %v4400 = vunpack.c.l.b16 %v4361
    %v4401 = vunpack.c.l.b16 %v4362
    %v4402 = vunpack.c.l.b16 %v4363
    %v4403 = vunpack.c.l.b16 %v4364
    %v4404 = vunpack.c.l.b16 %v4365
    %v4405 = vpack.c.b16 %v4390, %v4389
    %v4406 = vpack.c.b16 %v4392, %v4391
    %v4407 = vpack.c.b16 %v4394, %v4393
    %v4408 = vpack.c.b16 %v4396, %v4395
    %v4409 = vpack.c.b16 %v4398, %v4397
    %v4410 = vpack.c.b16 %v4400, %v4399
    %v4411 = vpack.c.b16 %v4402, %v4401
    %v4412 = vpack.c.b16 %v4404, %v4403
    %4421 = vmatprep.subr.bf16.mxu0 0
    %4422 = vmatpush1.bf16.msra.mxu0 %v4412
    %4423 = vmatprep.subr.bf16.mxu0 0
    %4424 = vmatpush1.bf16.msra.mxu0 %v4411
    %4425 = vmatprep.subr.bf16.mxu0 0
    %4426 = vmatpush1.bf16.msra.mxu0 %v4410
    %4427 = vmatprep.subr.bf16.mxu0 0
    %4428 = vmatpush1.bf16.msra.mxu0 %v4409
    %4429 = vmatprep.subr.bf16.mxu0 0
    %4430 = vmatpush1.bf16.msra.mxu0 %v4408
    %4431 = vmatprep.subr.bf16.mxu0 0
    %4432 = vmatpush1.bf16.msra.mxu0 %v4407
    %4433 = vmatprep.subr.bf16.mxu0 0
    %4434 = vmatpush1.bf16.msra.mxu0 %v4406
    %4435 = vmatprep.subr.bf16.mxu0 0
    %4436 = vmatpush1.bf16.msra.mxu0 %v4405
    %4437 = vmatprep.subr.bf16.mxu0 0
    %4438 = vmatpush2.bf16.msra.mxu0 0
    %4439 = vmatprep.subr.bf16.mxu0 0
    %4440 = vmatpush2.bf16.msra.mxu0 0
    %4441 = vmatprep.subr.bf16.mxu0 0
    %4442 = vmatpush2.bf16.msra.mxu0 0
    %4443 = vmatprep.subr.bf16.mxu0 0
    %4444 = vmatpush2.bf16.msra.mxu0 0
    %4445 = vmatprep.subr.bf16.mxu0 0
    %4446 = vmatpush2.bf16.msra.mxu0 0
    %4447 = vmatprep.subr.bf16.mxu0 0
    %4448 = vmatpush2.bf16.msra.mxu0 0
    %4449 = vmatprep.subr.bf16.mxu0 0
    %4450 = vmatpush2.bf16.msra.mxu0 0
    %4451 = vmatprep.subr.bf16.mxu0 0
    %4452 = vmatpush2.bf16.msra.mxu0 0
    %4453 = vmatprep.mubr.bf16.mxu0 0
    %4454 = vmatmul.mubr.bf16.gmra.mxu0 %v4349
    %v4455 = vpop.f32.mrf.mxu0
    %v4456 = vadd.f32 %v4371, %v4455
    %v4457 = vpop.f32.mrf.mxu0
    %v4458 = vpop.f32.mrf.mxu0
    %v4459 = vpop.f32.mrf.mxu0
    %4460 = vdwg.mxu0
    %vm4461 = vcmask 23552
    %4462 = vst.msk [vmem:[%s9] sm:$0xff] %vm4461, %v4456
    // Predicated region
    $region50: #{tpu_custom_call.1} parent=1 // pred_check
      _
    $region51: #{tpu_custom_call.1} parent=1 // pred_check_branch
      %4464 = sbr.rel (0) target = $region53
    $region52: #{tpu_custom_call.1} parent=1 // pred_region
      _
    $region53: #{tpu_custom_call.1} parent=1 // pred_fallthru
      _
    // Predicated region
    $region54: #{tpu_custom_call.1} parent=1 // pred_check
      _
    $region55: #{tpu_custom_call.1} parent=1 // pred_check_branch
      %4466 = sbr.rel (0) target = $region57
    $region56: #{tpu_custom_call.1} parent=1 // pred_region
      _
    $region57: #{tpu_custom_call.1} parent=1 // pred_fallthru
      _
    %4467 = vsyncpa [#allocation5], 1
    %4468 = vsyncpa [#allocation7], 1

</llo_original>
